<compile_context>
chip_gen: v7x
topology: tpu7x:2x2x1
jax: 0.10.0
libtpu: 0.0.40
codegen_flags: <defaults>
</compile_context>

<pallas_src>
import functools

import jax
import jax.numpy as jnp
from jax.experimental import pallas as pl
from jax.experimental.pallas import tpu as pltpu

OMEGA_0 = 30.0  # first_omega_0 == hidden_omega_0 == 30.0 in the module defaults


def get_mgrid(sidelen, dim=2):
    t = jnp.linspace(-1.0, 1.0, sidelen, dtype=jnp.float32)
    grids = jnp.meshgrid(*([t] * dim), indexing="ij")
    return jnp.stack(grids, axis=-1).reshape(-1, dim).astype(jnp.float32)


def _round_up(x, m):
    return (x + m - 1) // m * m


def batch_siren_kernel(w0a_ref, w0b_ref, b0_ref, w1bd_ref, b1_ref,
                       w2_ref, b2_ref, out_ref, *, sidelen, TN, G, H):
    # w0a/w0b/b0/b1/w2: (1, G*H, 1)   w1bd: (1, G*H, G*H)   b2: (1, G, 1)
    # out: (1, G, TN)  -- N rides the 128-lane axis, G groups on sublanes.
    step = 2.0 / (sidelen - 1) if sidelen > 1 else 0.0

    # --- coordinates generated in-kernel (default mgrid of the module) ------
    lane = jax.lax.broadcasted_iota(jnp.int32, (1, TN), 1).astype(jnp.float32)
    n_f = lane + (pl.program_id(1) * TN).astype(jnp.float32)   # global pixel idx
    # float div with +0.5 guard is exact for sidelen up to ~2.8k (row-major grid)
    r = jnp.floor((n_f + 0.5) / float(sidelen))
    c = n_f - r * float(sidelen)
    x0 = r * step - 1.0                                        # (1, TN)
    x1 = c * step - 1.0                                        # (1, TN)

    # --- layer 0: K=2 contraction as VPU broadcast FMAs (omega pre-folded) --
    h = jnp.sin(w0a_ref[0] * x0 + w0b_ref[0] * x1 + b0_ref[0])  # (G*H, TN)

    # --- layer 1: block-diagonal hidden matmul on the MXU (omega pre-folded)
    h = jnp.sin(jnp.dot(w1bd_ref[0], h,
                        preferred_element_type=jnp.float32,
                        precision=jax.lax.Precision.HIGHEST) + b1_ref[0])

    # --- layer 2 (outermost linear): VPU mul + per-group sublane reduction --
    y = jnp.sum((w2_ref[0] * h).reshape(G, H, TN), axis=1) + b2_ref[0]  # (G, TN)

    out_ref[...] = y[None]                                      # (1, G, TN)


def batch_siren_forward(weights, biases, sidelen, *, g_target=8, tn_max=8192):
    """weights: [(B,2,H,1), (B,H,H,1), (B,H,1,1)]; biases: [(B,H,1),(B,H,1),(B,1,1)].
    Returns (B, N, 1) with N = sidelen**2, matching the PyTorch module."""
    # TODO(synk): custom `input_init` coordinate grids are not supported here;
    # coords are generated in-kernel from the default get_mgrid(sidelen, 2).
    B = weights[0].shape[0]
    H = weights[0].shape[2]
    assert weights[0].shape[1] == 2
    N = sidelen * sidelen

    # ---- batch packing: G elements per grid step (block-diagonal hidden W) -
    G = min(g_target, B)                 # use 4 on v5e (128-wide MXU)
    B_pad = _round_up(B, G)
    n_groups = B_pad // G

    def pad_b(a):
        if B_pad == B:
            return a
        return jnp.pad(a, [(0, B_pad - B)] + [(0, 0)] * (a.ndim - 1))

    w0 = pad_b(weights[0][..., 0].astype(jnp.float32))          # (B_pad, 2, H)
    w1 = pad_b(weights[1][..., 0].astype(jnp.float32))          # (B_pad, H, H)
    w2 = pad_b(weights[2][..., 0].astype(jnp.float32))          # (B_pad, H, 1)
    b0 = pad_b(biases[0][..., 0].astype(jnp.float32))           # (B_pad, H)
    b1 = pad_b(biases[1][..., 0].astype(jnp.float32))           # (B_pad, H)
    b2 = pad_b(biases[2][..., 0].astype(jnp.float32))           # (B_pad, 1)

    # ---- fold OMEGA_0 into every tensor that feeds a sin (tiny, one-time) --
    w0t = OMEGA_0 * jnp.swapaxes(w0, 1, 2)                      # (B_pad, H, 2)
    w0a = w0t[:, :, 0].reshape(n_groups, G * H, 1)
    w0b = w0t[:, :, 1].reshape(n_groups, G * H, 1)
    b0p = (OMEGA_0 * b0).reshape(n_groups, G * H, 1)

    w1t = OMEGA_0 * jnp.swapaxes(w1, 1, 2)                      # (B_pad, H, H)
    w1g = w1t.reshape(n_groups, G, H, H)
    eye = jnp.eye(G, dtype=jnp.float32)
    w1bd = (w1g[:, :, None] * eye[None, :, :, None, None])      # (ng, G, G, H, H)
    w1bd = w1bd.transpose(0, 1, 3, 2, 4).reshape(n_groups, G * H, G * H)
    b1p = (OMEGA_0 * b1).reshape(n_groups, G * H, 1)

    w2p = w2.reshape(n_groups, G * H, 1)                        # outermost: no omega
    b2p = b2.reshape(n_groups, G, 1)

    # ---- lane tiling of the pixel axis -------------------------------------
    TN = min(_round_up(N, 128), tn_max)
    N_pad = _round_up(N, TN)
    n_tiles = N_pad // TN

    kernel = functools.partial(batch_siren_kernel,
                               sidelen=sidelen, TN=TN, G=G, H=H)

    out = pl.pallas_call(
        kernel,
        out_shape=jax.ShapeDtypeStruct((n_groups, G, N_pad), jnp.float32),
        grid_spec=pltpu.PrefetchScalarGridSpec(
            num_scalar_prefetch=0,
            grid=(n_groups, n_tiles),   # pixel tiles innermost; weights stay resident
            in_specs=[
                pl.BlockSpec((1, G * H, 1), lambda g, t: (g, 0, 0)),      # W0 col x
                pl.BlockSpec((1, G * H, 1), lambda g, t: (g, 0, 0)),      # W0 col y
                pl.BlockSpec((1, G * H, 1), lambda g, t: (g, 0, 0)),      # b0
                pl.BlockSpec((1, G * H, G * H), lambda g, t: (g, 0, 0)),  # W1 blkdiag
                pl.BlockSpec((1, G * H, 1), lambda g, t: (g, 0, 0)),      # b1
                pl.BlockSpec((1, G * H, 1), lambda g, t: (g, 0, 0)),      # W2
                pl.BlockSpec((1, G, 1), lambda g, t: (g, 0, 0)),          # b2
            ],
            out_specs=pl.BlockSpec((1, G, TN), lambda g, t: (g, 0, t)),
        ),
        compiler_params=pltpu.CompilerParams(
            dimension_semantics=("parallel", "parallel"),
            vmem_limit_bytes=48 * 1024 * 1024),
    )(w0a, w0b, b0p, w1bd, b1p, w2p, b2p)

    # (n_groups, G, N_pad) -> (B, N, 1), dropping batch/pixel padding.
    return out.reshape(B_pad, N_pad)[:B, :N][..., None]


def reference_forward(weights, biases, coords):
    B = weights[0].shape[0]
    hp = jax.lax.Precision.HIGHEST
    x = jnp.broadcast_to(coords[None], (B,) + coords.shape)
    h = jnp.sin(OMEGA_0 * (jnp.einsum("bni,bio->bno", x, weights[0][..., 0],
                                      precision=hp)
                           + biases[0][..., 0][:, None, :]))
    h = jnp.sin(OMEGA_0 * (jnp.einsum("bni,bio->bno", h, weights[1][..., 0],
                                      precision=hp)
                           + biases[1][..., 0][:, None, :]))
    y = (jnp.einsum("bni,bio->bno", h, weights[2][..., 0], precision=hp)
         + biases[2][..., 0][:, None, :])
    return y


if __name__ == "__main__":
    key = jax.random.PRNGKey(0)

    B = 2
    in_features, hidden_features, hidden_layers, out_features = 2, 32, 1, 1
    sidelen = 16
    coords = get_mgrid(sidelen, 2)  # (256, 2) — matches self.inputs in the module

    # Deterministic synthetic per-sample SIREN parameters (SIREN init ranges).
    dims = [(in_features, hidden_features),
            (hidden_features, hidden_features),
            (hidden_features, out_features)]
    weights, biases = [], []
    for li, (fi, fo) in enumerate(dims):
        key, kw, kb = jax.random.split(key, 3)
        if li == 0:
            w_bound = 1.0 / fi
        else:
            w_bound = (6.0 / fi) ** 0.5 / OMEGA_0
        b_bound = 1.0 / (fi ** 0.5)
        weights.append(jax.random.uniform(
            kw, (B, fi, fo, 1), minval=-w_bound, maxval=w_bound, dtype=jnp.float32))
        biases.append(jax.random.uniform(
            kb, (B, fo, 1), minval=-b_bound, maxval=b_bound, dtype=jnp.float32))

    out = batch_siren_forward(weights, biases, sidelen)
    out = jax.block_until_ready(out)

    ref = reference_forward(weights, biases, coords)
    assert out.shape == (B, sidelen * sidelen, 1), out.shape
    assert jnp.allclose(out, ref, atol=1e-3, rtol=1e-3), float(
        jnp.max(jnp.abs(out - ref)))

    print("KERNEL_OK")
</pallas_src>

<mosaic_0001>
module attributes {stable_mosaic.version = 11 : i64} {
  func.func @batch_siren_kernel(%arg0: i32, %arg1: i32, %arg2: memref<1x64x1xf32, #tpu.memory_space<vmem>>, %arg3: memref<1x64x1xf32, #tpu.memory_space<vmem>>, %arg4: memref<1x64x1xf32, #tpu.memory_space<vmem>>, %arg5: memref<1x64x64xf32, #tpu.memory_space<vmem>>, %arg6: memref<1x64x1xf32, #tpu.memory_space<vmem>>, %arg7: memref<1x64x1xf32, #tpu.memory_space<vmem>>, %arg8: memref<1x2x1xf32, #tpu.memory_space<vmem>>, %arg9: memref<1x2x256xf32, #tpu.memory_space<vmem>>) attributes {dimension_semantics = [#tpu.dimension_semantics<parallel>, #tpu.dimension_semantics<parallel>], iteration_bounds = array<i64: 1, 1>, scalar_prefetch = 0 : i64, scratch_operands = 0 : i64, tpu.core_type = #tpu.core_type<tc>, window_params = [{transform_indices = @transform_0, window_bounds = array<i64: 1, 64, 1>}, {transform_indices = @transform_1, window_bounds = array<i64: 1, 64, 1>}, {transform_indices = @transform_2, window_bounds = array<i64: 1, 64, 1>}, {transform_indices = @transform_3, window_bounds = array<i64: 1, 64, 64>}, {transform_indices = @transform_4, window_bounds = array<i64: 1, 64, 1>}, {transform_indices = @transform_5, window_bounds = array<i64: 1, 64, 1>}, {transform_indices = @transform_6, window_bounds = array<i64: 1, 2, 1>}, {transform_indices = @transform_7, window_bounds = array<i64: 1, 2, 256>}]} {
    %0 = tpu.iota {dimensions = array<i32: 1>} : vector<1x256xi32>
    %1 = arith.sitofp %0 : vector<1x256xi32> to vector<1x256xf32>
    %c256_i32 = arith.constant 256 : i32
    %2 = arith.muli %arg1, %c256_i32 : i32
    %3 = arith.sitofp %2 : i32 to f32
    %4 = vector.broadcast %3 : f32 to vector<1x256xf32>
    %5 = arith.addf %1, %4 : vector<1x256xf32>
    %cst = arith.constant 5.000000e-01 : f32
    %6 = vector.broadcast %cst : f32 to vector<1x256xf32>
    %7 = arith.addf %5, %6 : vector<1x256xf32>
    %cst_0 = arith.constant 1.600000e+01 : f32
    %8 = vector.broadcast %cst_0 : f32 to vector<1x256xf32>
    %9 = arith.divf %7, %8 : vector<1x256xf32>
    %10 = math.floor %9 : vector<1x256xf32>
    %cst_1 = arith.constant 1.600000e+01 : f32
    %11 = vector.broadcast %cst_1 : f32 to vector<1x256xf32>
    %12 = arith.mulf %10, %11 : vector<1x256xf32>
    %13 = arith.subf %5, %12 : vector<1x256xf32>
    %cst_2 = arith.constant 0.13333334 : f32
    %14 = vector.broadcast %cst_2 : f32 to vector<1x256xf32>
    %15 = arith.mulf %10, %14 : vector<1x256xf32>
    %cst_3 = arith.constant 1.000000e+00 : f32
    %16 = vector.broadcast %cst_3 : f32 to vector<1x256xf32>
    %17 = arith.subf %15, %16 : vector<1x256xf32>
    %cst_4 = arith.constant 0.13333334 : f32
    %18 = vector.broadcast %cst_4 : f32 to vector<1x256xf32>
    %19 = arith.mulf %13, %18 : vector<1x256xf32>
    %cst_5 = arith.constant 1.000000e+00 : f32
    %20 = vector.broadcast %cst_5 : f32 to vector<1x256xf32>
    %21 = arith.subf %19, %20 : vector<1x256xf32>
    %c0 = arith.constant 0 : index
    %c0_6 = arith.constant 0 : index
    %c0_7 = arith.constant 0 : index
    %22 = vector.load %arg2[%c0, %c0_6, %c0_7] : memref<1x64x1xf32, #tpu.memory_space<vmem>>, vector<1x64x1xf32>
    %23 = vector.shape_cast %22 : vector<1x64x1xf32> to vector<64x1xf32>
    %24 = vector.broadcast %23 : vector<64x1xf32> to vector<64x256xf32>
    %25 = vector.broadcast %17 : vector<1x256xf32> to vector<64x256xf32>
    %26 = arith.mulf %24, %25 : vector<64x256xf32>
    %c0_8 = arith.constant 0 : index
    %c0_9 = arith.constant 0 : index
    %c0_10 = arith.constant 0 : index
    %27 = vector.load %arg3[%c0_8, %c0_9, %c0_10] : memref<1x64x1xf32, #tpu.memory_space<vmem>>, vector<1x64x1xf32>
    %28 = vector.shape_cast %27 : vector<1x64x1xf32> to vector<64x1xf32>
    %29 = vector.broadcast %28 : vector<64x1xf32> to vector<64x256xf32>
    %30 = vector.broadcast %21 : vector<1x256xf32> to vector<64x256xf32>
    %31 = arith.mulf %29, %30 : vector<64x256xf32>
    %32 = arith.addf %26, %31 : vector<64x256xf32>
    %c0_11 = arith.constant 0 : index
    %c0_12 = arith.constant 0 : index
    %c0_13 = arith.constant 0 : index
    %33 = vector.load %arg4[%c0_11, %c0_12, %c0_13] : memref<1x64x1xf32, #tpu.memory_space<vmem>>, vector<1x64x1xf32>
    %34 = vector.shape_cast %33 : vector<1x64x1xf32> to vector<64x1xf32>
    %35 = vector.broadcast %34 : vector<64x1xf32> to vector<64x256xf32>
    %36 = arith.addf %32, %35 : vector<64x256xf32>
    %37 = math.sin %36 : vector<64x256xf32>
    %c0_14 = arith.constant 0 : index
    %c0_15 = arith.constant 0 : index
    %c0_16 = arith.constant 0 : index
    %38 = vector.load %arg5[%c0_14, %c0_15, %c0_16] : memref<1x64x64xf32, #tpu.memory_space<vmem>>, vector<1x64x64xf32>
    %39 = vector.shape_cast %38 : vector<1x64x64xf32> to vector<64x64xf32>
    %cst_17 = arith.constant dense<0.000000e+00> : vector<64x256xf32>
    %40 = tpu.matmul %39, %37, %cst_17 {dimension_numbers = #tpu.dot_dimension_numbers<[1], [0], [0], [1], [0, 0, 1, 1], [], []>, precision = #tpu.contract_precision<fp32>} : vector<64x64xf32>, vector<64x256xf32>, vector<64x256xf32> -> vector<64x256xf32>
    %c0_18 = arith.constant 0 : index
    %c0_19 = arith.constant 0 : index
    %c0_20 = arith.constant 0 : index
    %41 = vector.load %arg6[%c0_18, %c0_19, %c0_20] : memref<1x64x1xf32, #tpu.memory_space<vmem>>, vector<1x64x1xf32>
    %42 = vector.shape_cast %41 : vector<1x64x1xf32> to vector<64x1xf32>
    %43 = vector.broadcast %42 : vector<64x1xf32> to vector<64x256xf32>
    %44 = arith.addf %40, %43 : vector<64x256xf32>
    %45 = math.sin %44 : vector<64x256xf32>
    %c0_21 = arith.constant 0 : index
    %c0_22 = arith.constant 0 : index
    %c0_23 = arith.constant 0 : index
    %46 = vector.load %arg7[%c0_21, %c0_22, %c0_23] : memref<1x64x1xf32, #tpu.memory_space<vmem>>, vector<1x64x1xf32>
    %47 = vector.shape_cast %46 : vector<1x64x1xf32> to vector<64x1xf32>
    %48 = vector.broadcast %47 : vector<64x1xf32> to vector<64x256xf32>
    %49 = arith.mulf %48, %45 : vector<64x256xf32>
    %50 = vector.shape_cast %49 : vector<64x256xf32> to vector<2x32x256xf32>
    %cst_24 = arith.constant dense<0.000000e+00> : vector<2x256xf32>
    %51 = vector.multi_reduction <add>, %50, %cst_24 [1] : vector<2x32x256xf32> to vector<2x256xf32>
    %c0_25 = arith.constant 0 : index
    %c0_26 = arith.constant 0 : index
    %c0_27 = arith.constant 0 : index
    %52 = vector.load %arg8[%c0_25, %c0_26, %c0_27] : memref<1x2x1xf32, #tpu.memory_space<vmem>>, vector<1x2x1xf32>
    %53 = vector.shape_cast %52 : vector<1x2x1xf32> to vector<2x1xf32>
    %54 = vector.broadcast %53 : vector<2x1xf32> to vector<2x256xf32>
    %55 = arith.addf %51, %54 : vector<2x256xf32>
    %56 = vector.shape_cast %55 : vector<2x256xf32> to vector<1x2x256xf32>
    %c0_28 = arith.constant 0 : index
    %c0_29 = arith.constant 0 : index
    %c0_30 = arith.constant 0 : index
    %57 = vector.load %arg9[%c0_28, %c0_29, %c0_30] : memref<1x2x256xf32, #tpu.memory_space<vmem>>, vector<1x2x256xf32>
    tpu.vector_store %arg9[%c0_28, %c0_29, %c0_30], %56 {strides = array<i32>} : memref<1x2x256xf32, #tpu.memory_space<vmem>>, vector<1x2x256xf32>,
    return
  }
  func.func @transform_0(%arg0: i32, %arg1: i32) -> (i32, i32, i32) {
    %c0_i32 = arith.constant 0 : i32
    %c0_i32_0 = arith.constant 0 : i32
    %c0_i32_1 = arith.constant 0 : i32
    return %arg0, %c0_i32, %c0_i32_0 : i32, i32, i32
  }
  func.func @transform_1(%arg0: i32, %arg1: i32) -> (i32, i32, i32) {
    %c0_i32 = arith.constant 0 : i32
    %c0_i32_0 = arith.constant 0 : i32
    %c0_i32_1 = arith.constant 0 : i32
    return %arg0, %c0_i32, %c0_i32_0 : i32, i32, i32
  }
  func.func @transform_2(%arg0: i32, %arg1: i32) -> (i32, i32, i32) {
    %c0_i32 = arith.constant 0 : i32
    %c0_i32_0 = arith.constant 0 : i32
    %c0_i32_1 = arith.constant 0 : i32
    return %arg0, %c0_i32, %c0_i32_0 : i32, i32, i32
  }
  func.func @transform_3(%arg0: i32, %arg1: i32) -> (i32, i32, i32) {
    %c0_i32 = arith.constant 0 : i32
    %c0_i32_0 = arith.constant 0 : i32
    %c0_i32_1 = arith.constant 0 : i32
    return %arg0, %c0_i32, %c0_i32_0 : i32, i32, i32
  }
  func.func @transform_4(%arg0: i32, %arg1: i32) -> (i32, i32, i32) {
    %c0_i32 = arith.constant 0 : i32
    %c0_i32_0 = arith.constant 0 : i32
    %c0_i32_1 = arith.constant 0 : i32
    return %arg0, %c0_i32, %c0_i32_0 : i32, i32, i32
  }
  func.func @transform_5(%arg0: i32, %arg1: i32) -> (i32, i32, i32) {
    %c0_i32 = arith.constant 0 : i32
    %c0_i32_0 = arith.constant 0 : i32
    %c0_i32_1 = arith.constant 0 : i32
    return %arg0, %c0_i32, %c0_i32_0 : i32, i32, i32
  }
  func.func @transform_6(%arg0: i32, %arg1: i32) -> (i32, i32, i32) {
    %c0_i32 = arith.constant 0 : i32
    %c0_i32_0 = arith.constant 0 : i32
    %c0_i32_1 = arith.constant 0 : i32
    return %arg0, %c0_i32, %c0_i32_0 : i32, i32, i32
  }
  func.func @transform_7(%arg0: i32, %arg1: i32) -> (i32, i32, i32) {
    %c0_i32 = arith.constant 0 : i32
    %c0_i32_0 = arith.constant 0 : i32
    return %arg0, %c0_i32, %arg1 : i32, i32, i32
  }
}

</mosaic_0001>

<llo_original>
// kernel: tpu_custom_call.1
$region0: #{tpu_custom_call.1}
  #allocation0 [shape = 'u32[]', space=smem, size = 0x4, offset = 0x4, fixed_abs, tag = 'smem constant byte address 0x4 - core index']
  #allocation1 [shape = 'u32[144,128]{1,0:T(1,128)}', space=vmem, size = 0x12000, scoped, tag = 'internal scratch']
  %s0 = inlined_call_operand.vmem [shape: f32[1,64,1], index: 0, kind: input, shape index: {}]
  %s1 = inlined_call_operand.vmem [shape: f32[1,64,1], index: 1, kind: input, shape index: {}]
  %s2 = inlined_call_operand.vmem [shape: f32[1,64,1], index: 2, kind: input, shape index: {}]
  %s3 = inlined_call_operand.vmem [shape: f32[1,64,64], index: 3, kind: input, shape index: {}]
  %s4 = inlined_call_operand.vmem [shape: f32[1,64,1], index: 4, kind: input, shape index: {}]
  %s5 = inlined_call_operand.vmem [shape: f32[1,64,1], index: 5, kind: input, shape index: {}]
  %s6 = inlined_call_operand.vmem [shape: f32[1,2,1], index: 6, kind: input, shape index: {}]
  %s7 = inlined_call_operand.hbm [shape: f32[1,2,256], index: 7, kind: output, shape index: {}]
  %s8 = sld [smem:[#allocation0]]
  $region38: #{tpu_custom_call.1} parent=0
    _
  %s10 = ssub.s32 1, %s8
  %s11 = scalar_select 0, %s10, %s8
  $region1: #{tpu_custom_call.1} parent=0
    #allocation2 [shape = 'u8[2048]{0}', space=vmem, size = 0x800, scoped, tag = 'output window, operand 0, single buffered']
    #allocation3 [shape = 's32[1]{0}', space=sflag, size = 0x4, scoped, tag = 'scoped memory for tpu_custom_call.1']
    %12 = vsyncpa [#allocation3], 0
    // Predicated region
    $region2: #{tpu_custom_call.1} parent=1 // pred_check
      _
    $region3: #{tpu_custom_call.1} parent=1 // pred_check_branch
      %14 = sbr.rel (0) target = $region5
    $region4: #{tpu_custom_call.1} parent=1 // pred_region
      _
    $region5: #{tpu_custom_call.1} parent=1 // pred_fallthru
      _
    // Predicated region
    $region6: #{tpu_custom_call.1} parent=1 // pred_check
      _
    $region7: #{tpu_custom_call.1} parent=1 // pred_check_branch
      %16 = sbr.rel (0) target = $region9
    $region8: #{tpu_custom_call.1} parent=1 // pred_region
      _
    $region9: #{tpu_custom_call.1} parent=1 // pred_fallthru
      _
    // Predicated region
    $region10: #{tpu_custom_call.1} parent=1 // pred_check
      _
    $region11: #{tpu_custom_call.1} parent=1 // pred_check_branch
      %18 = sbr.rel (0) target = $region13
    $region12: #{tpu_custom_call.1} parent=1 // pred_region
      _
    $region13: #{tpu_custom_call.1} parent=1 // pred_fallthru
      _
    // Predicated region
    $region14: #{tpu_custom_call.1} parent=1 // pred_check
      _
    $region15: #{tpu_custom_call.1} parent=1 // pred_check_branch
      %20 = sbr.rel (0) target = $region17
    $region16: #{tpu_custom_call.1} parent=1 // pred_region
      _
    $region17: #{tpu_custom_call.1} parent=1 // pred_fallthru
      _
    // Predicated region
    $region18: #{tpu_custom_call.1} parent=1 // pred_check
      _
    $region19: #{tpu_custom_call.1} parent=1 // pred_check_branch
      %22 = sbr.rel (0) target = $region21
    $region20: #{tpu_custom_call.1} parent=1 // pred_region
      _
    $region21: #{tpu_custom_call.1} parent=1 // pred_fallthru
      _
    // Predicated region
    $region22: #{tpu_custom_call.1} parent=1 // pred_check
      _
    $region23: #{tpu_custom_call.1} parent=1 // pred_check_branch
      %24 = sbr.rel (0) target = $region25
    $region24: #{tpu_custom_call.1} parent=1 // pred_region
      _
    $region25: #{tpu_custom_call.1} parent=1 // pred_fallthru
      _
    // Predicated region
    $region26: #{tpu_custom_call.1} parent=1 // pred_check
      _
    $region27: #{tpu_custom_call.1} parent=1 // pred_check_branch
      %26 = sbr.rel (0) target = $region29
    $region28: #{tpu_custom_call.1} parent=1 // pred_region
      _
    $region29: #{tpu_custom_call.1} parent=1 // pred_fallthru
      _
    %v27 = vlaneseq
    %v28 = vand.u32 %v27, 127
    %v29 = vadd.s32 %v28, 128
    %v30 = vcvt.s32.f32 %v28
    %v31 = vcvt.s32.f32 %v29
    %s32 = smul.u32 0, 256
    %s33 = scvt.s32.f32 %s32
    %v34 = vstv %s33
    %v35 = vadd.f32 %v30, %v34
    %v36 = vadd.f32 %v31, %v34
    %v37 = vadd.f32 %v35, 0.5
    %v38 = vadd.f32 %v36, 0.5
    %v39 = vrcp.pop 16.0
    %v40 = vmul.f32 %v37, %v39
    %v41 = vmul.f32 %v38, %v39
    %v42 = vfloor.f32 %v40
    %v43 = vfloor.f32 %v41
    %v44 = vmul.f32 %v42, 16.0
    %v45 = vmul.f32 %v43, 16.0
    %v46 = vsub.f32 %v35, %v44
    %v47 = vsub.f32 %v36, %v45
    %v48 = vmul.f32 %v42, 0.13333334
    %v49 = vmul.f32 %v43, 0.13333334
    %v50 = vsub.f32 %v48, 1.0
    %v51 = vsub.f32 %v49, 1.0
    %v52 = vmul.f32 %v46, 0.13333334
    %v53 = vmul.f32 %v47, 0.13333334
    %v54 = vsub.f32 %v52, 1.0
    %v55 = vsub.f32 %v53, 1.0
    %v56 = vld [vmem:[%s0] sm:$0xff]
    %v57 = vld [vmem:[%s0 + $0x8] sm:$0xff]
    %v58 = vld [vmem:[%s0 + $0x10] sm:$0xff]
    %v59 = vld [vmem:[%s0 + $0x18] sm:$0xff]
    %v60 = vld [vmem:[%s0 + $0x20] sm:$0xff]
    %v61 = vld [vmem:[%s0 + $0x28] sm:$0xff]
    %v62 = vld [vmem:[%s0 + $0x30] sm:$0xff]
    %v63 = vld [vmem:[%s0 + $0x38] sm:$0xff]
    %65 = vset.pattern.permute.xlu0 0
    %66 = vperm.xlu0 %65, %v56
    %v67 = vpop.permute.xlu0 %66
    %70 = vset.pattern.permute.xlu0 0
    %71 = vperm.xlu0 %70, %v57
    %v72 = vpop.permute.xlu0 %71
    %75 = vset.pattern.permute.xlu0 0
    %76 = vperm.xlu0 %75, %v58
    %v77 = vpop.permute.xlu0 %76
    %80 = vset.pattern.permute.xlu0 0
    %81 = vperm.xlu0 %80, %v59
    %v82 = vpop.permute.xlu0 %81
    %85 = vset.pattern.permute.xlu0 0
    %86 = vperm.xlu0 %85, %v60
    %v87 = vpop.permute.xlu0 %86
    %90 = vset.pattern.permute.xlu0 0
    %91 = vperm.xlu0 %90, %v61
    %v92 = vpop.permute.xlu0 %91
    %95 = vset.pattern.permute.xlu0 0
    %96 = vperm.xlu0 %95, %v62
    %v97 = vpop.permute.xlu0 %96
    %100 = vset.pattern.permute.xlu0 0
    %101 = vperm.xlu0 %100, %v63
    %v102 = vpop.permute.xlu0 %101
    %v104 = vmul.f32 %v67, %v50
    %v105 = vmul.f32 %v67, %v51
    %v106 = vmul.f32 %v72, %v50
    %v107 = vmul.f32 %v72, %v51
    %v108 = vmul.f32 %v77, %v50
    %v109 = vmul.f32 %v77, %v51
    %v110 = vmul.f32 %v82, %v50
    %v111 = vmul.f32 %v82, %v51
    %v112 = vmul.f32 %v87, %v50
    %v113 = vmul.f32 %v87, %v51
    %v114 = vmul.f32 %v92, %v50
    %v115 = vmul.f32 %v92, %v51
    %v116 = vmul.f32 %v97, %v50
    %v117 = vmul.f32 %v97, %v51
    %v118 = vmul.f32 %v102, %v50
    %v119 = vmul.f32 %v102, %v51
    %v120 = vld [vmem:[%s1] sm:$0xff]
    %v121 = vld [vmem:[%s1 + $0x8] sm:$0xff]
    %v122 = vld [vmem:[%s1 + $0x10] sm:$0xff]
    %v123 = vld [vmem:[%s1 + $0x18] sm:$0xff]
    %v124 = vld [vmem:[%s1 + $0x20] sm:$0xff]
    %v125 = vld [vmem:[%s1 + $0x28] sm:$0xff]
    %v126 = vld [vmem:[%s1 + $0x30] sm:$0xff]
    %v127 = vld [vmem:[%s1 + $0x38] sm:$0xff]
    %129 = vset.pattern.permute.xlu0 0
    %130 = vperm.xlu0 %129, %v120
    %v131 = vpop.permute.xlu0 %130
    %134 = vset.pattern.permute.xlu0 0
    %135 = vperm.xlu0 %134, %v121
    %v136 = vpop.permute.xlu0 %135
    %139 = vset.pattern.permute.xlu0 0
    %140 = vperm.xlu0 %139, %v122
    %v141 = vpop.permute.xlu0 %140
    %144 = vset.pattern.permute.xlu0 0
    %145 = vperm.xlu0 %144, %v123
    %v146 = vpop.permute.xlu0 %145
    %149 = vset.pattern.permute.xlu0 0
    %150 = vperm.xlu0 %149, %v124
    %v151 = vpop.permute.xlu0 %150
    %154 = vset.pattern.permute.xlu0 0
    %155 = vperm.xlu0 %154, %v125
    %v156 = vpop.permute.xlu0 %155
    %159 = vset.pattern.permute.xlu0 0
    %160 = vperm.xlu0 %159, %v126
    %v161 = vpop.permute.xlu0 %160
    %164 = vset.pattern.permute.xlu0 0
    %165 = vperm.xlu0 %164, %v127
    %v166 = vpop.permute.xlu0 %165
    %v168 = vmul.f32 %v131, %v54
    %v169 = vmul.f32 %v131, %v55
    %v170 = vmul.f32 %v136, %v54
    %v171 = vmul.f32 %v136, %v55
    %v172 = vmul.f32 %v141, %v54
    %v173 = vmul.f32 %v141, %v55
    %v174 = vmul.f32 %v146, %v54
    %v175 = vmul.f32 %v146, %v55
    %v176 = vmul.f32 %v151, %v54
    %v177 = vmul.f32 %v151, %v55
    %v178 = vmul.f32 %v156, %v54
    %v179 = vmul.f32 %v156, %v55
    %v180 = vmul.f32 %v161, %v54
    %v181 = vmul.f32 %v161, %v55
    %v182 = vmul.f32 %v166, %v54
    %v183 = vmul.f32 %v166, %v55
    %v184 = vadd.f32 %v104, %v168
    %v185 = vadd.f32 %v105, %v169
    %v186 = vadd.f32 %v106, %v170
    %v187 = vadd.f32 %v107, %v171
    %v188 = vadd.f32 %v108, %v172
    %v189 = vadd.f32 %v109, %v173
    %v190 = vadd.f32 %v110, %v174
    %v191 = vadd.f32 %v111, %v175
    %v192 = vadd.f32 %v112, %v176
    %v193 = vadd.f32 %v113, %v177
    %v194 = vadd.f32 %v114, %v178
    %v195 = vadd.f32 %v115, %v179
    %v196 = vadd.f32 %v116, %v180
    %v197 = vadd.f32 %v117, %v181
    %v198 = vadd.f32 %v118, %v182
    %v199 = vadd.f32 %v119, %v183
    %v200 = vld [vmem:[%s2] sm:$0xff]
    %v201 = vld [vmem:[%s2 + $0x8] sm:$0xff]
    %v202 = vld [vmem:[%s2 + $0x10] sm:$0xff]
    %v203 = vld [vmem:[%s2 + $0x18] sm:$0xff]
    %v204 = vld [vmem:[%s2 + $0x20] sm:$0xff]
    %v205 = vld [vmem:[%s2 + $0x28] sm:$0xff]
    %v206 = vld [vmem:[%s2 + $0x30] sm:$0xff]
    %v207 = vld [vmem:[%s2 + $0x38] sm:$0xff]
    %209 = vset.pattern.permute.xlu0 0
    %210 = vperm.xlu0 %209, %v200
    %v211 = vpop.permute.xlu0 %210
    %214 = vset.pattern.permute.xlu0 0
    %215 = vperm.xlu0 %214, %v201
    %v216 = vpop.permute.xlu0 %215
    %219 = vset.pattern.permute.xlu0 0
    %220 = vperm.xlu0 %219, %v202
    %v221 = vpop.permute.xlu0 %220
    %224 = vset.pattern.permute.xlu0 0
    %225 = vperm.xlu0 %224, %v203
    %v226 = vpop.permute.xlu0 %225
    %229 = vset.pattern.permute.xlu0 0
    %230 = vperm.xlu0 %229, %v204
    %v231 = vpop.permute.xlu0 %230
    %234 = vset.pattern.permute.xlu0 0
    %235 = vperm.xlu0 %234, %v205
    %v236 = vpop.permute.xlu0 %235
    %239 = vset.pattern.permute.xlu0 0
    %240 = vperm.xlu0 %239, %v206
    %v241 = vpop.permute.xlu0 %240
    %244 = vset.pattern.permute.xlu0 0
    %245 = vperm.xlu0 %244, %v207
    %v246 = vpop.permute.xlu0 %245
    %v248 = vadd.f32 %v184, %v211
    %v249 = vadd.f32 %v185, %v211
    %v250 = vadd.f32 %v186, %v216
    %v251 = vadd.f32 %v187, %v216
    %v252 = vadd.f32 %v188, %v221
    %v253 = vadd.f32 %v189, %v221
    %v254 = vadd.f32 %v190, %v226
    %v255 = vadd.f32 %v191, %v226
    %v256 = vadd.f32 %v192, %v231
    %v257 = vadd.f32 %v193, %v231
    %v258 = vadd.f32 %v194, %v236
    %v259 = vadd.f32 %v195, %v236
    %v260 = vadd.f32 %v196, %v241
    %v261 = vadd.f32 %v197, %v241
    %v262 = vadd.f32 %v198, %v246
    %v263 = vadd.f32 %v199, %v246
    %v264 = vand.u32 2147483647, %v248
    %vm265 = vcmp.le.f32.partialorder %v264, 0.7853982
    %vm266 = vcmp.lt.s32.totalorder %v248, 0
    %v267 = vand.u32 %v248, 2139095040
    %v268 = vshrl.u32 %v267, 23
    %v269 = vsub.s32 %v268, 127
    %v270 = vand.u32 2147483647, %v248
    %v271 = vand.u32 %v270, 8388607
    %v272 = vor.u32 %v271, 8388608
    %v273 = vsub.s32 0, %v272
    %v274 = vadd.s32 %v269, 1
    %vm275 = vcmp.gt.s32.totalorder %v274, 0
    %v276 = vsel %vm275, %v274, 0
    %v277 = vshrl.u32 %v276, 5
    %v278 = vand.u32 %v276, 31
    %v279 = vsub.s32 32, %v278
    %v280 = vshrl.u32 683565275, %v279
    %v281 = vshll.u32 683565275, %v278
    %v282 = vshrl.u32 2475754826, %v279
    %v283 = vor.u32 %v281, %v282
    %v284 = vshll.u32 2475754826, %v278
    %v285 = vshrl.u32 2131351028, %v279
    %v286 = vor.u32 %v284, %v285
    %v287 = vshll.u32 2131351028, %v278
    %v288 = vshrl.u32 2102212464, %v279
    %v289 = vor.u32 %v287, %v288
    %v290 = vshll.u32 2102212464, %v278
    %v291 = vshrl.u32 920167782, %v279
    %v292 = vor.u32 %v290, %v291
    %v293 = vshll.u32 920167782, %v278
    %v294 = vshrl.u32 1326507024, %v279
    %v295 = vor.u32 %v293, %v294
    %vm296 = vcmp.lt.s32.totalorder %v277, 1
    %vm297 = vcmp.lt.s32.totalorder %v277, 2
    %vm298 = vcmp.lt.s32.totalorder %v277, 3
    %vm299 = vcmp.lt.s32.totalorder %v277, 4
    %v300 = vsel %vm296, %v280, %v283
    %v301 = vsel %vm299, %v289, 2102212464
    %v302 = vsel %vm298, %v286, %v301
    %v303 = vsel %vm297, %v300, %v302
    %v304 = vsel %vm296, %v283, %v286
    %v305 = vsel %vm299, %v292, 920167782
    %v306 = vsel %vm298, %v289, %v305
    %v307 = vsel %vm297, %v304, %v306
    %v308 = vsel %vm296, %v286, %v289
    %v309 = vsel %vm299, %v295, 1326507024
    %v310 = vsel %vm298, %v292, %v309
    %v311 = vsel %vm297, %v308, %v310
    %v312 = vshll.u32 %v272, 8
    %v313 = vmul.u32.u64.compose %v312, %v311
    %v314 = vextract.low.u32 %v313
    %v315 = vextract.high.u32 %v313
    %v316 = vmul.u32.u64.compose %v312, %v307
    %v317 = vextract.low.u32 %v316
    %v318 = vextract.high.u32 %v316
    %v319 = vmul.u32 %v312, %v303
    %v320 = vadd.s32 %v315, %v317
    %vm321 = vc.u32 %v315, %v317
    %v322 = vadd.s32 %v318, 1
    %v323 = vsel %vm321, %v322, %v318
    %v324 = vadd.s32 %v319, %v323
    %v325 = vadd.s32 %v324, 536870912
    %v326 = vshrl.u32 %v325, 30
    %v327 = vshll.u32 %v326, 30
    %v328 = vsub.s32 %v324, %v327
    %vm329 = vcmp.lt.s32.totalorder %v328, 0
    %v330 = vsub.s32 0, %v328
    %v331 = vsel %vm329, %v330, %v328
    %v332 = vclz %v331
    %v333 = vsub.s32 %v332, 2
    %vm334 = vcmp.gt.s32.totalorder 0, %v333
    %v335 = vsel %vm334, 0, %v333
    %v336 = vsub.s32 32, %v335
    %v337 = vshll.u32 %v328, %v335
    %v338 = vshrl.u32 %v320, %v336
    %v339 = vor.u32 %v337, %v338
    %v340 = vsub.s32 4294967266, %v335
    %v341 = vadd.s32 %v340, 127
    %v342 = vshll.u32 %v341, 23
    %v343 = vor.u32 4788187, %v342
    %v344 = vand.u32 2147483647, %v343
    %v346 = vcvt.s32.f32 %v339
    %v347 = vmul.f32 %v346, %v344
    %v348 = vxor.u32 %v347, 2147483648
    %v349 = vsel %vm266, %v348, %v347
    %v350 = vsub.s32 4, %v326
    %v351 = vsel %vm266, %v350, %v326
    %v352 = vsel %vm265, %v248, %v349
    %v353 = vsel %vm265, 0, %v351
    %v354 = vcosq.f32.pop %v352
    %v355 = vsinq.f32.pop %v352
    %vm356 = vweird.f32 %v248
    %v357 = vadd.s32 %v353, 3
    %v358 = vand.u32 %v357, 3
    %vm359 = vcmp.lt.s32.totalorder %v358, 2
    %vm360 = vcmp.eq.s32.totalorder %v358, 0
    %v361 = vxor.u32 %v355, 2147483648
    %v362 = vsel %vm360, %v354, %v361
    %vm363 = vcmp.eq.s32.totalorder %v358, 2
    %v364 = vxor.u32 %v354, 2147483648
    %v365 = vsel %vm363, %v364, %v355
    %v366 = vsel %vm359, %v362, %v365
    %v367 = vsel %vm356, nan, %v366
    %v368 = vand.u32 2147483647, %v249
    %vm369 = vcmp.le.f32.partialorder %v368, 0.7853982
    %vm370 = vcmp.lt.s32.totalorder %v249, 0
    %v371 = vand.u32 %v249, 2139095040
    %v372 = vshrl.u32 %v371, 23
    %v373 = vsub.s32 %v372, 127
    %v374 = vand.u32 2147483647, %v249
    %v375 = vand.u32 %v374, 8388607
    %v376 = vor.u32 %v375, 8388608
    %v377 = vsub.s32 0, %v376
    %v378 = vadd.s32 %v373, 1
    %vm379 = vcmp.gt.s32.totalorder %v378, 0
    %v380 = vsel %vm379, %v378, 0
    %v381 = vshrl.u32 %v380, 5
    %v382 = vand.u32 %v380, 31
    %v383 = vsub.s32 32, %v382
    %v384 = vshrl.u32 683565275, %v383
    %v385 = vshll.u32 683565275, %v382
    %v386 = vshrl.u32 2475754826, %v383
    %v387 = vor.u32 %v385, %v386
    %v388 = vshll.u32 2475754826, %v382
    %v389 = vshrl.u32 2131351028, %v383
    %v390 = vor.u32 %v388, %v389
    %v391 = vshll.u32 2131351028, %v382
    %v392 = vshrl.u32 2102212464, %v383
    %v393 = vor.u32 %v391, %v392
    %v394 = vshll.u32 2102212464, %v382
    %v395 = vshrl.u32 920167782, %v383
    %v396 = vor.u32 %v394, %v395
    %v397 = vshll.u32 920167782, %v382
    %v398 = vshrl.u32 1326507024, %v383
    %v399 = vor.u32 %v397, %v398
    %vm400 = vcmp.lt.s32.totalorder %v381, 1
    %vm401 = vcmp.lt.s32.totalorder %v381, 2
    %vm402 = vcmp.lt.s32.totalorder %v381, 3
    %vm403 = vcmp.lt.s32.totalorder %v381, 4
    %v404 = vsel %vm400, %v384, %v387
    %v405 = vsel %vm403, %v393, 2102212464
    %v406 = vsel %vm402, %v390, %v405
    %v407 = vsel %vm401, %v404, %v406
    %v408 = vsel %vm400, %v387, %v390
    %v409 = vsel %vm403, %v396, 920167782
    %v410 = vsel %vm402, %v393, %v409
    %v411 = vsel %vm401, %v408, %v410
    %v412 = vsel %vm400, %v390, %v393
    %v413 = vsel %vm403, %v399, 1326507024
    %v414 = vsel %vm402, %v396, %v413
    %v415 = vsel %vm401, %v412, %v414
    %v416 = vshll.u32 %v376, 8
    %v417 = vmul.u32.u64.compose %v416, %v415
    %v418 = vextract.low.u32 %v417
    %v419 = vextract.high.u32 %v417
    %v420 = vmul.u32.u64.compose %v416, %v411
    %v421 = vextract.low.u32 %v420
    %v422 = vextract.high.u32 %v420
    %v423 = vmul.u32 %v416, %v407
    %v424 = vadd.s32 %v419, %v421
    %vm425 = vc.u32 %v419, %v421
    %v426 = vadd.s32 %v422, 1
    %v427 = vsel %vm425, %v426, %v422
    %v428 = vadd.s32 %v423, %v427
    %v429 = vadd.s32 %v428, 536870912
    %v430 = vshrl.u32 %v429, 30
    %v431 = vshll.u32 %v430, 30
    %v432 = vsub.s32 %v428, %v431
    %vm433 = vcmp.lt.s32.totalorder %v432, 0
    %v434 = vsub.s32 0, %v432
    %v435 = vsel %vm433, %v434, %v432
    %v436 = vclz %v435
    %v437 = vsub.s32 %v436, 2
    %vm438 = vcmp.gt.s32.totalorder 0, %v437
    %v439 = vsel %vm438, 0, %v437
    %v440 = vsub.s32 32, %v439
    %v441 = vshll.u32 %v432, %v439
    %v442 = vshrl.u32 %v424, %v440
    %v443 = vor.u32 %v441, %v442
    %v444 = vsub.s32 4294967266, %v439
    %v445 = vadd.s32 %v444, 127
    %v446 = vshll.u32 %v445, 23
    %v447 = vor.u32 4788187, %v446
    %v448 = vand.u32 2147483647, %v447
    %v450 = vcvt.s32.f32 %v443
    %v451 = vmul.f32 %v450, %v448
    %v452 = vxor.u32 %v451, 2147483648
    %v453 = vsel %vm370, %v452, %v451
    %v454 = vsub.s32 4, %v430
    %v455 = vsel %vm370, %v454, %v430
    %v456 = vsel %vm369, %v249, %v453
    %v457 = vsel %vm369, 0, %v455
    %v458 = vcosq.f32.pop %v456
    %v459 = vsinq.f32.pop %v456
    %vm460 = vweird.f32 %v249
    %v461 = vadd.s32 %v457, 3
    %v462 = vand.u32 %v461, 3
    %vm463 = vcmp.lt.s32.totalorder %v462, 2
    %vm464 = vcmp.eq.s32.totalorder %v462, 0
    %v465 = vxor.u32 %v459, 2147483648
    %v466 = vsel %vm464, %v458, %v465
    %vm467 = vcmp.eq.s32.totalorder %v462, 2
    %v468 = vxor.u32 %v458, 2147483648
    %v469 = vsel %vm467, %v468, %v459
    %v470 = vsel %vm463, %v466, %v469
    %v471 = vsel %vm460, nan, %v470
    %v472 = vand.u32 2147483647, %v250
    %vm473 = vcmp.le.f32.partialorder %v472, 0.7853982
    %vm474 = vcmp.lt.s32.totalorder %v250, 0
    %v475 = vand.u32 %v250, 2139095040
    %v476 = vshrl.u32 %v475, 23
    %v477 = vsub.s32 %v476, 127
    %v478 = vand.u32 2147483647, %v250
    %v479 = vand.u32 %v478, 8388607
    %v480 = vor.u32 %v479, 8388608
    %v481 = vsub.s32 0, %v480
    %v482 = vadd.s32 %v477, 1
    %vm483 = vcmp.gt.s32.totalorder %v482, 0
    %v484 = vsel %vm483, %v482, 0
    %v485 = vshrl.u32 %v484, 5
    %v486 = vand.u32 %v484, 31
    %v487 = vsub.s32 32, %v486
    %v488 = vshrl.u32 683565275, %v487
    %v489 = vshll.u32 683565275, %v486
    %v490 = vshrl.u32 2475754826, %v487
    %v491 = vor.u32 %v489, %v490
    %v492 = vshll.u32 2475754826, %v486
    %v493 = vshrl.u32 2131351028, %v487
    %v494 = vor.u32 %v492, %v493
    %v495 = vshll.u32 2131351028, %v486
    %v496 = vshrl.u32 2102212464, %v487
    %v497 = vor.u32 %v495, %v496
    %v498 = vshll.u32 2102212464, %v486
    %v499 = vshrl.u32 920167782, %v487
    %v500 = vor.u32 %v498, %v499
    %v501 = vshll.u32 920167782, %v486
    %v502 = vshrl.u32 1326507024, %v487
    %v503 = vor.u32 %v501, %v502
    %vm504 = vcmp.lt.s32.totalorder %v485, 1
    %vm505 = vcmp.lt.s32.totalorder %v485, 2
    %vm506 = vcmp.lt.s32.totalorder %v485, 3
    %vm507 = vcmp.lt.s32.totalorder %v485, 4
    %v508 = vsel %vm504, %v488, %v491
    %v509 = vsel %vm507, %v497, 2102212464
    %v510 = vsel %vm506, %v494, %v509
    %v511 = vsel %vm505, %v508, %v510
    %v512 = vsel %vm504, %v491, %v494
    %v513 = vsel %vm507, %v500, 920167782
    %v514 = vsel %vm506, %v497, %v513
    %v515 = vsel %vm505, %v512, %v514
    %v516 = vsel %vm504, %v494, %v497
    %v517 = vsel %vm507, %v503, 1326507024
    %v518 = vsel %vm506, %v500, %v517
    %v519 = vsel %vm505, %v516, %v518
    %v520 = vshll.u32 %v480, 8
    %v521 = vmul.u32.u64.compose %v520, %v519
    %v522 = vextract.low.u32 %v521
    %v523 = vextract.high.u32 %v521
    %v524 = vmul.u32.u64.compose %v520, %v515
    %v525 = vextract.low.u32 %v524
    %v526 = vextract.high.u32 %v524
    %v527 = vmul.u32 %v520, %v511
    %v528 = vadd.s32 %v523, %v525
    %vm529 = vc.u32 %v523, %v525
    %v530 = vadd.s32 %v526, 1
    %v531 = vsel %vm529, %v530, %v526
    %v532 = vadd.s32 %v527, %v531
    %v533 = vadd.s32 %v532, 536870912
    %v534 = vshrl.u32 %v533, 30
    %v535 = vshll.u32 %v534, 30
    %v536 = vsub.s32 %v532, %v535
    %vm537 = vcmp.lt.s32.totalorder %v536, 0
    %v538 = vsub.s32 0, %v536
    %v539 = vsel %vm537, %v538, %v536
    %v540 = vclz %v539
    %v541 = vsub.s32 %v540, 2
    %vm542 = vcmp.gt.s32.totalorder 0, %v541
    %v543 = vsel %vm542, 0, %v541
    %v544 = vsub.s32 32, %v543
    %v545 = vshll.u32 %v536, %v543
    %v546 = vshrl.u32 %v528, %v544
    %v547 = vor.u32 %v545, %v546
    %v548 = vsub.s32 4294967266, %v543
    %v549 = vadd.s32 %v548, 127
    %v550 = vshll.u32 %v549, 23
    %v551 = vor.u32 4788187, %v550
    %v552 = vand.u32 2147483647, %v551
    %v554 = vcvt.s32.f32 %v547
    %v555 = vmul.f32 %v554, %v552
    %v556 = vxor.u32 %v555, 2147483648
    %v557 = vsel %vm474, %v556, %v555
    %v558 = vsub.s32 4, %v534
    %v559 = vsel %vm474, %v558, %v534
    %v560 = vsel %vm473, %v250, %v557
    %v561 = vsel %vm473, 0, %v559
    %v562 = vcosq.f32.pop %v560
    %v563 = vsinq.f32.pop %v560
    %vm564 = vweird.f32 %v250
    %v565 = vadd.s32 %v561, 3
    %v566 = vand.u32 %v565, 3
    %vm567 = vcmp.lt.s32.totalorder %v566, 2
    %vm568 = vcmp.eq.s32.totalorder %v566, 0
    %v569 = vxor.u32 %v563, 2147483648
    %v570 = vsel %vm568, %v562, %v569
    %vm571 = vcmp.eq.s32.totalorder %v566, 2
    %v572 = vxor.u32 %v562, 2147483648
    %v573 = vsel %vm571, %v572, %v563
    %v574 = vsel %vm567, %v570, %v573
    %v575 = vsel %vm564, nan, %v574
    %v576 = vand.u32 2147483647, %v251
    %vm577 = vcmp.le.f32.partialorder %v576, 0.7853982
    %vm578 = vcmp.lt.s32.totalorder %v251, 0
    %v579 = vand.u32 %v251, 2139095040
    %v580 = vshrl.u32 %v579, 23
    %v581 = vsub.s32 %v580, 127
    %v582 = vand.u32 2147483647, %v251
    %v583 = vand.u32 %v582, 8388607
    %v584 = vor.u32 %v583, 8388608
    %v585 = vsub.s32 0, %v584
    %v586 = vadd.s32 %v581, 1
    %vm587 = vcmp.gt.s32.totalorder %v586, 0
    %v588 = vsel %vm587, %v586, 0
    %v589 = vshrl.u32 %v588, 5
    %v590 = vand.u32 %v588, 31
    %v591 = vsub.s32 32, %v590
    %v592 = vshrl.u32 683565275, %v591
    %v593 = vshll.u32 683565275, %v590
    %v594 = vshrl.u32 2475754826, %v591
    %v595 = vor.u32 %v593, %v594
    %v596 = vshll.u32 2475754826, %v590
    %v597 = vshrl.u32 2131351028, %v591
    %v598 = vor.u32 %v596, %v597
    %v599 = vshll.u32 2131351028, %v590
    %v600 = vshrl.u32 2102212464, %v591
    %v601 = vor.u32 %v599, %v600
    %v602 = vshll.u32 2102212464, %v590
    %v603 = vshrl.u32 920167782, %v591
    %v604 = vor.u32 %v602, %v603
    %v605 = vshll.u32 920167782, %v590
    %v606 = vshrl.u32 1326507024, %v591
    %v607 = vor.u32 %v605, %v606
    %vm608 = vcmp.lt.s32.totalorder %v589, 1
    %vm609 = vcmp.lt.s32.totalorder %v589, 2
    %vm610 = vcmp.lt.s32.totalorder %v589, 3
    %vm611 = vcmp.lt.s32.totalorder %v589, 4
    %v612 = vsel %vm608, %v592, %v595
    %v613 = vsel %vm611, %v601, 2102212464
    %v614 = vsel %vm610, %v598, %v613
    %v615 = vsel %vm609, %v612, %v614
    %v616 = vsel %vm608, %v595, %v598
    %v617 = vsel %vm611, %v604, 920167782
    %v618 = vsel %vm610, %v601, %v617
    %v619 = vsel %vm609, %v616, %v618
    %v620 = vsel %vm608, %v598, %v601
    %v621 = vsel %vm611, %v607, 1326507024
    %v622 = vsel %vm610, %v604, %v621
    %v623 = vsel %vm609, %v620, %v622
    %v624 = vshll.u32 %v584, 8
    %v625 = vmul.u32.u64.compose %v624, %v623
    %v626 = vextract.low.u32 %v625
    %v627 = vextract.high.u32 %v625
    %v628 = vmul.u32.u64.compose %v624, %v619
    %v629 = vextract.low.u32 %v628
    %v630 = vextract.high.u32 %v628
    %v631 = vmul.u32 %v624, %v615
    %v632 = vadd.s32 %v627, %v629
    %vm633 = vc.u32 %v627, %v629
    %v634 = vadd.s32 %v630, 1
    %v635 = vsel %vm633, %v634, %v630
    %v636 = vadd.s32 %v631, %v635
    %v637 = vadd.s32 %v636, 536870912
    %v638 = vshrl.u32 %v637, 30
    %v639 = vshll.u32 %v638, 30
    %v640 = vsub.s32 %v636, %v639
    %vm641 = vcmp.lt.s32.totalorder %v640, 0
    %v642 = vsub.s32 0, %v640
    %v643 = vsel %vm641, %v642, %v640
    %v644 = vclz %v643
    %v645 = vsub.s32 %v644, 2
    %vm646 = vcmp.gt.s32.totalorder 0, %v645
    %v647 = vsel %vm646, 0, %v645
    %v648 = vsub.s32 32, %v647
    %v649 = vshll.u32 %v640, %v647
    %v650 = vshrl.u32 %v632, %v648
    %v651 = vor.u32 %v649, %v650
    %v652 = vsub.s32 4294967266, %v647
    %v653 = vadd.s32 %v652, 127
    %v654 = vshll.u32 %v653, 23
    %v655 = vor.u32 4788187, %v654
    %v656 = vand.u32 2147483647, %v655
    %v658 = vcvt.s32.f32 %v651
    %v659 = vmul.f32 %v658, %v656
    %v660 = vxor.u32 %v659, 2147483648
    %v661 = vsel %vm578, %v660, %v659
    %v662 = vsub.s32 4, %v638
    %v663 = vsel %vm578, %v662, %v638
    %v664 = vsel %vm577, %v251, %v661
    %v665 = vsel %vm577, 0, %v663
    %v666 = vcosq.f32.pop %v664
    %v667 = vsinq.f32.pop %v664
    %vm668 = vweird.f32 %v251
    %v669 = vadd.s32 %v665, 3
    %v670 = vand.u32 %v669, 3
    %vm671 = vcmp.lt.s32.totalorder %v670, 2
    %vm672 = vcmp.eq.s32.totalorder %v670, 0
    %v673 = vxor.u32 %v667, 2147483648
    %v674 = vsel %vm672, %v666, %v673
    %vm675 = vcmp.eq.s32.totalorder %v670, 2
    %v676 = vxor.u32 %v666, 2147483648
    %v677 = vsel %vm675, %v676, %v667
    %v678 = vsel %vm671, %v674, %v677
    %v679 = vsel %vm668, nan, %v678
    %v680 = vand.u32 2147483647, %v252
    %vm681 = vcmp.le.f32.partialorder %v680, 0.7853982
    %vm682 = vcmp.lt.s32.totalorder %v252, 0
    %v683 = vand.u32 %v252, 2139095040
    %v684 = vshrl.u32 %v683, 23
    %v685 = vsub.s32 %v684, 127
    %v686 = vand.u32 2147483647, %v252
    %v687 = vand.u32 %v686, 8388607
    %v688 = vor.u32 %v687, 8388608
    %v689 = vsub.s32 0, %v688
    %v690 = vadd.s32 %v685, 1
    %vm691 = vcmp.gt.s32.totalorder %v690, 0
    %v692 = vsel %vm691, %v690, 0
    %v693 = vshrl.u32 %v692, 5
    %v694 = vand.u32 %v692, 31
    %v695 = vsub.s32 32, %v694
    %v696 = vshrl.u32 683565275, %v695
    %v697 = vshll.u32 683565275, %v694
    %v698 = vshrl.u32 2475754826, %v695
    %v699 = vor.u32 %v697, %v698
    %v700 = vshll.u32 2475754826, %v694
    %v701 = vshrl.u32 2131351028, %v695
    %v702 = vor.u32 %v700, %v701
    %v703 = vshll.u32 2131351028, %v694
    %v704 = vshrl.u32 2102212464, %v695
    %v705 = vor.u32 %v703, %v704
    %v706 = vshll.u32 2102212464, %v694
    %v707 = vshrl.u32 920167782, %v695
    %v708 = vor.u32 %v706, %v707
    %v709 = vshll.u32 920167782, %v694
    %v710 = vshrl.u32 1326507024, %v695
    %v711 = vor.u32 %v709, %v710
    %vm712 = vcmp.lt.s32.totalorder %v693, 1
    %vm713 = vcmp.lt.s32.totalorder %v693, 2
    %vm714 = vcmp.lt.s32.totalorder %v693, 3
    %vm715 = vcmp.lt.s32.totalorder %v693, 4
    %v716 = vsel %vm712, %v696, %v699
    %v717 = vsel %vm715, %v705, 2102212464
    %v718 = vsel %vm714, %v702, %v717
    %v719 = vsel %vm713, %v716, %v718
    %v720 = vsel %vm712, %v699, %v702
    %v721 = vsel %vm715, %v708, 920167782
    %v722 = vsel %vm714, %v705, %v721
    %v723 = vsel %vm713, %v720, %v722
    %v724 = vsel %vm712, %v702, %v705
    %v725 = vsel %vm715, %v711, 1326507024
    %v726 = vsel %vm714, %v708, %v725
    %v727 = vsel %vm713, %v724, %v726
    %v728 = vshll.u32 %v688, 8
    %v729 = vmul.u32.u64.compose %v728, %v727
    %v730 = vextract.low.u32 %v729
    %v731 = vextract.high.u32 %v729
    %v732 = vmul.u32.u64.compose %v728, %v723
    %v733 = vextract.low.u32 %v732
    %v734 = vextract.high.u32 %v732
    %v735 = vmul.u32 %v728, %v719
    %v736 = vadd.s32 %v731, %v733
    %vm737 = vc.u32 %v731, %v733
    %v738 = vadd.s32 %v734, 1
    %v739 = vsel %vm737, %v738, %v734
    %v740 = vadd.s32 %v735, %v739
    %v741 = vadd.s32 %v740, 536870912
    %v742 = vshrl.u32 %v741, 30
    %v743 = vshll.u32 %v742, 30
    %v744 = vsub.s32 %v740, %v743
    %vm745 = vcmp.lt.s32.totalorder %v744, 0
    %v746 = vsub.s32 0, %v744
    %v747 = vsel %vm745, %v746, %v744
    %v748 = vclz %v747
    %v749 = vsub.s32 %v748, 2
    %vm750 = vcmp.gt.s32.totalorder 0, %v749
    %v751 = vsel %vm750, 0, %v749
    %v752 = vsub.s32 32, %v751
    %v753 = vshll.u32 %v744, %v751
    %v754 = vshrl.u32 %v736, %v752
    %v755 = vor.u32 %v753, %v754
    %v756 = vsub.s32 4294967266, %v751
    %v757 = vadd.s32 %v756, 127
    %v758 = vshll.u32 %v757, 23
    %v759 = vor.u32 4788187, %v758
    %v760 = vand.u32 2147483647, %v759
    %v762 = vcvt.s32.f32 %v755
    %v763 = vmul.f32 %v762, %v760
    %v764 = vxor.u32 %v763, 2147483648
    %v765 = vsel %vm682, %v764, %v763
    %v766 = vsub.s32 4, %v742
    %v767 = vsel %vm682, %v766, %v742
    %v768 = vsel %vm681, %v252, %v765
    %v769 = vsel %vm681, 0, %v767
    %v770 = vcosq.f32.pop %v768
    %v771 = vsinq.f32.pop %v768
    %vm772 = vweird.f32 %v252
    %v773 = vadd.s32 %v769, 3
    %v774 = vand.u32 %v773, 3
    %vm775 = vcmp.lt.s32.totalorder %v774, 2
    %vm776 = vcmp.eq.s32.totalorder %v774, 0
    %v777 = vxor.u32 %v771, 2147483648
    %v778 = vsel %vm776, %v770, %v777
    %vm779 = vcmp.eq.s32.totalorder %v774, 2
    %v780 = vxor.u32 %v770, 2147483648
    %v781 = vsel %vm779, %v780, %v771
    %v782 = vsel %vm775, %v778, %v781
    %v783 = vsel %vm772, nan, %v782
    %v784 = vand.u32 2147483647, %v253
    %vm785 = vcmp.le.f32.partialorder %v784, 0.7853982
    %vm786 = vcmp.lt.s32.totalorder %v253, 0
    %v787 = vand.u32 %v253, 2139095040
    %v788 = vshrl.u32 %v787, 23
    %v789 = vsub.s32 %v788, 127
    %v790 = vand.u32 2147483647, %v253
    %v791 = vand.u32 %v790, 8388607
    %v792 = vor.u32 %v791, 8388608
    %v793 = vsub.s32 0, %v792
    %v794 = vadd.s32 %v789, 1
    %vm795 = vcmp.gt.s32.totalorder %v794, 0
    %v796 = vsel %vm795, %v794, 0
    %v797 = vshrl.u32 %v796, 5
    %v798 = vand.u32 %v796, 31
    %v799 = vsub.s32 32, %v798
    %v800 = vshrl.u32 683565275, %v799
    %v801 = vshll.u32 683565275, %v798
    %v802 = vshrl.u32 2475754826, %v799
    %v803 = vor.u32 %v801, %v802
    %v804 = vshll.u32 2475754826, %v798
    %v805 = vshrl.u32 2131351028, %v799
    %v806 = vor.u32 %v804, %v805
    %v807 = vshll.u32 2131351028, %v798
    %v808 = vshrl.u32 2102212464, %v799
    %v809 = vor.u32 %v807, %v808
    %v810 = vshll.u32 2102212464, %v798
    %v811 = vshrl.u32 920167782, %v799
    %v812 = vor.u32 %v810, %v811
    %v813 = vshll.u32 920167782, %v798
    %v814 = vshrl.u32 1326507024, %v799
    %v815 = vor.u32 %v813, %v814
    %vm816 = vcmp.lt.s32.totalorder %v797, 1
    %vm817 = vcmp.lt.s32.totalorder %v797, 2
    %vm818 = vcmp.lt.s32.totalorder %v797, 3
    %vm819 = vcmp.lt.s32.totalorder %v797, 4
    %v820 = vsel %vm816, %v800, %v803
    %v821 = vsel %vm819, %v809, 2102212464
    %v822 = vsel %vm818, %v806, %v821
    %v823 = vsel %vm817, %v820, %v822
    %v824 = vsel %vm816, %v803, %v806
    %v825 = vsel %vm819, %v812, 920167782
    %v826 = vsel %vm818, %v809, %v825
    %v827 = vsel %vm817, %v824, %v826
    %v828 = vsel %vm816, %v806, %v809
    %v829 = vsel %vm819, %v815, 1326507024
    %v830 = vsel %vm818, %v812, %v829
    %v831 = vsel %vm817, %v828, %v830
    %v832 = vshll.u32 %v792, 8
    %v833 = vmul.u32.u64.compose %v832, %v831
    %v834 = vextract.low.u32 %v833
    %v835 = vextract.high.u32 %v833
    %v836 = vmul.u32.u64.compose %v832, %v827
    %v837 = vextract.low.u32 %v836
    %v838 = vextract.high.u32 %v836
    %v839 = vmul.u32 %v832, %v823
    %v840 = vadd.s32 %v835, %v837
    %vm841 = vc.u32 %v835, %v837
    %v842 = vadd.s32 %v838, 1
    %v843 = vsel %vm841, %v842, %v838
    %v844 = vadd.s32 %v839, %v843
    %v845 = vadd.s32 %v844, 536870912
    %v846 = vshrl.u32 %v845, 30
    %v847 = vshll.u32 %v846, 30
    %v848 = vsub.s32 %v844, %v847
    %vm849 = vcmp.lt.s32.totalorder %v848, 0
    %v850 = vsub.s32 0, %v848
    %v851 = vsel %vm849, %v850, %v848
    %v852 = vclz %v851
    %v853 = vsub.s32 %v852, 2
    %vm854 = vcmp.gt.s32.totalorder 0, %v853
    %v855 = vsel %vm854, 0, %v853
    %v856 = vsub.s32 32, %v855
    %v857 = vshll.u32 %v848, %v855
    %v858 = vshrl.u32 %v840, %v856
    %v859 = vor.u32 %v857, %v858
    %v860 = vsub.s32 4294967266, %v855
    %v861 = vadd.s32 %v860, 127
    %v862 = vshll.u32 %v861, 23
    %v863 = vor.u32 4788187, %v862
    %v864 = vand.u32 2147483647, %v863
    %v866 = vcvt.s32.f32 %v859
    %v867 = vmul.f32 %v866, %v864
    %v868 = vxor.u32 %v867, 2147483648
    %v869 = vsel %vm786, %v868, %v867
    %v870 = vsub.s32 4, %v846
    %v871 = vsel %vm786, %v870, %v846
    %v872 = vsel %vm785, %v253, %v869
    %v873 = vsel %vm785, 0, %v871
    %v874 = vcosq.f32.pop %v872
    %v875 = vsinq.f32.pop %v872
    %vm876 = vweird.f32 %v253
    %v877 = vadd.s32 %v873, 3
    %v878 = vand.u32 %v877, 3
    %vm879 = vcmp.lt.s32.totalorder %v878, 2
    %vm880 = vcmp.eq.s32.totalorder %v878, 0
    %v881 = vxor.u32 %v875, 2147483648
    %v882 = vsel %vm880, %v874, %v881
    %vm883 = vcmp.eq.s32.totalorder %v878, 2
    %v884 = vxor.u32 %v874, 2147483648
    %v885 = vsel %vm883, %v884, %v875
    %v886 = vsel %vm879, %v882, %v885
    %v887 = vsel %vm876, nan, %v886
    %v888 = vand.u32 2147483647, %v254
    %vm889 = vcmp.le.f32.partialorder %v888, 0.7853982
    %vm890 = vcmp.lt.s32.totalorder %v254, 0
    %v891 = vand.u32 %v254, 2139095040
    %v892 = vshrl.u32 %v891, 23
    %v893 = vsub.s32 %v892, 127
    %v894 = vand.u32 2147483647, %v254
    %v895 = vand.u32 %v894, 8388607
    %v896 = vor.u32 %v895, 8388608
    %v897 = vsub.s32 0, %v896
    %v898 = vadd.s32 %v893, 1
    %vm899 = vcmp.gt.s32.totalorder %v898, 0
    %v900 = vsel %vm899, %v898, 0
    %v901 = vshrl.u32 %v900, 5
    %v902 = vand.u32 %v900, 31
    %v903 = vsub.s32 32, %v902
    %v904 = vshrl.u32 683565275, %v903
    %v905 = vshll.u32 683565275, %v902
    %v906 = vshrl.u32 2475754826, %v903
    %v907 = vor.u32 %v905, %v906
    %v908 = vshll.u32 2475754826, %v902
    %v909 = vshrl.u32 2131351028, %v903
    %v910 = vor.u32 %v908, %v909
    %v911 = vshll.u32 2131351028, %v902
    %v912 = vshrl.u32 2102212464, %v903
    %v913 = vor.u32 %v911, %v912
    %v914 = vshll.u32 2102212464, %v902
    %v915 = vshrl.u32 920167782, %v903
    %v916 = vor.u32 %v914, %v915
    %v917 = vshll.u32 920167782, %v902
    %v918 = vshrl.u32 1326507024, %v903
    %v919 = vor.u32 %v917, %v918
    %vm920 = vcmp.lt.s32.totalorder %v901, 1
    %vm921 = vcmp.lt.s32.totalorder %v901, 2
    %vm922 = vcmp.lt.s32.totalorder %v901, 3
    %vm923 = vcmp.lt.s32.totalorder %v901, 4
    %v924 = vsel %vm920, %v904, %v907
    %v925 = vsel %vm923, %v913, 2102212464
    %v926 = vsel %vm922, %v910, %v925
    %v927 = vsel %vm921, %v924, %v926
    %v928 = vsel %vm920, %v907, %v910
    %v929 = vsel %vm923, %v916, 920167782
    %v930 = vsel %vm922, %v913, %v929
    %v931 = vsel %vm921, %v928, %v930
    %v932 = vsel %vm920, %v910, %v913
    %v933 = vsel %vm923, %v919, 1326507024
    %v934 = vsel %vm922, %v916, %v933
    %v935 = vsel %vm921, %v932, %v934
    %v936 = vshll.u32 %v896, 8
    %v937 = vmul.u32.u64.compose %v936, %v935
    %v938 = vextract.low.u32 %v937
    %v939 = vextract.high.u32 %v937
    %v940 = vmul.u32.u64.compose %v936, %v931
    %v941 = vextract.low.u32 %v940
    %v942 = vextract.high.u32 %v940
    %v943 = vmul.u32 %v936, %v927
    %v944 = vadd.s32 %v939, %v941
    %vm945 = vc.u32 %v939, %v941
    %v946 = vadd.s32 %v942, 1
    %v947 = vsel %vm945, %v946, %v942
    %v948 = vadd.s32 %v943, %v947
    %v949 = vadd.s32 %v948, 536870912
    %v950 = vshrl.u32 %v949, 30
    %v951 = vshll.u32 %v950, 30
    %v952 = vsub.s32 %v948, %v951
    %vm953 = vcmp.lt.s32.totalorder %v952, 0
    %v954 = vsub.s32 0, %v952
    %v955 = vsel %vm953, %v954, %v952
    %v956 = vclz %v955
    %v957 = vsub.s32 %v956, 2
    %vm958 = vcmp.gt.s32.totalorder 0, %v957
    %v959 = vsel %vm958, 0, %v957
    %v960 = vsub.s32 32, %v959
    %v961 = vshll.u32 %v952, %v959
    %v962 = vshrl.u32 %v944, %v960
    %v963 = vor.u32 %v961, %v962
    %v964 = vsub.s32 4294967266, %v959
    %v965 = vadd.s32 %v964, 127
    %v966 = vshll.u32 %v965, 23
    %v967 = vor.u32 4788187, %v966
    %v968 = vand.u32 2147483647, %v967
    %v970 = vcvt.s32.f32 %v963
    %v971 = vmul.f32 %v970, %v968
    %v972 = vxor.u32 %v971, 2147483648
    %v973 = vsel %vm890, %v972, %v971
    %v974 = vsub.s32 4, %v950
    %v975 = vsel %vm890, %v974, %v950
    %v976 = vsel %vm889, %v254, %v973
    %v977 = vsel %vm889, 0, %v975
    %v978 = vcosq.f32.pop %v976
    %v979 = vsinq.f32.pop %v976
    %vm980 = vweird.f32 %v254
    %v981 = vadd.s32 %v977, 3
    %v982 = vand.u32 %v981, 3
    %vm983 = vcmp.lt.s32.totalorder %v982, 2
    %vm984 = vcmp.eq.s32.totalorder %v982, 0
    %v985 = vxor.u32 %v979, 2147483648
    %v986 = vsel %vm984, %v978, %v985
    %vm987 = vcmp.eq.s32.totalorder %v982, 2
    %v988 = vxor.u32 %v978, 2147483648
    %v989 = vsel %vm987, %v988, %v979
    %v990 = vsel %vm983, %v986, %v989
    %v991 = vsel %vm980, nan, %v990
    %v992 = vand.u32 2147483647, %v255
    %vm993 = vcmp.le.f32.partialorder %v992, 0.7853982
    %vm994 = vcmp.lt.s32.totalorder %v255, 0
    %v995 = vand.u32 %v255, 2139095040
    %v996 = vshrl.u32 %v995, 23
    %v997 = vsub.s32 %v996, 127
    %v998 = vand.u32 2147483647, %v255
    %v999 = vand.u32 %v998, 8388607
    %v1000 = vor.u32 %v999, 8388608
    %v1001 = vsub.s32 0, %v1000
    %v1002 = vadd.s32 %v997, 1
    %vm1003 = vcmp.gt.s32.totalorder %v1002, 0
    %v1004 = vsel %vm1003, %v1002, 0
    %v1005 = vshrl.u32 %v1004, 5
    %v1006 = vand.u32 %v1004, 31
    %v1007 = vsub.s32 32, %v1006
    %v1008 = vshrl.u32 683565275, %v1007
    %v1009 = vshll.u32 683565275, %v1006
    %v1010 = vshrl.u32 2475754826, %v1007
    %v1011 = vor.u32 %v1009, %v1010
    %v1012 = vshll.u32 2475754826, %v1006
    %v1013 = vshrl.u32 2131351028, %v1007
    %v1014 = vor.u32 %v1012, %v1013
    %v1015 = vshll.u32 2131351028, %v1006
    %v1016 = vshrl.u32 2102212464, %v1007
    %v1017 = vor.u32 %v1015, %v1016
    %v1018 = vshll.u32 2102212464, %v1006
    %v1019 = vshrl.u32 920167782, %v1007
    %v1020 = vor.u32 %v1018, %v1019
    %v1021 = vshll.u32 920167782, %v1006
    %v1022 = vshrl.u32 1326507024, %v1007
    %v1023 = vor.u32 %v1021, %v1022
    %vm1024 = vcmp.lt.s32.totalorder %v1005, 1
    %vm1025 = vcmp.lt.s32.totalorder %v1005, 2
    %vm1026 = vcmp.lt.s32.totalorder %v1005, 3
    %vm1027 = vcmp.lt.s32.totalorder %v1005, 4
    %v1028 = vsel %vm1024, %v1008, %v1011
    %v1029 = vsel %vm1027, %v1017, 2102212464
    %v1030 = vsel %vm1026, %v1014, %v1029
    %v1031 = vsel %vm1025, %v1028, %v1030
    %v1032 = vsel %vm1024, %v1011, %v1014
    %v1033 = vsel %vm1027, %v1020, 920167782
    %v1034 = vsel %vm1026, %v1017, %v1033
    %v1035 = vsel %vm1025, %v1032, %v1034
    %v1036 = vsel %vm1024, %v1014, %v1017
    %v1037 = vsel %vm1027, %v1023, 1326507024
    %v1038 = vsel %vm1026, %v1020, %v1037
    %v1039 = vsel %vm1025, %v1036, %v1038
    %v1040 = vshll.u32 %v1000, 8
    %v1041 = vmul.u32.u64.compose %v1040, %v1039
    %v1042 = vextract.low.u32 %v1041
    %v1043 = vextract.high.u32 %v1041
    %v1044 = vmul.u32.u64.compose %v1040, %v1035
    %v1045 = vextract.low.u32 %v1044
    %v1046 = vextract.high.u32 %v1044
    %v1047 = vmul.u32 %v1040, %v1031
    %v1048 = vadd.s32 %v1043, %v1045
    %vm1049 = vc.u32 %v1043, %v1045
    %v1050 = vadd.s32 %v1046, 1
    %v1051 = vsel %vm1049, %v1050, %v1046
    %v1052 = vadd.s32 %v1047, %v1051
    %v1053 = vadd.s32 %v1052, 536870912
    %v1054 = vshrl.u32 %v1053, 30
    %v1055 = vshll.u32 %v1054, 30
    %v1056 = vsub.s32 %v1052, %v1055
    %vm1057 = vcmp.lt.s32.totalorder %v1056, 0
    %v1058 = vsub.s32 0, %v1056
    %v1059 = vsel %vm1057, %v1058, %v1056
    %v1060 = vclz %v1059
    %v1061 = vsub.s32 %v1060, 2
    %vm1062 = vcmp.gt.s32.totalorder 0, %v1061
    %v1063 = vsel %vm1062, 0, %v1061
    %v1064 = vsub.s32 32, %v1063
    %v1065 = vshll.u32 %v1056, %v1063
    %v1066 = vshrl.u32 %v1048, %v1064
    %v1067 = vor.u32 %v1065, %v1066
    %v1068 = vsub.s32 4294967266, %v1063
    %v1069 = vadd.s32 %v1068, 127
    %v1070 = vshll.u32 %v1069, 23
    %v1071 = vor.u32 4788187, %v1070
    %v1072 = vand.u32 2147483647, %v1071
    %v1074 = vcvt.s32.f32 %v1067
    %v1075 = vmul.f32 %v1074, %v1072
    %v1076 = vxor.u32 %v1075, 2147483648
    %v1077 = vsel %vm994, %v1076, %v1075
    %v1078 = vsub.s32 4, %v1054
    %v1079 = vsel %vm994, %v1078, %v1054
    %v1080 = vsel %vm993, %v255, %v1077
    %v1081 = vsel %vm993, 0, %v1079
    %v1082 = vcosq.f32.pop %v1080
    %v1083 = vsinq.f32.pop %v1080
    %vm1084 = vweird.f32 %v255
    %v1085 = vadd.s32 %v1081, 3
    %v1086 = vand.u32 %v1085, 3
    %vm1087 = vcmp.lt.s32.totalorder %v1086, 2
    %vm1088 = vcmp.eq.s32.totalorder %v1086, 0
    %v1089 = vxor.u32 %v1083, 2147483648
    %v1090 = vsel %vm1088, %v1082, %v1089
    %vm1091 = vcmp.eq.s32.totalorder %v1086, 2
    %v1092 = vxor.u32 %v1082, 2147483648
    %v1093 = vsel %vm1091, %v1092, %v1083
    %v1094 = vsel %vm1087, %v1090, %v1093
    %v1095 = vsel %vm1084, nan, %v1094
    %v1096 = vand.u32 2147483647, %v256
    %vm1097 = vcmp.le.f32.partialorder %v1096, 0.7853982
    %vm1098 = vcmp.lt.s32.totalorder %v256, 0
    %v1099 = vand.u32 %v256, 2139095040
    %v1100 = vshrl.u32 %v1099, 23
    %v1101 = vsub.s32 %v1100, 127
    %v1102 = vand.u32 2147483647, %v256
    %v1103 = vand.u32 %v1102, 8388607
    %v1104 = vor.u32 %v1103, 8388608
    %v1105 = vsub.s32 0, %v1104
    %v1106 = vadd.s32 %v1101, 1
    %vm1107 = vcmp.gt.s32.totalorder %v1106, 0
    %v1108 = vsel %vm1107, %v1106, 0
    %v1109 = vshrl.u32 %v1108, 5
    %v1110 = vand.u32 %v1108, 31
    %v1111 = vsub.s32 32, %v1110
    %v1112 = vshrl.u32 683565275, %v1111
    %v1113 = vshll.u32 683565275, %v1110
    %v1114 = vshrl.u32 2475754826, %v1111
    %v1115 = vor.u32 %v1113, %v1114
    %v1116 = vshll.u32 2475754826, %v1110
    %v1117 = vshrl.u32 2131351028, %v1111
    %v1118 = vor.u32 %v1116, %v1117
    %v1119 = vshll.u32 2131351028, %v1110
    %v1120 = vshrl.u32 2102212464, %v1111
    %v1121 = vor.u32 %v1119, %v1120
    %v1122 = vshll.u32 2102212464, %v1110
    %v1123 = vshrl.u32 920167782, %v1111
    %v1124 = vor.u32 %v1122, %v1123
    %v1125 = vshll.u32 920167782, %v1110
    %v1126 = vshrl.u32 1326507024, %v1111
    %v1127 = vor.u32 %v1125, %v1126
    %vm1128 = vcmp.lt.s32.totalorder %v1109, 1
    %vm1129 = vcmp.lt.s32.totalorder %v1109, 2
    %vm1130 = vcmp.lt.s32.totalorder %v1109, 3
    %vm1131 = vcmp.lt.s32.totalorder %v1109, 4
    %v1132 = vsel %vm1128, %v1112, %v1115
    %v1133 = vsel %vm1131, %v1121, 2102212464
    %v1134 = vsel %vm1130, %v1118, %v1133
    %v1135 = vsel %vm1129, %v1132, %v1134
    %v1136 = vsel %vm1128, %v1115, %v1118
    %v1137 = vsel %vm1131, %v1124, 920167782
    %v1138 = vsel %vm1130, %v1121, %v1137
    %v1139 = vsel %vm1129, %v1136, %v1138
    %v1140 = vsel %vm1128, %v1118, %v1121
    %v1141 = vsel %vm1131, %v1127, 1326507024
    %v1142 = vsel %vm1130, %v1124, %v1141
    %v1143 = vsel %vm1129, %v1140, %v1142
    %v1144 = vshll.u32 %v1104, 8
    %v1145 = vmul.u32.u64.compose %v1144, %v1143
    %v1146 = vextract.low.u32 %v1145
    %v1147 = vextract.high.u32 %v1145
    %v1148 = vmul.u32.u64.compose %v1144, %v1139
    %v1149 = vextract.low.u32 %v1148
    %v1150 = vextract.high.u32 %v1148
    %v1151 = vmul.u32 %v1144, %v1135
    %v1152 = vadd.s32 %v1147, %v1149
    %vm1153 = vc.u32 %v1147, %v1149
    %v1154 = vadd.s32 %v1150, 1
    %v1155 = vsel %vm1153, %v1154, %v1150
    %v1156 = vadd.s32 %v1151, %v1155
    %v1157 = vadd.s32 %v1156, 536870912
    %v1158 = vshrl.u32 %v1157, 30
    %v1159 = vshll.u32 %v1158, 30
    %v1160 = vsub.s32 %v1156, %v1159
    %vm1161 = vcmp.lt.s32.totalorder %v1160, 0
    %v1162 = vsub.s32 0, %v1160
    %v1163 = vsel %vm1161, %v1162, %v1160
    %v1164 = vclz %v1163
    %v1165 = vsub.s32 %v1164, 2
    %vm1166 = vcmp.gt.s32.totalorder 0, %v1165
    %v1167 = vsel %vm1166, 0, %v1165
    %v1168 = vsub.s32 32, %v1167
    %v1169 = vshll.u32 %v1160, %v1167
    %v1170 = vshrl.u32 %v1152, %v1168
    %v1171 = vor.u32 %v1169, %v1170
    %v1172 = vsub.s32 4294967266, %v1167
    %v1173 = vadd.s32 %v1172, 127
    %v1174 = vshll.u32 %v1173, 23
    %v1175 = vor.u32 4788187, %v1174
    %v1176 = vand.u32 2147483647, %v1175
    %v1178 = vcvt.s32.f32 %v1171
    %v1179 = vmul.f32 %v1178, %v1176
    %v1180 = vxor.u32 %v1179, 2147483648
    %v1181 = vsel %vm1098, %v1180, %v1179
    %v1182 = vsub.s32 4, %v1158
    %v1183 = vsel %vm1098, %v1182, %v1158
    %v1184 = vsel %vm1097, %v256, %v1181
    %v1185 = vsel %vm1097, 0, %v1183
    %v1186 = vcosq.f32.pop %v1184
    %v1187 = vsinq.f32.pop %v1184
    %vm1188 = vweird.f32 %v256
    %v1189 = vadd.s32 %v1185, 3
    %v1190 = vand.u32 %v1189, 3
    %vm1191 = vcmp.lt.s32.totalorder %v1190, 2
    %vm1192 = vcmp.eq.s32.totalorder %v1190, 0
    %v1193 = vxor.u32 %v1187, 2147483648
    %v1194 = vsel %vm1192, %v1186, %v1193
    %vm1195 = vcmp.eq.s32.totalorder %v1190, 2
    %v1196 = vxor.u32 %v1186, 2147483648
    %v1197 = vsel %vm1195, %v1196, %v1187
    %v1198 = vsel %vm1191, %v1194, %v1197
    %v1199 = vsel %vm1188, nan, %v1198
    %v1200 = vand.u32 2147483647, %v257
    %vm1201 = vcmp.le.f32.partialorder %v1200, 0.7853982
    %vm1202 = vcmp.lt.s32.totalorder %v257, 0
    %v1203 = vand.u32 %v257, 2139095040
    %v1204 = vshrl.u32 %v1203, 23
    %v1205 = vsub.s32 %v1204, 127
    %v1206 = vand.u32 2147483647, %v257
    %v1207 = vand.u32 %v1206, 8388607
    %v1208 = vor.u32 %v1207, 8388608
    %v1209 = vsub.s32 0, %v1208
    %v1210 = vadd.s32 %v1205, 1
    %vm1211 = vcmp.gt.s32.totalorder %v1210, 0
    %v1212 = vsel %vm1211, %v1210, 0
    %v1213 = vshrl.u32 %v1212, 5
    %v1214 = vand.u32 %v1212, 31
    %v1215 = vsub.s32 32, %v1214
    %v1216 = vshrl.u32 683565275, %v1215
    %v1217 = vshll.u32 683565275, %v1214
    %v1218 = vshrl.u32 2475754826, %v1215
    %v1219 = vor.u32 %v1217, %v1218
    %v1220 = vshll.u32 2475754826, %v1214
    %v1221 = vshrl.u32 2131351028, %v1215
    %v1222 = vor.u32 %v1220, %v1221
    %v1223 = vshll.u32 2131351028, %v1214
    %v1224 = vshrl.u32 2102212464, %v1215
    %v1225 = vor.u32 %v1223, %v1224
    %v1226 = vshll.u32 2102212464, %v1214
    %v1227 = vshrl.u32 920167782, %v1215
    %v1228 = vor.u32 %v1226, %v1227
    %v1229 = vshll.u32 920167782, %v1214
    %v1230 = vshrl.u32 1326507024, %v1215
    %v1231 = vor.u32 %v1229, %v1230
    %vm1232 = vcmp.lt.s32.totalorder %v1213, 1
    %vm1233 = vcmp.lt.s32.totalorder %v1213, 2
    %vm1234 = vcmp.lt.s32.totalorder %v1213, 3
    %vm1235 = vcmp.lt.s32.totalorder %v1213, 4
    %v1236 = vsel %vm1232, %v1216, %v1219
    %v1237 = vsel %vm1235, %v1225, 2102212464
    %v1238 = vsel %vm1234, %v1222, %v1237
    %v1239 = vsel %vm1233, %v1236, %v1238
    %v1240 = vsel %vm1232, %v1219, %v1222
    %v1241 = vsel %vm1235, %v1228, 920167782
    %v1242 = vsel %vm1234, %v1225, %v1241
    %v1243 = vsel %vm1233, %v1240, %v1242
    %v1244 = vsel %vm1232, %v1222, %v1225
    %v1245 = vsel %vm1235, %v1231, 1326507024
    %v1246 = vsel %vm1234, %v1228, %v1245
    %v1247 = vsel %vm1233, %v1244, %v1246
    %v1248 = vshll.u32 %v1208, 8
    %v1249 = vmul.u32.u64.compose %v1248, %v1247
    %v1250 = vextract.low.u32 %v1249
    %v1251 = vextract.high.u32 %v1249
    %v1252 = vmul.u32.u64.compose %v1248, %v1243
    %v1253 = vextract.low.u32 %v1252
    %v1254 = vextract.high.u32 %v1252
    %v1255 = vmul.u32 %v1248, %v1239
    %v1256 = vadd.s32 %v1251, %v1253
    %vm1257 = vc.u32 %v1251, %v1253
    %v1258 = vadd.s32 %v1254, 1
    %v1259 = vsel %vm1257, %v1258, %v1254
    %v1260 = vadd.s32 %v1255, %v1259
    %v1261 = vadd.s32 %v1260, 536870912
    %v1262 = vshrl.u32 %v1261, 30
    %v1263 = vshll.u32 %v1262, 30
    %v1264 = vsub.s32 %v1260, %v1263
    %vm1265 = vcmp.lt.s32.totalorder %v1264, 0
    %v1266 = vsub.s32 0, %v1264
    %v1267 = vsel %vm1265, %v1266, %v1264
    %v1268 = vclz %v1267
    %v1269 = vsub.s32 %v1268, 2
    %vm1270 = vcmp.gt.s32.totalorder 0, %v1269
    %v1271 = vsel %vm1270, 0, %v1269
    %v1272 = vsub.s32 32, %v1271
    %v1273 = vshll.u32 %v1264, %v1271
    %v1274 = vshrl.u32 %v1256, %v1272
    %v1275 = vor.u32 %v1273, %v1274
    %v1276 = vsub.s32 4294967266, %v1271
    %v1277 = vadd.s32 %v1276, 127
    %v1278 = vshll.u32 %v1277, 23
    %v1279 = vor.u32 4788187, %v1278
    %v1280 = vand.u32 2147483647, %v1279
    %v1282 = vcvt.s32.f32 %v1275
    %v1283 = vmul.f32 %v1282, %v1280
    %v1284 = vxor.u32 %v1283, 2147483648
    %v1285 = vsel %vm1202, %v1284, %v1283
    %v1286 = vsub.s32 4, %v1262
    %v1287 = vsel %vm1202, %v1286, %v1262
    %v1288 = vsel %vm1201, %v257, %v1285
    %v1289 = vsel %vm1201, 0, %v1287
    %v1290 = vcosq.f32.pop %v1288
    %v1291 = vsinq.f32.pop %v1288
    %vm1292 = vweird.f32 %v257
    %v1293 = vadd.s32 %v1289, 3
    %v1294 = vand.u32 %v1293, 3
    %vm1295 = vcmp.lt.s32.totalorder %v1294, 2
    %vm1296 = vcmp.eq.s32.totalorder %v1294, 0
    %v1297 = vxor.u32 %v1291, 2147483648
    %v1298 = vsel %vm1296, %v1290, %v1297
    %vm1299 = vcmp.eq.s32.totalorder %v1294, 2
    %v1300 = vxor.u32 %v1290, 2147483648
    %v1301 = vsel %vm1299, %v1300, %v1291
    %v1302 = vsel %vm1295, %v1298, %v1301
    %v1303 = vsel %vm1292, nan, %v1302
    %v1304 = vand.u32 2147483647, %v258
    %vm1305 = vcmp.le.f32.partialorder %v1304, 0.7853982
    %vm1306 = vcmp.lt.s32.totalorder %v258, 0
    %v1307 = vand.u32 %v258, 2139095040
    %v1308 = vshrl.u32 %v1307, 23
    %v1309 = vsub.s32 %v1308, 127
    %v1310 = vand.u32 2147483647, %v258
    %v1311 = vand.u32 %v1310, 8388607
    %v1312 = vor.u32 %v1311, 8388608
    %v1313 = vsub.s32 0, %v1312
    %v1314 = vadd.s32 %v1309, 1
    %vm1315 = vcmp.gt.s32.totalorder %v1314, 0
    %v1316 = vsel %vm1315, %v1314, 0
    %v1317 = vshrl.u32 %v1316, 5
    %v1318 = vand.u32 %v1316, 31
    %v1319 = vsub.s32 32, %v1318
    %v1320 = vshrl.u32 683565275, %v1319
    %v1321 = vshll.u32 683565275, %v1318
    %v1322 = vshrl.u32 2475754826, %v1319
    %v1323 = vor.u32 %v1321, %v1322
    %v1324 = vshll.u32 2475754826, %v1318
    %v1325 = vshrl.u32 2131351028, %v1319
    %v1326 = vor.u32 %v1324, %v1325
    %v1327 = vshll.u32 2131351028, %v1318
    %v1328 = vshrl.u32 2102212464, %v1319
    %v1329 = vor.u32 %v1327, %v1328
    %v1330 = vshll.u32 2102212464, %v1318
    %v1331 = vshrl.u32 920167782, %v1319
    %v1332 = vor.u32 %v1330, %v1331
    %v1333 = vshll.u32 920167782, %v1318
    %v1334 = vshrl.u32 1326507024, %v1319
    %v1335 = vor.u32 %v1333, %v1334
    %vm1336 = vcmp.lt.s32.totalorder %v1317, 1
    %vm1337 = vcmp.lt.s32.totalorder %v1317, 2
    %vm1338 = vcmp.lt.s32.totalorder %v1317, 3
    %vm1339 = vcmp.lt.s32.totalorder %v1317, 4
    %v1340 = vsel %vm1336, %v1320, %v1323
    %v1341 = vsel %vm1339, %v1329, 2102212464
    %v1342 = vsel %vm1338, %v1326, %v1341
    %v1343 = vsel %vm1337, %v1340, %v1342
    %v1344 = vsel %vm1336, %v1323, %v1326
    %v1345 = vsel %vm1339, %v1332, 920167782
    %v1346 = vsel %vm1338, %v1329, %v1345
    %v1347 = vsel %vm1337, %v1344, %v1346
    %v1348 = vsel %vm1336, %v1326, %v1329
    %v1349 = vsel %vm1339, %v1335, 1326507024
    %v1350 = vsel %vm1338, %v1332, %v1349
    %v1351 = vsel %vm1337, %v1348, %v1350
    %v1352 = vshll.u32 %v1312, 8
    %v1353 = vmul.u32.u64.compose %v1352, %v1351
    %v1354 = vextract.low.u32 %v1353
    %v1355 = vextract.high.u32 %v1353
    %v1356 = vmul.u32.u64.compose %v1352, %v1347
    %v1357 = vextract.low.u32 %v1356
    %v1358 = vextract.high.u32 %v1356
    %v1359 = vmul.u32 %v1352, %v1343
    %v1360 = vadd.s32 %v1355, %v1357
    %vm1361 = vc.u32 %v1355, %v1357
    %v1362 = vadd.s32 %v1358, 1
    %v1363 = vsel %vm1361, %v1362, %v1358
    %v1364 = vadd.s32 %v1359, %v1363
    %v1365 = vadd.s32 %v1364, 536870912
    %v1366 = vshrl.u32 %v1365, 30
    %v1367 = vshll.u32 %v1366, 30
    %v1368 = vsub.s32 %v1364, %v1367
    %vm1369 = vcmp.lt.s32.totalorder %v1368, 0
    %v1370 = vsub.s32 0, %v1368
    %v1371 = vsel %vm1369, %v1370, %v1368
    %v1372 = vclz %v1371
    %v1373 = vsub.s32 %v1372, 2
    %vm1374 = vcmp.gt.s32.totalorder 0, %v1373
    %v1375 = vsel %vm1374, 0, %v1373
    %v1376 = vsub.s32 32, %v1375
    %v1377 = vshll.u32 %v1368, %v1375
    %v1378 = vshrl.u32 %v1360, %v1376
    %v1379 = vor.u32 %v1377, %v1378
    %v1380 = vsub.s32 4294967266, %v1375
    %v1381 = vadd.s32 %v1380, 127
    %v1382 = vshll.u32 %v1381, 23
    %v1383 = vor.u32 4788187, %v1382
    %v1384 = vand.u32 2147483647, %v1383
    %v1386 = vcvt.s32.f32 %v1379
    %v1387 = vmul.f32 %v1386, %v1384
    %v1388 = vxor.u32 %v1387, 2147483648
    %v1389 = vsel %vm1306, %v1388, %v1387
    %v1390 = vsub.s32 4, %v1366
    %v1391 = vsel %vm1306, %v1390, %v1366
    %v1392 = vsel %vm1305, %v258, %v1389
    %v1393 = vsel %vm1305, 0, %v1391
    %v1394 = vcosq.f32.pop %v1392
    %v1395 = vsinq.f32.pop %v1392
    %vm1396 = vweird.f32 %v258
    %v1397 = vadd.s32 %v1393, 3
    %v1398 = vand.u32 %v1397, 3
    %vm1399 = vcmp.lt.s32.totalorder %v1398, 2
    %vm1400 = vcmp.eq.s32.totalorder %v1398, 0
    %v1401 = vxor.u32 %v1395, 2147483648
    %v1402 = vsel %vm1400, %v1394, %v1401
    %vm1403 = vcmp.eq.s32.totalorder %v1398, 2
    %v1404 = vxor.u32 %v1394, 2147483648
    %v1405 = vsel %vm1403, %v1404, %v1395
    %v1406 = vsel %vm1399, %v1402, %v1405
    %v1407 = vsel %vm1396, nan, %v1406
    %v1408 = vand.u32 2147483647, %v259
    %vm1409 = vcmp.le.f32.partialorder %v1408, 0.7853982
    %vm1410 = vcmp.lt.s32.totalorder %v259, 0
    %v1411 = vand.u32 %v259, 2139095040
    %v1412 = vshrl.u32 %v1411, 23
    %v1413 = vsub.s32 %v1412, 127
    %v1414 = vand.u32 2147483647, %v259
    %v1415 = vand.u32 %v1414, 8388607
    %v1416 = vor.u32 %v1415, 8388608
    %v1417 = vsub.s32 0, %v1416
    %v1418 = vadd.s32 %v1413, 1
    %vm1419 = vcmp.gt.s32.totalorder %v1418, 0
    %v1420 = vsel %vm1419, %v1418, 0
    %v1421 = vshrl.u32 %v1420, 5
    %v1422 = vand.u32 %v1420, 31
    %v1423 = vsub.s32 32, %v1422
    %v1424 = vshrl.u32 683565275, %v1423
    %v1425 = vshll.u32 683565275, %v1422
    %v1426 = vshrl.u32 2475754826, %v1423
    %v1427 = vor.u32 %v1425, %v1426
    %v1428 = vshll.u32 2475754826, %v1422
    %v1429 = vshrl.u32 2131351028, %v1423
    %v1430 = vor.u32 %v1428, %v1429
    %v1431 = vshll.u32 2131351028, %v1422
    %v1432 = vshrl.u32 2102212464, %v1423
    %v1433 = vor.u32 %v1431, %v1432
    %v1434 = vshll.u32 2102212464, %v1422
    %v1435 = vshrl.u32 920167782, %v1423
    %v1436 = vor.u32 %v1434, %v1435
    %v1437 = vshll.u32 920167782, %v1422
    %v1438 = vshrl.u32 1326507024, %v1423
    %v1439 = vor.u32 %v1437, %v1438
    %vm1440 = vcmp.lt.s32.totalorder %v1421, 1
    %vm1441 = vcmp.lt.s32.totalorder %v1421, 2
    %vm1442 = vcmp.lt.s32.totalorder %v1421, 3
    %vm1443 = vcmp.lt.s32.totalorder %v1421, 4
    %v1444 = vsel %vm1440, %v1424, %v1427
    %v1445 = vsel %vm1443, %v1433, 2102212464
    %v1446 = vsel %vm1442, %v1430, %v1445
    %v1447 = vsel %vm1441, %v1444, %v1446
    %v1448 = vsel %vm1440, %v1427, %v1430
    %v1449 = vsel %vm1443, %v1436, 920167782
    %v1450 = vsel %vm1442, %v1433, %v1449
    %v1451 = vsel %vm1441, %v1448, %v1450
    %v1452 = vsel %vm1440, %v1430, %v1433
    %v1453 = vsel %vm1443, %v1439, 1326507024
    %v1454 = vsel %vm1442, %v1436, %v1453
    %v1455 = vsel %vm1441, %v1452, %v1454
    %v1456 = vshll.u32 %v1416, 8
    %v1457 = vmul.u32.u64.compose %v1456, %v1455
    %v1458 = vextract.low.u32 %v1457
    %v1459 = vextract.high.u32 %v1457
    %v1460 = vmul.u32.u64.compose %v1456, %v1451
    %v1461 = vextract.low.u32 %v1460
    %v1462 = vextract.high.u32 %v1460
    %v1463 = vmul.u32 %v1456, %v1447
    %v1464 = vadd.s32 %v1459, %v1461
    %vm1465 = vc.u32 %v1459, %v1461
    %v1466 = vadd.s32 %v1462, 1
    %v1467 = vsel %vm1465, %v1466, %v1462
    %v1468 = vadd.s32 %v1463, %v1467
    %v1469 = vadd.s32 %v1468, 536870912
    %v1470 = vshrl.u32 %v1469, 30
    %v1471 = vshll.u32 %v1470, 30
    %v1472 = vsub.s32 %v1468, %v1471
    %vm1473 = vcmp.lt.s32.totalorder %v1472, 0
    %v1474 = vsub.s32 0, %v1472
    %v1475 = vsel %vm1473, %v1474, %v1472
    %v1476 = vclz %v1475
    %v1477 = vsub.s32 %v1476, 2
    %vm1478 = vcmp.gt.s32.totalorder 0, %v1477
    %v1479 = vsel %vm1478, 0, %v1477
    %v1480 = vsub.s32 32, %v1479
    %v1481 = vshll.u32 %v1472, %v1479
    %v1482 = vshrl.u32 %v1464, %v1480
    %v1483 = vor.u32 %v1481, %v1482
    %v1484 = vsub.s32 4294967266, %v1479
    %v1485 = vadd.s32 %v1484, 127
    %v1486 = vshll.u32 %v1485, 23
    %v1487 = vor.u32 4788187, %v1486
    %v1488 = vand.u32 2147483647, %v1487
    %v1490 = vcvt.s32.f32 %v1483
    %v1491 = vmul.f32 %v1490, %v1488
    %v1492 = vxor.u32 %v1491, 2147483648
    %v1493 = vsel %vm1410, %v1492, %v1491
    %v1494 = vsub.s32 4, %v1470
    %v1495 = vsel %vm1410, %v1494, %v1470
    %v1496 = vsel %vm1409, %v259, %v1493
    %v1497 = vsel %vm1409, 0, %v1495
    %v1498 = vcosq.f32.pop %v1496
    %v1499 = vsinq.f32.pop %v1496
    %vm1500 = vweird.f32 %v259
    %v1501 = vadd.s32 %v1497, 3
    %v1502 = vand.u32 %v1501, 3
    %vm1503 = vcmp.lt.s32.totalorder %v1502, 2
    %vm1504 = vcmp.eq.s32.totalorder %v1502, 0
    %v1505 = vxor.u32 %v1499, 2147483648
    %v1506 = vsel %vm1504, %v1498, %v1505
    %vm1507 = vcmp.eq.s32.totalorder %v1502, 2
    %v1508 = vxor.u32 %v1498, 2147483648
    %v1509 = vsel %vm1507, %v1508, %v1499
    %v1510 = vsel %vm1503, %v1506, %v1509
    %v1511 = vsel %vm1500, nan, %v1510
    %v1512 = vand.u32 2147483647, %v260
    %vm1513 = vcmp.le.f32.partialorder %v1512, 0.7853982
    %vm1514 = vcmp.lt.s32.totalorder %v260, 0
    %v1515 = vand.u32 %v260, 2139095040
    %v1516 = vshrl.u32 %v1515, 23
    %v1517 = vsub.s32 %v1516, 127
    %v1518 = vand.u32 2147483647, %v260
    %v1519 = vand.u32 %v1518, 8388607
    %v1520 = vor.u32 %v1519, 8388608
    %v1521 = vsub.s32 0, %v1520
    %v1522 = vadd.s32 %v1517, 1
    %vm1523 = vcmp.gt.s32.totalorder %v1522, 0
    %v1524 = vsel %vm1523, %v1522, 0
    %v1525 = vshrl.u32 %v1524, 5
    %v1526 = vand.u32 %v1524, 31
    %v1527 = vsub.s32 32, %v1526
    %v1528 = vshrl.u32 683565275, %v1527
    %v1529 = vshll.u32 683565275, %v1526
    %v1530 = vshrl.u32 2475754826, %v1527
    %v1531 = vor.u32 %v1529, %v1530
    %v1532 = vshll.u32 2475754826, %v1526
    %v1533 = vshrl.u32 2131351028, %v1527
    %v1534 = vor.u32 %v1532, %v1533
    %v1535 = vshll.u32 2131351028, %v1526
    %v1536 = vshrl.u32 2102212464, %v1527
    %v1537 = vor.u32 %v1535, %v1536
    %v1538 = vshll.u32 2102212464, %v1526
    %v1539 = vshrl.u32 920167782, %v1527
    %v1540 = vor.u32 %v1538, %v1539
    %v1541 = vshll.u32 920167782, %v1526
    %v1542 = vshrl.u32 1326507024, %v1527
    %v1543 = vor.u32 %v1541, %v1542
    %vm1544 = vcmp.lt.s32.totalorder %v1525, 1
    %vm1545 = vcmp.lt.s32.totalorder %v1525, 2
    %vm1546 = vcmp.lt.s32.totalorder %v1525, 3
    %vm1547 = vcmp.lt.s32.totalorder %v1525, 4
    %v1548 = vsel %vm1544, %v1528, %v1531
    %v1549 = vsel %vm1547, %v1537, 2102212464
    %v1550 = vsel %vm1546, %v1534, %v1549
    %v1551 = vsel %vm1545, %v1548, %v1550
    %v1552 = vsel %vm1544, %v1531, %v1534
    %v1553 = vsel %vm1547, %v1540, 920167782
    %v1554 = vsel %vm1546, %v1537, %v1553
    %v1555 = vsel %vm1545, %v1552, %v1554
    %v1556 = vsel %vm1544, %v1534, %v1537
    %v1557 = vsel %vm1547, %v1543, 1326507024
    %v1558 = vsel %vm1546, %v1540, %v1557
    %v1559 = vsel %vm1545, %v1556, %v1558
    %v1560 = vshll.u32 %v1520, 8
    %v1561 = vmul.u32.u64.compose %v1560, %v1559
    %v1562 = vextract.low.u32 %v1561
    %v1563 = vextract.high.u32 %v1561
    %v1564 = vmul.u32.u64.compose %v1560, %v1555
    %v1565 = vextract.low.u32 %v1564
    %v1566 = vextract.high.u32 %v1564
    %v1567 = vmul.u32 %v1560, %v1551
    %v1568 = vadd.s32 %v1563, %v1565
    %vm1569 = vc.u32 %v1563, %v1565
    %v1570 = vadd.s32 %v1566, 1
    %v1571 = vsel %vm1569, %v1570, %v1566
    %v1572 = vadd.s32 %v1567, %v1571
    %v1573 = vadd.s32 %v1572, 536870912
    %v1574 = vshrl.u32 %v1573, 30
    %v1575 = vshll.u32 %v1574, 30
    %v1576 = vsub.s32 %v1572, %v1575
    %vm1577 = vcmp.lt.s32.totalorder %v1576, 0
    %v1578 = vsub.s32 0, %v1576
    %v1579 = vsel %vm1577, %v1578, %v1576
    %v1580 = vclz %v1579
    %v1581 = vsub.s32 %v1580, 2
    %vm1582 = vcmp.gt.s32.totalorder 0, %v1581
    %v1583 = vsel %vm1582, 0, %v1581
    %v1584 = vsub.s32 32, %v1583
    %v1585 = vshll.u32 %v1576, %v1583
    %v1586 = vshrl.u32 %v1568, %v1584
    %v1587 = vor.u32 %v1585, %v1586
    %v1588 = vsub.s32 4294967266, %v1583
    %v1589 = vadd.s32 %v1588, 127
    %v1590 = vshll.u32 %v1589, 23
    %v1591 = vor.u32 4788187, %v1590
    %v1592 = vand.u32 2147483647, %v1591
    %v1594 = vcvt.s32.f32 %v1587
    %v1595 = vmul.f32 %v1594, %v1592
    %v1596 = vxor.u32 %v1595, 2147483648
    %v1597 = vsel %vm1514, %v1596, %v1595
    %v1598 = vsub.s32 4, %v1574
    %v1599 = vsel %vm1514, %v1598, %v1574
    %v1600 = vsel %vm1513, %v260, %v1597
    %v1601 = vsel %vm1513, 0, %v1599
    %v1602 = vcosq.f32.pop %v1600
    %v1603 = vsinq.f32.pop %v1600
    %vm1604 = vweird.f32 %v260
    %v1605 = vadd.s32 %v1601, 3
    %v1606 = vand.u32 %v1605, 3
    %vm1607 = vcmp.lt.s32.totalorder %v1606, 2
    %vm1608 = vcmp.eq.s32.totalorder %v1606, 0
    %v1609 = vxor.u32 %v1603, 2147483648
    %v1610 = vsel %vm1608, %v1602, %v1609
    %vm1611 = vcmp.eq.s32.totalorder %v1606, 2
    %v1612 = vxor.u32 %v1602, 2147483648
    %v1613 = vsel %vm1611, %v1612, %v1603
    %v1614 = vsel %vm1607, %v1610, %v1613
    %v1615 = vsel %vm1604, nan, %v1614
    %v1616 = vand.u32 2147483647, %v261
    %vm1617 = vcmp.le.f32.partialorder %v1616, 0.7853982
    %vm1618 = vcmp.lt.s32.totalorder %v261, 0
    %v1619 = vand.u32 %v261, 2139095040
    %v1620 = vshrl.u32 %v1619, 23
    %v1621 = vsub.s32 %v1620, 127
    %v1622 = vand.u32 2147483647, %v261
    %v1623 = vand.u32 %v1622, 8388607
    %v1624 = vor.u32 %v1623, 8388608
    %v1625 = vsub.s32 0, %v1624
    %v1626 = vadd.s32 %v1621, 1
    %vm1627 = vcmp.gt.s32.totalorder %v1626, 0
    %v1628 = vsel %vm1627, %v1626, 0
    %v1629 = vshrl.u32 %v1628, 5
    %v1630 = vand.u32 %v1628, 31
    %v1631 = vsub.s32 32, %v1630
    %v1632 = vshrl.u32 683565275, %v1631
    %v1633 = vshll.u32 683565275, %v1630
    %v1634 = vshrl.u32 2475754826, %v1631
    %v1635 = vor.u32 %v1633, %v1634
    %v1636 = vshll.u32 2475754826, %v1630
    %v1637 = vshrl.u32 2131351028, %v1631
    %v1638 = vor.u32 %v1636, %v1637
    %v1639 = vshll.u32 2131351028, %v1630
    %v1640 = vshrl.u32 2102212464, %v1631
    %v1641 = vor.u32 %v1639, %v1640
    %v1642 = vshll.u32 2102212464, %v1630
    %v1643 = vshrl.u32 920167782, %v1631
    %v1644 = vor.u32 %v1642, %v1643
    %v1645 = vshll.u32 920167782, %v1630
    %v1646 = vshrl.u32 1326507024, %v1631
    %v1647 = vor.u32 %v1645, %v1646
    %vm1648 = vcmp.lt.s32.totalorder %v1629, 1
    %vm1649 = vcmp.lt.s32.totalorder %v1629, 2
    %vm1650 = vcmp.lt.s32.totalorder %v1629, 3
    %vm1651 = vcmp.lt.s32.totalorder %v1629, 4
    %v1652 = vsel %vm1648, %v1632, %v1635
    %v1653 = vsel %vm1651, %v1641, 2102212464
    %v1654 = vsel %vm1650, %v1638, %v1653
    %v1655 = vsel %vm1649, %v1652, %v1654
    %v1656 = vsel %vm1648, %v1635, %v1638
    %v1657 = vsel %vm1651, %v1644, 920167782
    %v1658 = vsel %vm1650, %v1641, %v1657
    %v1659 = vsel %vm1649, %v1656, %v1658
    %v1660 = vsel %vm1648, %v1638, %v1641
    %v1661 = vsel %vm1651, %v1647, 1326507024
    %v1662 = vsel %vm1650, %v1644, %v1661
    %v1663 = vsel %vm1649, %v1660, %v1662
    %v1664 = vshll.u32 %v1624, 8
    %v1665 = vmul.u32.u64.compose %v1664, %v1663
    %v1666 = vextract.low.u32 %v1665
    %v1667 = vextract.high.u32 %v1665
    %v1668 = vmul.u32.u64.compose %v1664, %v1659
    %v1669 = vextract.low.u32 %v1668
    %v1670 = vextract.high.u32 %v1668
    %v1671 = vmul.u32 %v1664, %v1655
    %v1672 = vadd.s32 %v1667, %v1669
    %vm1673 = vc.u32 %v1667, %v1669
    %v1674 = vadd.s32 %v1670, 1
    %v1675 = vsel %vm1673, %v1674, %v1670
    %v1676 = vadd.s32 %v1671, %v1675
    %v1677 = vadd.s32 %v1676, 536870912
    %v1678 = vshrl.u32 %v1677, 30
    %v1679 = vshll.u32 %v1678, 30
    %v1680 = vsub.s32 %v1676, %v1679
    %vm1681 = vcmp.lt.s32.totalorder %v1680, 0
    %v1682 = vsub.s32 0, %v1680
    %v1683 = vsel %vm1681, %v1682, %v1680
    %v1684 = vclz %v1683
    %v1685 = vsub.s32 %v1684, 2
    %vm1686 = vcmp.gt.s32.totalorder 0, %v1685
    %v1687 = vsel %vm1686, 0, %v1685
    %v1688 = vsub.s32 32, %v1687
    %v1689 = vshll.u32 %v1680, %v1687
    %v1690 = vshrl.u32 %v1672, %v1688
    %v1691 = vor.u32 %v1689, %v1690
    %v1692 = vsub.s32 4294967266, %v1687
    %v1693 = vadd.s32 %v1692, 127
    %v1694 = vshll.u32 %v1693, 23
    %v1695 = vor.u32 4788187, %v1694
    %v1696 = vand.u32 2147483647, %v1695
    %v1698 = vcvt.s32.f32 %v1691
    %v1699 = vmul.f32 %v1698, %v1696
    %v1700 = vxor.u32 %v1699, 2147483648
    %v1701 = vsel %vm1618, %v1700, %v1699
    %v1702 = vsub.s32 4, %v1678
    %v1703 = vsel %vm1618, %v1702, %v1678
    %v1704 = vsel %vm1617, %v261, %v1701
    %v1705 = vsel %vm1617, 0, %v1703
    %v1706 = vcosq.f32.pop %v1704
    %v1707 = vsinq.f32.pop %v1704
    %vm1708 = vweird.f32 %v261
    %v1709 = vadd.s32 %v1705, 3
    %v1710 = vand.u32 %v1709, 3
    %vm1711 = vcmp.lt.s32.totalorder %v1710, 2
    %vm1712 = vcmp.eq.s32.totalorder %v1710, 0
    %v1713 = vxor.u32 %v1707, 2147483648
    %v1714 = vsel %vm1712, %v1706, %v1713
    %vm1715 = vcmp.eq.s32.totalorder %v1710, 2
    %v1716 = vxor.u32 %v1706, 2147483648
    %v1717 = vsel %vm1715, %v1716, %v1707
    %v1718 = vsel %vm1711, %v1714, %v1717
    %v1719 = vsel %vm1708, nan, %v1718
    %v1720 = vand.u32 2147483647, %v262
    %vm1721 = vcmp.le.f32.partialorder %v1720, 0.7853982
    %vm1722 = vcmp.lt.s32.totalorder %v262, 0
    %v1723 = vand.u32 %v262, 2139095040
    %v1724 = vshrl.u32 %v1723, 23
    %v1725 = vsub.s32 %v1724, 127
    %v1726 = vand.u32 2147483647, %v262
    %v1727 = vand.u32 %v1726, 8388607
    %v1728 = vor.u32 %v1727, 8388608
    %v1729 = vsub.s32 0, %v1728
    %v1730 = vadd.s32 %v1725, 1
    %vm1731 = vcmp.gt.s32.totalorder %v1730, 0
    %v1732 = vsel %vm1731, %v1730, 0
    %v1733 = vshrl.u32 %v1732, 5
    %v1734 = vand.u32 %v1732, 31
    %v1735 = vsub.s32 32, %v1734
    %v1736 = vshrl.u32 683565275, %v1735
    %v1737 = vshll.u32 683565275, %v1734
    %v1738 = vshrl.u32 2475754826, %v1735
    %v1739 = vor.u32 %v1737, %v1738
    %v1740 = vshll.u32 2475754826, %v1734
    %v1741 = vshrl.u32 2131351028, %v1735
    %v1742 = vor.u32 %v1740, %v1741
    %v1743 = vshll.u32 2131351028, %v1734
    %v1744 = vshrl.u32 2102212464, %v1735
    %v1745 = vor.u32 %v1743, %v1744
    %v1746 = vshll.u32 2102212464, %v1734
    %v1747 = vshrl.u32 920167782, %v1735
    %v1748 = vor.u32 %v1746, %v1747
    %v1749 = vshll.u32 920167782, %v1734
    %v1750 = vshrl.u32 1326507024, %v1735
    %v1751 = vor.u32 %v1749, %v1750
    %vm1752 = vcmp.lt.s32.totalorder %v1733, 1
    %vm1753 = vcmp.lt.s32.totalorder %v1733, 2
    %vm1754 = vcmp.lt.s32.totalorder %v1733, 3
    %vm1755 = vcmp.lt.s32.totalorder %v1733, 4
    %v1756 = vsel %vm1752, %v1736, %v1739
    %v1757 = vsel %vm1755, %v1745, 2102212464
    %v1758 = vsel %vm1754, %v1742, %v1757
    %v1759 = vsel %vm1753, %v1756, %v1758
    %v1760 = vsel %vm1752, %v1739, %v1742
    %v1761 = vsel %vm1755, %v1748, 920167782
    %v1762 = vsel %vm1754, %v1745, %v1761
    %v1763 = vsel %vm1753, %v1760, %v1762
    %v1764 = vsel %vm1752, %v1742, %v1745
    %v1765 = vsel %vm1755, %v1751, 1326507024
    %v1766 = vsel %vm1754, %v1748, %v1765
    %v1767 = vsel %vm1753, %v1764, %v1766
    %v1768 = vshll.u32 %v1728, 8
    %v1769 = vmul.u32.u64.compose %v1768, %v1767
    %v1770 = vextract.low.u32 %v1769
    %v1771 = vextract.high.u32 %v1769
    %v1772 = vmul.u32.u64.compose %v1768, %v1763
    %v1773 = vextract.low.u32 %v1772
    %v1774 = vextract.high.u32 %v1772
    %v1775 = vmul.u32 %v1768, %v1759
    %v1776 = vadd.s32 %v1771, %v1773
    %vm1777 = vc.u32 %v1771, %v1773
    %v1778 = vadd.s32 %v1774, 1
    %v1779 = vsel %vm1777, %v1778, %v1774
    %v1780 = vadd.s32 %v1775, %v1779
    %v1781 = vadd.s32 %v1780, 536870912
    %v1782 = vshrl.u32 %v1781, 30
    %v1783 = vshll.u32 %v1782, 30
    %v1784 = vsub.s32 %v1780, %v1783
    %vm1785 = vcmp.lt.s32.totalorder %v1784, 0
    %v1786 = vsub.s32 0, %v1784
    %v1787 = vsel %vm1785, %v1786, %v1784
    %v1788 = vclz %v1787
    %v1789 = vsub.s32 %v1788, 2
    %vm1790 = vcmp.gt.s32.totalorder 0, %v1789
    %v1791 = vsel %vm1790, 0, %v1789
    %v1792 = vsub.s32 32, %v1791
    %v1793 = vshll.u32 %v1784, %v1791
    %v1794 = vshrl.u32 %v1776, %v1792
    %v1795 = vor.u32 %v1793, %v1794
    %v1796 = vsub.s32 4294967266, %v1791
    %v1797 = vadd.s32 %v1796, 127
    %v1798 = vshll.u32 %v1797, 23
    %v1799 = vor.u32 4788187, %v1798
    %v1800 = vand.u32 2147483647, %v1799
    %v1802 = vcvt.s32.f32 %v1795
    %v1803 = vmul.f32 %v1802, %v1800
    %v1804 = vxor.u32 %v1803, 2147483648
    %v1805 = vsel %vm1722, %v1804, %v1803
    %v1806 = vsub.s32 4, %v1782
    %v1807 = vsel %vm1722, %v1806, %v1782
    %v1808 = vsel %vm1721, %v262, %v1805
    %v1809 = vsel %vm1721, 0, %v1807
    %v1810 = vcosq.f32.pop %v1808
    %v1811 = vsinq.f32.pop %v1808
    %vm1812 = vweird.f32 %v262
    %v1813 = vadd.s32 %v1809, 3
    %v1814 = vand.u32 %v1813, 3
    %vm1815 = vcmp.lt.s32.totalorder %v1814, 2
    %vm1816 = vcmp.eq.s32.totalorder %v1814, 0
    %v1817 = vxor.u32 %v1811, 2147483648
    %v1818 = vsel %vm1816, %v1810, %v1817
    %vm1819 = vcmp.eq.s32.totalorder %v1814, 2
    %v1820 = vxor.u32 %v1810, 2147483648
    %v1821 = vsel %vm1819, %v1820, %v1811
    %v1822 = vsel %vm1815, %v1818, %v1821
    %v1823 = vsel %vm1812, nan, %v1822
    %v1824 = vand.u32 2147483647, %v263
    %vm1825 = vcmp.le.f32.partialorder %v1824, 0.7853982
    %vm1826 = vcmp.lt.s32.totalorder %v263, 0
    %v1827 = vand.u32 %v263, 2139095040
    %v1828 = vshrl.u32 %v1827, 23
    %v1829 = vsub.s32 %v1828, 127
    %v1830 = vand.u32 2147483647, %v263
    %v1831 = vand.u32 %v1830, 8388607
    %v1832 = vor.u32 %v1831, 8388608
    %v1833 = vsub.s32 0, %v1832
    %v1834 = vadd.s32 %v1829, 1
    %vm1835 = vcmp.gt.s32.totalorder %v1834, 0
    %v1836 = vsel %vm1835, %v1834, 0
    %v1837 = vshrl.u32 %v1836, 5
    %v1838 = vand.u32 %v1836, 31
    %v1839 = vsub.s32 32, %v1838
    %v1840 = vshrl.u32 683565275, %v1839
    %v1841 = vshll.u32 683565275, %v1838
    %v1842 = vshrl.u32 2475754826, %v1839
    %v1843 = vor.u32 %v1841, %v1842
    %v1844 = vshll.u32 2475754826, %v1838
    %v1845 = vshrl.u32 2131351028, %v1839
    %v1846 = vor.u32 %v1844, %v1845
    %v1847 = vshll.u32 2131351028, %v1838
    %v1848 = vshrl.u32 2102212464, %v1839
    %v1849 = vor.u32 %v1847, %v1848
    %v1850 = vshll.u32 2102212464, %v1838
    %v1851 = vshrl.u32 920167782, %v1839
    %v1852 = vor.u32 %v1850, %v1851
    %v1853 = vshll.u32 920167782, %v1838
    %v1854 = vshrl.u32 1326507024, %v1839
    %v1855 = vor.u32 %v1853, %v1854
    %vm1856 = vcmp.lt.s32.totalorder %v1837, 1
    %vm1857 = vcmp.lt.s32.totalorder %v1837, 2
    %vm1858 = vcmp.lt.s32.totalorder %v1837, 3
    %vm1859 = vcmp.lt.s32.totalorder %v1837, 4
    %v1860 = vsel %vm1856, %v1840, %v1843
    %v1861 = vsel %vm1859, %v1849, 2102212464
    %v1862 = vsel %vm1858, %v1846, %v1861
    %v1863 = vsel %vm1857, %v1860, %v1862
    %v1864 = vsel %vm1856, %v1843, %v1846
    %v1865 = vsel %vm1859, %v1852, 920167782
    %v1866 = vsel %vm1858, %v1849, %v1865
    %v1867 = vsel %vm1857, %v1864, %v1866
    %v1868 = vsel %vm1856, %v1846, %v1849
    %v1869 = vsel %vm1859, %v1855, 1326507024
    %v1870 = vsel %vm1858, %v1852, %v1869
    %v1871 = vsel %vm1857, %v1868, %v1870
    %v1872 = vshll.u32 %v1832, 8
    %v1873 = vmul.u32.u64.compose %v1872, %v1871
    %v1874 = vextract.low.u32 %v1873
    %v1875 = vextract.high.u32 %v1873
    %v1876 = vmul.u32.u64.compose %v1872, %v1867
    %v1877 = vextract.low.u32 %v1876
    %v1878 = vextract.high.u32 %v1876
    %v1879 = vmul.u32 %v1872, %v1863
    %v1880 = vadd.s32 %v1875, %v1877
    %vm1881 = vc.u32 %v1875, %v1877
    %v1882 = vadd.s32 %v1878, 1
    %v1883 = vsel %vm1881, %v1882, %v1878
    %v1884 = vadd.s32 %v1879, %v1883
    %v1885 = vadd.s32 %v1884, 536870912
    %v1886 = vshrl.u32 %v1885, 30
    %v1887 = vshll.u32 %v1886, 30
    %v1888 = vsub.s32 %v1884, %v1887
    %vm1889 = vcmp.lt.s32.totalorder %v1888, 0
    %v1890 = vsub.s32 0, %v1888
    %v1891 = vsel %vm1889, %v1890, %v1888
    %v1892 = vclz %v1891
    %v1893 = vsub.s32 %v1892, 2
    %vm1894 = vcmp.gt.s32.totalorder 0, %v1893
    %v1895 = vsel %vm1894, 0, %v1893
    %v1896 = vsub.s32 32, %v1895
    %v1897 = vshll.u32 %v1888, %v1895
    %v1898 = vshrl.u32 %v1880, %v1896
    %v1899 = vor.u32 %v1897, %v1898
    %v1900 = vsub.s32 4294967266, %v1895
    %v1901 = vadd.s32 %v1900, 127
    %v1902 = vshll.u32 %v1901, 23
    %v1903 = vor.u32 4788187, %v1902
    %v1904 = vand.u32 2147483647, %v1903
    %v1906 = vcvt.s32.f32 %v1899
    %v1907 = vmul.f32 %v1906, %v1904
    %v1908 = vxor.u32 %v1907, 2147483648
    %v1909 = vsel %vm1826, %v1908, %v1907
    %v1910 = vsub.s32 4, %v1886
    %v1911 = vsel %vm1826, %v1910, %v1886
    %v1912 = vsel %vm1825, %v263, %v1909
    %v1913 = vsel %vm1825, 0, %v1911
    %v1914 = vcosq.f32.pop %v1912
    %v1915 = vsinq.f32.pop %v1912
    %vm1916 = vweird.f32 %v263
    %v1917 = vadd.s32 %v1913, 3
    %v1918 = vand.u32 %v1917, 3
    %vm1919 = vcmp.lt.s32.totalorder %v1918, 2
    %vm1920 = vcmp.eq.s32.totalorder %v1918, 0
    %v1921 = vxor.u32 %v1915, 2147483648
    %v1922 = vsel %vm1920, %v1914, %v1921
    %vm1923 = vcmp.eq.s32.totalorder %v1918, 2
    %v1924 = vxor.u32 %v1914, 2147483648
    %v1925 = vsel %vm1923, %v1924, %v1915
    %v1926 = vsel %vm1919, %v1922, %v1925
    %v1927 = vsel %vm1916, nan, %v1926
    %v1928 = vld [vmem:[%s3] sm:$0xff]
    %v1929 = vld [vmem:[%s3 + $0x8] sm:$0xff]
    %v1930 = vld [vmem:[%s3 + $0x10] sm:$0xff]
    %v1931 = vld [vmem:[%s3 + $0x18] sm:$0xff]
    %v1932 = vld [vmem:[%s3 + $0x20] sm:$0xff]
    %v1933 = vld [vmem:[%s3 + $0x28] sm:$0xff]
    %v1934 = vld [vmem:[%s3 + $0x30] sm:$0xff]
    %v1935 = vld [vmem:[%s3 + $0x38] sm:$0xff]
    %v1936 = vld [vmem:[%s4] sm:$0xff]
    %v1937 = vld [vmem:[%s4 + $0x8] sm:$0xff]
    %v1938 = vld [vmem:[%s4 + $0x10] sm:$0xff]
    %v1939 = vld [vmem:[%s4 + $0x18] sm:$0xff]
    %v1940 = vld [vmem:[%s4 + $0x20] sm:$0xff]
    %v1941 = vld [vmem:[%s4 + $0x28] sm:$0xff]
    %v1942 = vld [vmem:[%s4 + $0x30] sm:$0xff]
    %v1943 = vld [vmem:[%s4 + $0x38] sm:$0xff]
    %1945 = vset.pattern.permute.xlu0 0
    %1946 = vperm.xlu0 %1945, %v1936
    %v1947 = vpop.permute.xlu0 %1946
    %1950 = vset.pattern.permute.xlu0 0
    %1951 = vperm.xlu0 %1950, %v1937
    %v1952 = vpop.permute.xlu0 %1951
    %1955 = vset.pattern.permute.xlu0 0
    %1956 = vperm.xlu0 %1955, %v1938
    %v1957 = vpop.permute.xlu0 %1956
    %1960 = vset.pattern.permute.xlu0 0
    %1961 = vperm.xlu0 %1960, %v1939
    %v1962 = vpop.permute.xlu0 %1961
    %1965 = vset.pattern.permute.xlu0 0
    %1966 = vperm.xlu0 %1965, %v1940
    %v1967 = vpop.permute.xlu0 %1966
    %1970 = vset.pattern.permute.xlu0 0
    %1971 = vperm.xlu0 %1970, %v1941
    %v1972 = vpop.permute.xlu0 %1971
    %1975 = vset.pattern.permute.xlu0 0
    %1976 = vperm.xlu0 %1975, %v1942
    %v1977 = vpop.permute.xlu0 %1976
    %1980 = vset.pattern.permute.xlu0 0
    %1981 = vperm.xlu0 %1980, %v1943
    %v1982 = vpop.permute.xlu0 %1981
    %vm1984 = vcmask 523264
    %v1986 = vsel %vm1984, %v1928, 0
    %v1989 = vsel %vm1984, %v1929, 0
    %v1992 = vsel %vm1984, %v1930, 0
    %v1995 = vsel %vm1984, %v1931, 0
    %v1998 = vsel %vm1984, %v1932, 0
    %v2001 = vsel %vm1984, %v1933, 0
    %v2004 = vsel %vm1984, %v1934, 0
    %v2007 = vsel %vm1984, %v1935, 0
    %v2009 = vand.u32 %v471, 4294901760
    %2010 = vmatprep.subr.mxu0 %v2009
    %v2011 = vand.u32 %v367, 4294901760
    %2012 = vmatpush1.msra.mxu0 %v2011
    %v2013 = vand.u32 %v679, 4294901760
    %2014 = vmatprep.subr.mxu0 %v2013
    %v2015 = vand.u32 %v575, 4294901760
    %2016 = vmatpush1.msra.mxu0 %v2015
    %v2017 = vand.u32 %v887, 4294901760
    %2018 = vmatprep.subr.mxu0 %v2017
    %v2019 = vand.u32 %v783, 4294901760
    %2020 = vmatpush1.msra.mxu0 %v2019
    %v2021 = vand.u32 %v1095, 4294901760
    %2022 = vmatprep.subr.mxu0 %v2021
    %v2023 = vand.u32 %v991, 4294901760
    %2024 = vmatpush1.msra.mxu0 %v2023
    %v2025 = vand.u32 %v1303, 4294901760
    %2026 = vmatprep.subr.mxu0 %v2025
    %v2027 = vand.u32 %v1199, 4294901760
    %2028 = vmatpush1.msra.mxu0 %v2027
    %v2029 = vand.u32 %v1511, 4294901760
    %2030 = vmatprep.subr.mxu0 %v2029
    %v2031 = vand.u32 %v1407, 4294901760
    %2032 = vmatpush1.msra.mxu0 %v2031
    %v2033 = vand.u32 %v1719, 4294901760
    %2034 = vmatprep.subr.mxu0 %v2033
    %v2035 = vand.u32 %v1615, 4294901760
    %2036 = vmatpush1.msra.mxu0 %v2035
    %v2037 = vand.u32 %v1927, 4294901760
    %2038 = vmatprep.subr.mxu0 %v2037
    %v2039 = vand.u32 %v1823, 4294901760
    %2040 = vmatpush1.msra.mxu0 %v2039
    %2041 = vmatprep.subr.mxu0 0.0
    %2042 = vmatpush1.msra.mxu0 0.0
    %2043 = vmatprep.subr.mxu0 0.0
    %2044 = vmatpush1.msra.mxu0 0.0
    %2045 = vmatprep.subr.mxu0 0.0
    %2046 = vmatpush1.msra.mxu0 0.0
    %2047 = vmatprep.subr.mxu0 0.0
    %2048 = vmatpush1.msra.mxu0 0.0
    %2049 = vmatprep.subr.mxu0 0.0
    %2050 = vmatpush1.msra.mxu0 0.0
    %2051 = vmatprep.subr.mxu0 0.0
    %2052 = vmatpush1.msra.mxu0 0.0
    %2053 = vmatprep.subr.mxu0 0.0
    %2054 = vmatpush1.msra.mxu0 0.0
    %2055 = vmatprep.subr.mxu0 0.0
    %2056 = vmatpush1.msra.mxu0 0.0
    %2057 = vmatprep.subr.mxu0 0.0
    %2058 = vmatpush1.msra.mxu0 0.0
    %2059 = vmatprep.subr.mxu0 0.0
    %2060 = vmatpush1.msra.mxu0 0.0
    %2061 = vmatprep.subr.mxu0 0.0
    %2062 = vmatpush1.msra.mxu0 0.0
    %2063 = vmatprep.subr.mxu0 0.0
    %2064 = vmatpush1.msra.mxu0 0.0
    %2065 = vmatprep.subr.mxu0 0.0
    %2066 = vmatpush1.msra.mxu0 0.0
    %2067 = vmatprep.subr.mxu0 0.0
    %2068 = vmatpush1.msra.mxu0 0.0
    %2069 = vmatprep.subr.mxu0 0.0
    %2070 = vmatpush1.msra.mxu0 0.0
    %2071 = vmatprep.subr.mxu0 0.0
    %2072 = vmatpush1.msra.mxu0 0.0
    %2073 = vmatprep.subr.mxu0 0.0
    %2074 = vmatpush1.msra.mxu0 0.0
    %2075 = vmatprep.subr.mxu0 0.0
    %2076 = vmatpush1.msra.mxu0 0.0
    %2077 = vmatprep.subr.mxu0 0.0
    %2078 = vmatpush1.msra.mxu0 0.0
    %2079 = vmatprep.subr.mxu0 0.0
    %2080 = vmatpush1.msra.mxu0 0.0
    %2081 = vmatprep.subr.mxu0 0.0
    %2082 = vmatpush1.msra.mxu0 0.0
    %2083 = vmatprep.subr.mxu0 0.0
    %2084 = vmatpush1.msra.mxu0 0.0
    %2085 = vmatprep.subr.mxu0 0.0
    %2086 = vmatpush1.msra.mxu0 0.0
    %2087 = vmatprep.subr.mxu0 0.0
    %2088 = vmatpush1.msra.mxu0 0.0
    %2089 = vmatprep.mubr.f32.mxu0 0.0
    %v2090 = vand.u32 %v1986, 4294901760
    %v2091 = vsub.f32 %v1986, %v2090
    %v2092 = vand.u32 %v2091, 4294901760
    %v2093 = vsub.f32 %v2091, %v2092
    %v2094 = vand.u32 %v2093, 4294901760
    %2095 = vmatmul.mubr.f32.gmra.mrb[0].mxu0 %v2094
    %v2096 = vpop.f32.mrb[0].mxu0
    %v2097 = vadd.f32 %v1947, %v2096
    %v2098 = vpop.f32.mrb[0].mxu0
    %v2099 = vadd.f32 %v1947, %v2098
    %2100 = vmatprep.mubr.f32.mxu0 0.0
    %v2101 = vand.u32 %v1989, 4294901760
    %v2102 = vsub.f32 %v1989, %v2101
    %v2103 = vand.u32 %v2102, 4294901760
    %v2104 = vsub.f32 %v2102, %v2103
    %v2105 = vand.u32 %v2104, 4294901760
    %2106 = vmatmul.mubr.f32.gmra.mrb[0].mxu0 %v2105
    %v2107 = vpop.f32.mrb[0].mxu0
    %v2108 = vadd.f32 %v1952, %v2107
    %v2109 = vpop.f32.mrb[0].mxu0
    %v2110 = vadd.f32 %v1952, %v2109
    %2111 = vmatprep.mubr.f32.mxu0 0.0
    %v2112 = vand.u32 %v1992, 4294901760
    %v2113 = vsub.f32 %v1992, %v2112
    %v2114 = vand.u32 %v2113, 4294901760
    %v2115 = vsub.f32 %v2113, %v2114
    %v2116 = vand.u32 %v2115, 4294901760
    %2117 = vmatmul.mubr.f32.gmra.mrb[0].mxu0 %v2116
    %v2118 = vpop.f32.mrb[0].mxu0
    %v2119 = vadd.f32 %v1957, %v2118
    %v2120 = vpop.f32.mrb[0].mxu0
    %v2121 = vadd.f32 %v1957, %v2120
    %2122 = vmatprep.mubr.f32.mxu0 0.0
    %v2123 = vand.u32 %v1995, 4294901760
    %v2124 = vsub.f32 %v1995, %v2123
    %v2125 = vand.u32 %v2124, 4294901760
    %v2126 = vsub.f32 %v2124, %v2125
    %v2127 = vand.u32 %v2126, 4294901760
    %2128 = vmatmul.mubr.f32.gmra.mrb[0].mxu0 %v2127
    %v2129 = vpop.f32.mrb[0].mxu0
    %v2130 = vadd.f32 %v1962, %v2129
    %v2131 = vpop.f32.mrb[0].mxu0
    %v2132 = vadd.f32 %v1962, %v2131
    %2133 = vmatprep.mubr.f32.mxu0 0.0
    %v2134 = vand.u32 %v1998, 4294901760
    %v2135 = vsub.f32 %v1998, %v2134
    %v2136 = vand.u32 %v2135, 4294901760
    %v2137 = vsub.f32 %v2135, %v2136
    %v2138 = vand.u32 %v2137, 4294901760
    %2139 = vmatmul.mubr.f32.gmra.mrb[0].mxu0 %v2138
    %v2140 = vpop.f32.mrb[0].mxu0
    %v2141 = vadd.f32 %v1967, %v2140
    %v2142 = vpop.f32.mrb[0].mxu0
    %v2143 = vadd.f32 %v1967, %v2142
    %2144 = vmatprep.mubr.f32.mxu0 0.0
    %v2145 = vand.u32 %v2001, 4294901760
    %v2146 = vsub.f32 %v2001, %v2145
    %v2147 = vand.u32 %v2146, 4294901760
    %v2148 = vsub.f32 %v2146, %v2147
    %v2149 = vand.u32 %v2148, 4294901760
    %2150 = vmatmul.mubr.f32.gmra.mrb[0].mxu0 %v2149
    %v2151 = vpop.f32.mrb[0].mxu0
    %v2152 = vadd.f32 %v1972, %v2151
    %v2153 = vpop.f32.mrb[0].mxu0
    %v2154 = vadd.f32 %v1972, %v2153
    %2155 = vmatprep.mubr.f32.mxu0 0.0
    %v2156 = vand.u32 %v2004, 4294901760
    %v2157 = vsub.f32 %v2004, %v2156
    %v2158 = vand.u32 %v2157, 4294901760
    %v2159 = vsub.f32 %v2157, %v2158
    %v2160 = vand.u32 %v2159, 4294901760
    %2161 = vmatmul.mubr.f32.gmra.mrb[0].mxu0 %v2160
    %v2162 = vpop.f32.mrb[0].mxu0
    %v2163 = vadd.f32 %v1977, %v2162
    %v2164 = vpop.f32.mrb[0].mxu0
    %v2165 = vadd.f32 %v1977, %v2164
    %2166 = vmatprep.mubr.f32.mxu0 0.0
    %v2167 = vand.u32 %v2007, 4294901760
    %v2168 = vsub.f32 %v2007, %v2167
    %v2169 = vand.u32 %v2168, 4294901760
    %v2170 = vsub.f32 %v2168, %v2169
    %v2171 = vand.u32 %v2170, 4294901760
    %2172 = vmatmul.mubr.f32.gmra.mrb[0].mxu0 %v2171
    %v2173 = vpop.f32.mrb[0].mxu0
    %v2174 = vadd.f32 %v1982, %v2173
    %v2175 = vpop.f32.mrb[0].mxu0
    %v2176 = vadd.f32 %v1982, %v2175
    %2177 = vdwg.mxu0
    %v2178 = vand.u32 %v471, 4294901760
    %v2179 = vsub.f32 %v471, %v2178
    %v2180 = vand.u32 %v2179, 4294901760
    %v2181 = vsub.f32 %v2179, %v2180
    %v2182 = vand.u32 %v2181, 4294901760
    %2183 = vmatprep.subr.mxu0 %v2182
    %v2184 = vand.u32 %v367, 4294901760
    %v2185 = vsub.f32 %v367, %v2184
    %v2186 = vand.u32 %v2185, 4294901760
    %v2187 = vsub.f32 %v2185, %v2186
    %v2188 = vand.u32 %v2187, 4294901760
    %2189 = vmatpush1.msra.mxu0 %v2188
    %v2190 = vand.u32 %v679, 4294901760
    %v2191 = vsub.f32 %v679, %v2190
    %v2192 = vand.u32 %v2191, 4294901760
    %v2193 = vsub.f32 %v2191, %v2192
    %v2194 = vand.u32 %v2193, 4294901760
    %2195 = vmatprep.subr.mxu0 %v2194
    %v2196 = vand.u32 %v575, 4294901760
    %v2197 = vsub.f32 %v575, %v2196
    %v2198 = vand.u32 %v2197, 4294901760
    %v2199 = vsub.f32 %v2197, %v2198
    %v2200 = vand.u32 %v2199, 4294901760
    %2201 = vmatpush1.msra.mxu0 %v2200
    %v2202 = vand.u32 %v887, 4294901760
    %v2203 = vsub.f32 %v887, %v2202
    %v2204 = vand.u32 %v2203, 4294901760
    %v2205 = vsub.f32 %v2203, %v2204
    %v2206 = vand.u32 %v2205, 4294901760
    %2207 = vmatprep.subr.mxu0 %v2206
    %v2208 = vand.u32 %v783, 4294901760
    %v2209 = vsub.f32 %v783, %v2208
    %v2210 = vand.u32 %v2209, 4294901760
    %v2211 = vsub.f32 %v2209, %v2210
    %v2212 = vand.u32 %v2211, 4294901760
    %2213 = vmatpush1.msra.mxu0 %v2212
    %v2214 = vand.u32 %v1095, 4294901760
    %v2215 = vsub.f32 %v1095, %v2214
    %v2216 = vand.u32 %v2215, 4294901760
    %v2217 = vsub.f32 %v2215, %v2216
    %v2218 = vand.u32 %v2217, 4294901760
    %2219 = vmatprep.subr.mxu0 %v2218
    %v2220 = vand.u32 %v991, 4294901760
    %v2221 = vsub.f32 %v991, %v2220
    %v2222 = vand.u32 %v2221, 4294901760
    %v2223 = vsub.f32 %v2221, %v2222
    %v2224 = vand.u32 %v2223, 4294901760
    %2225 = vmatpush1.msra.mxu0 %v2224
    %v2226 = vand.u32 %v1303, 4294901760
    %v2227 = vsub.f32 %v1303, %v2226
    %v2228 = vand.u32 %v2227, 4294901760
    %v2229 = vsub.f32 %v2227, %v2228
    %v2230 = vand.u32 %v2229, 4294901760
    %2231 = vmatprep.subr.mxu0 %v2230
    %v2232 = vand.u32 %v1199, 4294901760
    %v2233 = vsub.f32 %v1199, %v2232
    %v2234 = vand.u32 %v2233, 4294901760
    %v2235 = vsub.f32 %v2233, %v2234
    %v2236 = vand.u32 %v2235, 4294901760
    %2237 = vmatpush1.msra.mxu0 %v2236
    %v2238 = vand.u32 %v1511, 4294901760
    %v2239 = vsub.f32 %v1511, %v2238
    %v2240 = vand.u32 %v2239, 4294901760
    %v2241 = vsub.f32 %v2239, %v2240
    %v2242 = vand.u32 %v2241, 4294901760
    %2243 = vmatprep.subr.mxu0 %v2242
    %v2244 = vand.u32 %v1407, 4294901760
    %v2245 = vsub.f32 %v1407, %v2244
    %v2246 = vand.u32 %v2245, 4294901760
    %v2247 = vsub.f32 %v2245, %v2246
    %v2248 = vand.u32 %v2247, 4294901760
    %2249 = vmatpush1.msra.mxu0 %v2248
    %v2250 = vand.u32 %v1719, 4294901760
    %v2251 = vsub.f32 %v1719, %v2250
    %v2252 = vand.u32 %v2251, 4294901760
    %v2253 = vsub.f32 %v2251, %v2252
    %v2254 = vand.u32 %v2253, 4294901760
    %2255 = vmatprep.subr.mxu0 %v2254
    %v2256 = vand.u32 %v1615, 4294901760
    %v2257 = vsub.f32 %v1615, %v2256
    %v2258 = vand.u32 %v2257, 4294901760
    %v2259 = vsub.f32 %v2257, %v2258
    %v2260 = vand.u32 %v2259, 4294901760
    %2261 = vmatpush1.msra.mxu0 %v2260
    %v2262 = vand.u32 %v1927, 4294901760
    %v2263 = vsub.f32 %v1927, %v2262
    %v2264 = vand.u32 %v2263, 4294901760
    %v2265 = vsub.f32 %v2263, %v2264
    %v2266 = vand.u32 %v2265, 4294901760
    %2267 = vmatprep.subr.mxu0 %v2266
    %v2268 = vand.u32 %v1823, 4294901760
    %v2269 = vsub.f32 %v1823, %v2268
    %v2270 = vand.u32 %v2269, 4294901760
    %v2271 = vsub.f32 %v2269, %v2270
    %v2272 = vand.u32 %v2271, 4294901760
    %2273 = vmatpush1.msra.mxu0 %v2272
    %2274 = vmatprep.subr.mxu0 0.0
    %2275 = vmatpush1.msra.mxu0 0.0
    %2276 = vmatprep.subr.mxu0 0.0
    %2277 = vmatpush1.msra.mxu0 0.0
    %2278 = vmatprep.subr.mxu0 0.0
    %2279 = vmatpush1.msra.mxu0 0.0
    %2280 = vmatprep.subr.mxu0 0.0
    %2281 = vmatpush1.msra.mxu0 0.0
    %2282 = vmatprep.subr.mxu0 0.0
    %2283 = vmatpush1.msra.mxu0 0.0
    %2284 = vmatprep.subr.mxu0 0.0
    %2285 = vmatpush1.msra.mxu0 0.0
    %2286 = vmatprep.subr.mxu0 0.0
    %2287 = vmatpush1.msra.mxu0 0.0
    %2288 = vmatprep.subr.mxu0 0.0
    %2289 = vmatpush1.msra.mxu0 0.0
    %2290 = vmatprep.subr.mxu0 0.0
    %2291 = vmatpush1.msra.mxu0 0.0
    %2292 = vmatprep.subr.mxu0 0.0
    %2293 = vmatpush1.msra.mxu0 0.0
    %2294 = vmatprep.subr.mxu0 0.0
    %2295 = vmatpush1.msra.mxu0 0.0
    %2296 = vmatprep.subr.mxu0 0.0
    %2297 = vmatpush1.msra.mxu0 0.0
    %2298 = vmatprep.subr.mxu0 0.0
    %2299 = vmatpush1.msra.mxu0 0.0
    %2300 = vmatprep.subr.mxu0 0.0
    %2301 = vmatpush1.msra.mxu0 0.0
    %2302 = vmatprep.subr.mxu0 0.0
    %2303 = vmatpush1.msra.mxu0 0.0
    %2304 = vmatprep.subr.mxu0 0.0
    %2305 = vmatpush1.msra.mxu0 0.0
    %2306 = vmatprep.subr.mxu0 0.0
    %2307 = vmatpush1.msra.mxu0 0.0
    %2308 = vmatprep.subr.mxu0 0.0
    %2309 = vmatpush1.msra.mxu0 0.0
    %2310 = vmatprep.subr.mxu0 0.0
    %2311 = vmatpush1.msra.mxu0 0.0
    %2312 = vmatprep.subr.mxu0 0.0
    %2313 = vmatpush1.msra.mxu0 0.0
    %2314 = vmatprep.subr.mxu0 0.0
    %2315 = vmatpush1.msra.mxu0 0.0
    %2316 = vmatprep.subr.mxu0 0.0
    %2317 = vmatpush1.msra.mxu0 0.0
    %2318 = vmatprep.subr.mxu0 0.0
    %2319 = vmatpush1.msra.mxu0 0.0
    %2320 = vmatprep.subr.mxu0 0.0
    %2321 = vmatpush1.msra.mxu0 0.0
    %2322 = vmatprep.mubr.f32.mxu0 0.0
    %v2323 = vand.u32 %v1986, 4294901760
    %2324 = vmatmul.mubr.f32.gmra.mrb[0].mxu0 %v2323
    %v2325 = vpop.f32.mrb[0].mxu0
    %v2326 = vadd.f32 %v2097, %v2325
    %v2327 = vpop.f32.mrb[0].mxu0
    %v2328 = vadd.f32 %v2099, %v2327
    %2329 = vmatprep.mubr.f32.mxu0 0.0
    %v2330 = vand.u32 %v1989, 4294901760
    %2331 = vmatmul.mubr.f32.gmra.mrb[0].mxu0 %v2330
    %v2332 = vpop.f32.mrb[0].mxu0
    %v2333 = vadd.f32 %v2108, %v2332
    %v2334 = vpop.f32.mrb[0].mxu0
    %v2335 = vadd.f32 %v2110, %v2334
    %2336 = vmatprep.mubr.f32.mxu0 0.0
    %v2337 = vand.u32 %v1992, 4294901760
    %2338 = vmatmul.mubr.f32.gmra.mrb[0].mxu0 %v2337
    %v2339 = vpop.f32.mrb[0].mxu0
    %v2340 = vadd.f32 %v2119, %v2339
    %v2341 = vpop.f32.mrb[0].mxu0
    %v2342 = vadd.f32 %v2121, %v2341
    %2343 = vmatprep.mubr.f32.mxu0 0.0
    %v2344 = vand.u32 %v1995, 4294901760
    %2345 = vmatmul.mubr.f32.gmra.mrb[0].mxu0 %v2344
    %v2346 = vpop.f32.mrb[0].mxu0
    %v2347 = vadd.f32 %v2130, %v2346
    %v2348 = vpop.f32.mrb[0].mxu0
    %v2349 = vadd.f32 %v2132, %v2348
    %2350 = vmatprep.mubr.f32.mxu0 0.0
    %v2351 = vand.u32 %v1998, 4294901760
    %2352 = vmatmul.mubr.f32.gmra.mrb[0].mxu0 %v2351
    %v2353 = vpop.f32.mrb[0].mxu0
    %v2354 = vadd.f32 %v2141, %v2353
    %v2355 = vpop.f32.mrb[0].mxu0
    %v2356 = vadd.f32 %v2143, %v2355
    %2357 = vmatprep.mubr.f32.mxu0 0.0
    %v2358 = vand.u32 %v2001, 4294901760
    %2359 = vmatmul.mubr.f32.gmra.mrb[0].mxu0 %v2358
    %v2360 = vpop.f32.mrb[0].mxu0
    %v2361 = vadd.f32 %v2152, %v2360
    %v2362 = vpop.f32.mrb[0].mxu0
    %v2363 = vadd.f32 %v2154, %v2362
    %2364 = vmatprep.mubr.f32.mxu0 0.0
    %v2365 = vand.u32 %v2004, 4294901760
    %2366 = vmatmul.mubr.f32.gmra.mrb[0].mxu0 %v2365
    %v2367 = vpop.f32.mrb[0].mxu0
    %v2368 = vadd.f32 %v2163, %v2367
    %v2369 = vpop.f32.mrb[0].mxu0
    %v2370 = vadd.f32 %v2165, %v2369
    %2371 = vmatprep.mubr.f32.mxu0 0.0
    %v2372 = vand.u32 %v2007, 4294901760
    %2373 = vmatmul.mubr.f32.gmra.mrb[0].mxu0 %v2372
    %v2374 = vpop.f32.mrb[0].mxu0
    %v2375 = vadd.f32 %v2174, %v2374
    %v2376 = vpop.f32.mrb[0].mxu0
    %v2377 = vadd.f32 %v2176, %v2376
    %2378 = vdwg.mxu0
    %v2379 = vand.u32 %v471, 4294901760
    %v2380 = vsub.f32 %v471, %v2379
    %2381 = vmatprep.subr.mxu0 %v2380
    %v2382 = vand.u32 %v367, 4294901760
    %v2383 = vsub.f32 %v367, %v2382
    %2384 = vmatpush1.msra.mxu0 %v2383
    %v2385 = vand.u32 %v679, 4294901760
    %v2386 = vsub.f32 %v679, %v2385
    %2387 = vmatprep.subr.mxu0 %v2386
    %v2388 = vand.u32 %v575, 4294901760
    %v2389 = vsub.f32 %v575, %v2388
    %2390 = vmatpush1.msra.mxu0 %v2389
    %v2391 = vand.u32 %v887, 4294901760
    %v2392 = vsub.f32 %v887, %v2391
    %2393 = vmatprep.subr.mxu0 %v2392
    %v2394 = vand.u32 %v783, 4294901760
    %v2395 = vsub.f32 %v783, %v2394
    %2396 = vmatpush1.msra.mxu0 %v2395
    %v2397 = vand.u32 %v1095, 4294901760
    %v2398 = vsub.f32 %v1095, %v2397
    %2399 = vmatprep.subr.mxu0 %v2398
    %v2400 = vand.u32 %v991, 4294901760
    %v2401 = vsub.f32 %v991, %v2400
    %2402 = vmatpush1.msra.mxu0 %v2401
    %v2403 = vand.u32 %v1303, 4294901760
    %v2404 = vsub.f32 %v1303, %v2403
    %2405 = vmatprep.subr.mxu0 %v2404
    %v2406 = vand.u32 %v1199, 4294901760
    %v2407 = vsub.f32 %v1199, %v2406
    %2408 = vmatpush1.msra.mxu0 %v2407
    %v2409 = vand.u32 %v1511, 4294901760
    %v2410 = vsub.f32 %v1511, %v2409
    %2411 = vmatprep.subr.mxu0 %v2410
    %v2412 = vand.u32 %v1407, 4294901760
    %v2413 = vsub.f32 %v1407, %v2412
    %2414 = vmatpush1.msra.mxu0 %v2413
    %v2415 = vand.u32 %v1719, 4294901760
    %v2416 = vsub.f32 %v1719, %v2415
    %2417 = vmatprep.subr.mxu0 %v2416
    %v2418 = vand.u32 %v1615, 4294901760
    %v2419 = vsub.f32 %v1615, %v2418
    %2420 = vmatpush1.msra.mxu0 %v2419
    %v2421 = vand.u32 %v1927, 4294901760
    %v2422 = vsub.f32 %v1927, %v2421
    %2423 = vmatprep.subr.mxu0 %v2422
    %v2424 = vand.u32 %v1823, 4294901760
    %v2425 = vsub.f32 %v1823, %v2424
    %2426 = vmatpush1.msra.mxu0 %v2425
    %2427 = vmatprep.subr.mxu0 0.0
    %2428 = vmatpush1.msra.mxu0 0.0
    %2429 = vmatprep.subr.mxu0 0.0
    %2430 = vmatpush1.msra.mxu0 0.0
    %2431 = vmatprep.subr.mxu0 0.0
    %2432 = vmatpush1.msra.mxu0 0.0
    %2433 = vmatprep.subr.mxu0 0.0
    %2434 = vmatpush1.msra.mxu0 0.0
    %2435 = vmatprep.subr.mxu0 0.0
    %2436 = vmatpush1.msra.mxu0 0.0
    %2437 = vmatprep.subr.mxu0 0.0
    %2438 = vmatpush1.msra.mxu0 0.0
    %2439 = vmatprep.subr.mxu0 0.0
    %2440 = vmatpush1.msra.mxu0 0.0
    %2441 = vmatprep.subr.mxu0 0.0
    %2442 = vmatpush1.msra.mxu0 0.0
    %2443 = vmatprep.subr.mxu0 0.0
    %2444 = vmatpush1.msra.mxu0 0.0
    %2445 = vmatprep.subr.mxu0 0.0
    %2446 = vmatpush1.msra.mxu0 0.0
    %2447 = vmatprep.subr.mxu0 0.0
    %2448 = vmatpush1.msra.mxu0 0.0
    %2449 = vmatprep.subr.mxu0 0.0
    %2450 = vmatpush1.msra.mxu0 0.0
    %2451 = vmatprep.subr.mxu0 0.0
    %2452 = vmatpush1.msra.mxu0 0.0
    %2453 = vmatprep.subr.mxu0 0.0
    %2454 = vmatpush1.msra.mxu0 0.0
    %2455 = vmatprep.subr.mxu0 0.0
    %2456 = vmatpush1.msra.mxu0 0.0
    %2457 = vmatprep.subr.mxu0 0.0
    %2458 = vmatpush1.msra.mxu0 0.0
    %2459 = vmatprep.subr.mxu0 0.0
    %2460 = vmatpush1.msra.mxu0 0.0
    %2461 = vmatprep.subr.mxu0 0.0
    %2462 = vmatpush1.msra.mxu0 0.0
    %2463 = vmatprep.subr.mxu0 0.0
    %2464 = vmatpush1.msra.mxu0 0.0
    %2465 = vmatprep.subr.mxu0 0.0
    %2466 = vmatpush1.msra.mxu0 0.0
    %2467 = vmatprep.subr.mxu0 0.0
    %2468 = vmatpush1.msra.mxu0 0.0
    %2469 = vmatprep.subr.mxu0 0.0
    %2470 = vmatpush1.msra.mxu0 0.0
    %2471 = vmatprep.subr.mxu0 0.0
    %2472 = vmatpush1.msra.mxu0 0.0
    %2473 = vmatprep.subr.mxu0 0.0
    %2474 = vmatpush1.msra.mxu0 0.0
    %2475 = vmatprep.mubr.f32.mxu0 0.0
    %v2476 = vand.u32 %v1986, 4294901760
    %v2477 = vsub.f32 %v1986, %v2476
    %2478 = vmatmul.mubr.f32.gmra.mrb[0].mxu0 %v2477
    %v2479 = vpop.f32.mrb[0].mxu0
    %v2480 = vadd.f32 %v2326, %v2479
    %v2481 = vpop.f32.mrb[0].mxu0
    %v2482 = vadd.f32 %v2328, %v2481
    %2483 = vmatprep.mubr.f32.mxu0 0.0
    %v2484 = vand.u32 %v1989, 4294901760
    %v2485 = vsub.f32 %v1989, %v2484
    %2486 = vmatmul.mubr.f32.gmra.mrb[0].mxu0 %v2485
    %v2487 = vpop.f32.mrb[0].mxu0
    %v2488 = vadd.f32 %v2333, %v2487
    %v2489 = vpop.f32.mrb[0].mxu0
    %v2490 = vadd.f32 %v2335, %v2489
    %2491 = vmatprep.mubr.f32.mxu0 0.0
    %v2492 = vand.u32 %v1992, 4294901760
    %v2493 = vsub.f32 %v1992, %v2492
    %2494 = vmatmul.mubr.f32.gmra.mrb[0].mxu0 %v2493
    %v2495 = vpop.f32.mrb[0].mxu0
    %v2496 = vadd.f32 %v2340, %v2495
    %v2497 = vpop.f32.mrb[0].mxu0
    %v2498 = vadd.f32 %v2342, %v2497
    %2499 = vmatprep.mubr.f32.mxu0 0.0
    %v2500 = vand.u32 %v1995, 4294901760
    %v2501 = vsub.f32 %v1995, %v2500
    %2502 = vmatmul.mubr.f32.gmra.mrb[0].mxu0 %v2501
    %v2503 = vpop.f32.mrb[0].mxu0
    %v2504 = vadd.f32 %v2347, %v2503
    %v2505 = vpop.f32.mrb[0].mxu0
    %v2506 = vadd.f32 %v2349, %v2505
    %2507 = vmatprep.mubr.f32.mxu0 0.0
    %v2508 = vand.u32 %v1998, 4294901760
    %v2509 = vsub.f32 %v1998, %v2508
    %2510 = vmatmul.mubr.f32.gmra.mrb[0].mxu0 %v2509
    %v2511 = vpop.f32.mrb[0].mxu0
    %v2512 = vadd.f32 %v2354, %v2511
    %v2513 = vpop.f32.mrb[0].mxu0
    %v2514 = vadd.f32 %v2356, %v2513
    %2515 = vmatprep.mubr.f32.mxu0 0.0
    %v2516 = vand.u32 %v2001, 4294901760
    %v2517 = vsub.f32 %v2001, %v2516
    %2518 = vmatmul.mubr.f32.gmra.mrb[0].mxu0 %v2517
    %v2519 = vpop.f32.mrb[0].mxu0
    %v2520 = vadd.f32 %v2361, %v2519
    %v2521 = vpop.f32.mrb[0].mxu0
    %v2522 = vadd.f32 %v2363, %v2521
    %2523 = vmatprep.mubr.f32.mxu0 0.0
    %v2524 = vand.u32 %v2004, 4294901760
    %v2525 = vsub.f32 %v2004, %v2524
    %2526 = vmatmul.mubr.f32.gmra.mrb[0].mxu0 %v2525
    %v2527 = vpop.f32.mrb[0].mxu0
    %v2528 = vadd.f32 %v2368, %v2527
    %v2529 = vpop.f32.mrb[0].mxu0
    %v2530 = vadd.f32 %v2370, %v2529
    %2531 = vmatprep.mubr.f32.mxu0 0.0
    %v2532 = vand.u32 %v2007, 4294901760
    %v2533 = vsub.f32 %v2007, %v2532
    %2534 = vmatmul.mubr.f32.gmra.mrb[0].mxu0 %v2533
    %v2535 = vpop.f32.mrb[0].mxu0
    %v2536 = vadd.f32 %v2375, %v2535
    %v2537 = vpop.f32.mrb[0].mxu0
    %v2538 = vadd.f32 %v2377, %v2537
    %2539 = vdwg.mxu0
    %v2540 = vand.u32 %v471, 4294901760
    %2541 = vmatprep.subr.mxu0 %v2540
    %v2542 = vand.u32 %v367, 4294901760
    %2543 = vmatpush1.msra.mxu0 %v2542
    %v2544 = vand.u32 %v679, 4294901760
    %2545 = vmatprep.subr.mxu0 %v2544
    %v2546 = vand.u32 %v575, 4294901760
    %2547 = vmatpush1.msra.mxu0 %v2546
    %v2548 = vand.u32 %v887, 4294901760
    %2549 = vmatprep.subr.mxu0 %v2548
    %v2550 = vand.u32 %v783, 4294901760
    %2551 = vmatpush1.msra.mxu0 %v2550
    %v2552 = vand.u32 %v1095, 4294901760
    %2553 = vmatprep.subr.mxu0 %v2552
    %v2554 = vand.u32 %v991, 4294901760
    %2555 = vmatpush1.msra.mxu0 %v2554
    %v2556 = vand.u32 %v1303, 4294901760
    %2557 = vmatprep.subr.mxu0 %v2556
    %v2558 = vand.u32 %v1199, 4294901760
    %2559 = vmatpush1.msra.mxu0 %v2558
    %v2560 = vand.u32 %v1511, 4294901760
    %2561 = vmatprep.subr.mxu0 %v2560
    %v2562 = vand.u32 %v1407, 4294901760
    %2563 = vmatpush1.msra.mxu0 %v2562
    %v2564 = vand.u32 %v1719, 4294901760
    %2565 = vmatprep.subr.mxu0 %v2564
    %v2566 = vand.u32 %v1615, 4294901760
    %2567 = vmatpush1.msra.mxu0 %v2566
    %v2568 = vand.u32 %v1927, 4294901760
    %2569 = vmatprep.subr.mxu0 %v2568
    %v2570 = vand.u32 %v1823, 4294901760
    %2571 = vmatpush1.msra.mxu0 %v2570
    %2572 = vmatprep.subr.mxu0 0.0
    %2573 = vmatpush1.msra.mxu0 0.0
    %2574 = vmatprep.subr.mxu0 0.0
    %2575 = vmatpush1.msra.mxu0 0.0
    %2576 = vmatprep.subr.mxu0 0.0
    %2577 = vmatpush1.msra.mxu0 0.0
    %2578 = vmatprep.subr.mxu0 0.0
    %2579 = vmatpush1.msra.mxu0 0.0
    %2580 = vmatprep.subr.mxu0 0.0
    %2581 = vmatpush1.msra.mxu0 0.0
    %2582 = vmatprep.subr.mxu0 0.0
    %2583 = vmatpush1.msra.mxu0 0.0
    %2584 = vmatprep.subr.mxu0 0.0
    %2585 = vmatpush1.msra.mxu0 0.0
    %2586 = vmatprep.subr.mxu0 0.0
    %2587 = vmatpush1.msra.mxu0 0.0
    %2588 = vmatprep.subr.mxu0 0.0
    %2589 = vmatpush1.msra.mxu0 0.0
    %2590 = vmatprep.subr.mxu0 0.0
    %2591 = vmatpush1.msra.mxu0 0.0
    %2592 = vmatprep.subr.mxu0 0.0
    %2593 = vmatpush1.msra.mxu0 0.0
    %2594 = vmatprep.subr.mxu0 0.0
    %2595 = vmatpush1.msra.mxu0 0.0
    %2596 = vmatprep.subr.mxu0 0.0
    %2597 = vmatpush1.msra.mxu0 0.0
    %2598 = vmatprep.subr.mxu0 0.0
    %2599 = vmatpush1.msra.mxu0 0.0
    %2600 = vmatprep.subr.mxu0 0.0
    %2601 = vmatpush1.msra.mxu0 0.0
    %2602 = vmatprep.subr.mxu0 0.0
    %2603 = vmatpush1.msra.mxu0 0.0
    %2604 = vmatprep.subr.mxu0 0.0
    %2605 = vmatpush1.msra.mxu0 0.0
    %2606 = vmatprep.subr.mxu0 0.0
    %2607 = vmatpush1.msra.mxu0 0.0
    %2608 = vmatprep.subr.mxu0 0.0
    %2609 = vmatpush1.msra.mxu0 0.0
    %2610 = vmatprep.subr.mxu0 0.0
    %2611 = vmatpush1.msra.mxu0 0.0
    %2612 = vmatprep.subr.mxu0 0.0
    %2613 = vmatpush1.msra.mxu0 0.0
    %2614 = vmatprep.subr.mxu0 0.0
    %2615 = vmatpush1.msra.mxu0 0.0
    %2616 = vmatprep.subr.mxu0 0.0
    %2617 = vmatpush1.msra.mxu0 0.0
    %2618 = vmatprep.subr.mxu0 0.0
    %2619 = vmatpush1.msra.mxu0 0.0
    %2620 = vmatprep.mubr.f32.mxu0 0.0
    %v2621 = vand.u32 %v1986, 4294901760
    %v2622 = vsub.f32 %v1986, %v2621
    %v2623 = vand.u32 %v2622, 4294901760
    %2624 = vmatmul.mubr.f32.gmra.mrb[0].mxu0 %v2623
    %v2625 = vpop.f32.mrb[0].mxu0
    %v2626 = vadd.f32 %v2480, %v2625
    %v2627 = vpop.f32.mrb[0].mxu0
    %v2628 = vadd.f32 %v2482, %v2627
    %2629 = vmatprep.mubr.f32.mxu0 0.0
    %v2630 = vand.u32 %v1989, 4294901760
    %v2631 = vsub.f32 %v1989, %v2630
    %v2632 = vand.u32 %v2631, 4294901760
    %2633 = vmatmul.mubr.f32.gmra.mrb[0].mxu0 %v2632
    %v2634 = vpop.f32.mrb[0].mxu0
    %v2635 = vadd.f32 %v2488, %v2634
    %v2636 = vpop.f32.mrb[0].mxu0
    %v2637 = vadd.f32 %v2490, %v2636
    %2638 = vmatprep.mubr.f32.mxu0 0.0
    %v2639 = vand.u32 %v1992, 4294901760
    %v2640 = vsub.f32 %v1992, %v2639
    %v2641 = vand.u32 %v2640, 4294901760
    %2642 = vmatmul.mubr.f32.gmra.mrb[0].mxu0 %v2641
    %v2643 = vpop.f32.mrb[0].mxu0
    %v2644 = vadd.f32 %v2496, %v2643
    %v2645 = vpop.f32.mrb[0].mxu0
    %v2646 = vadd.f32 %v2498, %v2645
    %2647 = vmatprep.mubr.f32.mxu0 0.0
    %v2648 = vand.u32 %v1995, 4294901760
    %v2649 = vsub.f32 %v1995, %v2648
    %v2650 = vand.u32 %v2649, 4294901760
    %2651 = vmatmul.mubr.f32.gmra.mrb[0].mxu0 %v2650
    %v2652 = vpop.f32.mrb[0].mxu0
    %v2653 = vadd.f32 %v2504, %v2652
    %v2654 = vpop.f32.mrb[0].mxu0
    %v2655 = vadd.f32 %v2506, %v2654
    %2656 = vmatprep.mubr.f32.mxu0 0.0
    %v2657 = vand.u32 %v1998, 4294901760
    %v2658 = vsub.f32 %v1998, %v2657
    %v2659 = vand.u32 %v2658, 4294901760
    %2660 = vmatmul.mubr.f32.gmra.mrb[0].mxu0 %v2659
    %v2661 = vpop.f32.mrb[0].mxu0
    %v2662 = vadd.f32 %v2512, %v2661
    %v2663 = vpop.f32.mrb[0].mxu0
    %v2664 = vadd.f32 %v2514, %v2663
    %2665 = vmatprep.mubr.f32.mxu0 0.0
    %v2666 = vand.u32 %v2001, 4294901760
    %v2667 = vsub.f32 %v2001, %v2666
    %v2668 = vand.u32 %v2667, 4294901760
    %2669 = vmatmul.mubr.f32.gmra.mrb[0].mxu0 %v2668
    %v2670 = vpop.f32.mrb[0].mxu0
    %v2671 = vadd.f32 %v2520, %v2670
    %v2672 = vpop.f32.mrb[0].mxu0
    %v2673 = vadd.f32 %v2522, %v2672
    %2674 = vmatprep.mubr.f32.mxu0 0.0
    %v2675 = vand.u32 %v2004, 4294901760
    %v2676 = vsub.f32 %v2004, %v2675
    %v2677 = vand.u32 %v2676, 4294901760
    %2678 = vmatmul.mubr.f32.gmra.mrb[0].mxu0 %v2677
    %v2679 = vpop.f32.mrb[0].mxu0
    %v2680 = vadd.f32 %v2528, %v2679
    %v2681 = vpop.f32.mrb[0].mxu0
    %v2682 = vadd.f32 %v2530, %v2681
    %2683 = vmatprep.mubr.f32.mxu0 0.0
    %v2684 = vand.u32 %v2007, 4294901760
    %v2685 = vsub.f32 %v2007, %v2684
    %v2686 = vand.u32 %v2685, 4294901760
    %2687 = vmatmul.mubr.f32.gmra.mrb[0].mxu0 %v2686
    %v2688 = vpop.f32.mrb[0].mxu0
    %v2689 = vadd.f32 %v2536, %v2688
    %v2690 = vpop.f32.mrb[0].mxu0
    %v2691 = vadd.f32 %v2538, %v2690
    %2692 = vdwg.mxu0
    %v2693 = vand.u32 %v471, 4294901760
    %v2694 = vsub.f32 %v471, %v2693
    %v2695 = vand.u32 %v2694, 4294901760
    %2696 = vmatprep.subr.mxu0 %v2695
    %v2697 = vand.u32 %v367, 4294901760
    %v2698 = vsub.f32 %v367, %v2697
    %v2699 = vand.u32 %v2698, 4294901760
    %2700 = vmatpush1.msra.mxu0 %v2699
    %v2701 = vand.u32 %v679, 4294901760
    %v2702 = vsub.f32 %v679, %v2701
    %v2703 = vand.u32 %v2702, 4294901760
    %2704 = vmatprep.subr.mxu0 %v2703
    %v2705 = vand.u32 %v575, 4294901760
    %v2706 = vsub.f32 %v575, %v2705
    %v2707 = vand.u32 %v2706, 4294901760
    %2708 = vmatpush1.msra.mxu0 %v2707
    %v2709 = vand.u32 %v887, 4294901760
    %v2710 = vsub.f32 %v887, %v2709
    %v2711 = vand.u32 %v2710, 4294901760
    %2712 = vmatprep.subr.mxu0 %v2711
    %v2713 = vand.u32 %v783, 4294901760
    %v2714 = vsub.f32 %v783, %v2713
    %v2715 = vand.u32 %v2714, 4294901760
    %2716 = vmatpush1.msra.mxu0 %v2715
    %v2717 = vand.u32 %v1095, 4294901760
    %v2718 = vsub.f32 %v1095, %v2717
    %v2719 = vand.u32 %v2718, 4294901760
    %2720 = vmatprep.subr.mxu0 %v2719
    %v2721 = vand.u32 %v991, 4294901760
    %v2722 = vsub.f32 %v991, %v2721
    %v2723 = vand.u32 %v2722, 4294901760
    %2724 = vmatpush1.msra.mxu0 %v2723
    %v2725 = vand.u32 %v1303, 4294901760
    %v2726 = vsub.f32 %v1303, %v2725
    %v2727 = vand.u32 %v2726, 4294901760
    %2728 = vmatprep.subr.mxu0 %v2727
    %v2729 = vand.u32 %v1199, 4294901760
    %v2730 = vsub.f32 %v1199, %v2729
    %v2731 = vand.u32 %v2730, 4294901760
    %2732 = vmatpush1.msra.mxu0 %v2731
    %v2733 = vand.u32 %v1511, 4294901760
    %v2734 = vsub.f32 %v1511, %v2733
    %v2735 = vand.u32 %v2734, 4294901760
    %2736 = vmatprep.subr.mxu0 %v2735
    %v2737 = vand.u32 %v1407, 4294901760
    %v2738 = vsub.f32 %v1407, %v2737
    %v2739 = vand.u32 %v2738, 4294901760
    %2740 = vmatpush1.msra.mxu0 %v2739
    %v2741 = vand.u32 %v1719, 4294901760
    %v2742 = vsub.f32 %v1719, %v2741
    %v2743 = vand.u32 %v2742, 4294901760
    %2744 = vmatprep.subr.mxu0 %v2743
    %v2745 = vand.u32 %v1615, 4294901760
    %v2746 = vsub.f32 %v1615, %v2745
    %v2747 = vand.u32 %v2746, 4294901760
    %2748 = vmatpush1.msra.mxu0 %v2747
    %v2749 = vand.u32 %v1927, 4294901760
    %v2750 = vsub.f32 %v1927, %v2749
    %v2751 = vand.u32 %v2750, 4294901760
    %2752 = vmatprep.subr.mxu0 %v2751
    %v2753 = vand.u32 %v1823, 4294901760
    %v2754 = vsub.f32 %v1823, %v2753
    %v2755 = vand.u32 %v2754, 4294901760
    %2756 = vmatpush1.msra.mxu0 %v2755
    %2757 = vmatprep.subr.mxu0 0.0
    %2758 = vmatpush1.msra.mxu0 0.0
    %2759 = vmatprep.subr.mxu0 0.0
    %2760 = vmatpush1.msra.mxu0 0.0
    %2761 = vmatprep.subr.mxu0 0.0
    %2762 = vmatpush1.msra.mxu0 0.0
    %2763 = vmatprep.subr.mxu0 0.0
    %2764 = vmatpush1.msra.mxu0 0.0
    %2765 = vmatprep.subr.mxu0 0.0
    %2766 = vmatpush1.msra.mxu0 0.0
    %2767 = vmatprep.subr.mxu0 0.0
    %2768 = vmatpush1.msra.mxu0 0.0
    %2769 = vmatprep.subr.mxu0 0.0
    %2770 = vmatpush1.msra.mxu0 0.0
    %2771 = vmatprep.subr.mxu0 0.0
    %2772 = vmatpush1.msra.mxu0 0.0
    %2773 = vmatprep.subr.mxu0 0.0
    %2774 = vmatpush1.msra.mxu0 0.0
    %2775 = vmatprep.subr.mxu0 0.0
    %2776 = vmatpush1.msra.mxu0 0.0
    %2777 = vmatprep.subr.mxu0 0.0
    %2778 = vmatpush1.msra.mxu0 0.0
    %2779 = vmatprep.subr.mxu0 0.0
    %2780 = vmatpush1.msra.mxu0 0.0
    %2781 = vmatprep.subr.mxu0 0.0
    %2782 = vmatpush1.msra.mxu0 0.0
    %2783 = vmatprep.subr.mxu0 0.0
    %2784 = vmatpush1.msra.mxu0 0.0
    %2785 = vmatprep.subr.mxu0 0.0
    %2786 = vmatpush1.msra.mxu0 0.0
    %2787 = vmatprep.subr.mxu0 0.0
    %2788 = vmatpush1.msra.mxu0 0.0
    %2789 = vmatprep.subr.mxu0 0.0
    %2790 = vmatpush1.msra.mxu0 0.0
    %2791 = vmatprep.subr.mxu0 0.0
    %2792 = vmatpush1.msra.mxu0 0.0
    %2793 = vmatprep.subr.mxu0 0.0
    %2794 = vmatpush1.msra.mxu0 0.0
    %2795 = vmatprep.subr.mxu0 0.0
    %2796 = vmatpush1.msra.mxu0 0.0
    %2797 = vmatprep.subr.mxu0 0.0
    %2798 = vmatpush1.msra.mxu0 0.0
    %2799 = vmatprep.subr.mxu0 0.0
    %2800 = vmatpush1.msra.mxu0 0.0
    %2801 = vmatprep.subr.mxu0 0.0
    %2802 = vmatpush1.msra.mxu0 0.0
    %2803 = vmatprep.subr.mxu0 0.0
    %2804 = vmatpush1.msra.mxu0 0.0
    %2805 = vmatprep.mubr.f32.mxu0 0.0
    %v2806 = vand.u32 %v1986, 4294901760
    %2807 = vmatmul.mubr.f32.gmra.mrb[0].mxu0 %v2806
    %v2808 = vpop.f32.mrb[0].mxu0
    %v2809 = vadd.f32 %v2626, %v2808
    %v2810 = vpop.f32.mrb[0].mxu0
    %v2811 = vadd.f32 %v2628, %v2810
    %2812 = vmatprep.mubr.f32.mxu0 0.0
    %v2813 = vand.u32 %v1989, 4294901760
    %2814 = vmatmul.mubr.f32.gmra.mrb[0].mxu0 %v2813
    %v2815 = vpop.f32.mrb[0].mxu0
    %v2816 = vadd.f32 %v2635, %v2815
    %v2817 = vpop.f32.mrb[0].mxu0
    %v2818 = vadd.f32 %v2637, %v2817
    %2819 = vmatprep.mubr.f32.mxu0 0.0
    %v2820 = vand.u32 %v1992, 4294901760
    %2821 = vmatmul.mubr.f32.gmra.mrb[0].mxu0 %v2820
    %v2822 = vpop.f32.mrb[0].mxu0
    %v2823 = vadd.f32 %v2644, %v2822
    %v2824 = vpop.f32.mrb[0].mxu0
    %v2825 = vadd.f32 %v2646, %v2824
    %2826 = vmatprep.mubr.f32.mxu0 0.0
    %v2827 = vand.u32 %v1995, 4294901760
    %2828 = vmatmul.mubr.f32.gmra.mrb[0].mxu0 %v2827
    %v2829 = vpop.f32.mrb[0].mxu0
    %v2830 = vadd.f32 %v2653, %v2829
    %v2831 = vpop.f32.mrb[0].mxu0
    %v2832 = vadd.f32 %v2655, %v2831
    %2833 = vmatprep.mubr.f32.mxu0 0.0
    %v2834 = vand.u32 %v1998, 4294901760
    %2835 = vmatmul.mubr.f32.gmra.mrb[0].mxu0 %v2834
    %v2836 = vpop.f32.mrb[0].mxu0
    %v2837 = vadd.f32 %v2662, %v2836
    %v2838 = vpop.f32.mrb[0].mxu0
    %v2839 = vadd.f32 %v2664, %v2838
    %2840 = vmatprep.mubr.f32.mxu0 0.0
    %v2841 = vand.u32 %v2001, 4294901760
    %2842 = vmatmul.mubr.f32.gmra.mrb[0].mxu0 %v2841
    %v2843 = vpop.f32.mrb[0].mxu0
    %v2844 = vadd.f32 %v2671, %v2843
    %v2845 = vpop.f32.mrb[0].mxu0
    %v2846 = vadd.f32 %v2673, %v2845
    %2847 = vmatprep.mubr.f32.mxu0 0.0
    %v2848 = vand.u32 %v2004, 4294901760
    %2849 = vmatmul.mubr.f32.gmra.mrb[0].mxu0 %v2848
    %v2850 = vpop.f32.mrb[0].mxu0
    %v2851 = vadd.f32 %v2680, %v2850
    %v2852 = vpop.f32.mrb[0].mxu0
    %v2853 = vadd.f32 %v2682, %v2852
    %2854 = vmatprep.mubr.f32.mxu0 0.0
    %v2855 = vand.u32 %v2007, 4294901760
    %2856 = vmatmul.mubr.f32.gmra.mrb[0].mxu0 %v2855
    %v2857 = vpop.f32.mrb[0].mxu0
    %v2858 = vadd.f32 %v2689, %v2857
    %v2859 = vpop.f32.mrb[0].mxu0
    %v2860 = vadd.f32 %v2691, %v2859
    %2861 = vdwg.mxu0
    %v2862 = vand.u32 %v471, 4294901760
    %2863 = vmatprep.subr.mxu0 %v2862
    %v2864 = vand.u32 %v367, 4294901760
    %2865 = vmatpush1.msra.mxu0 %v2864
    %v2866 = vand.u32 %v679, 4294901760
    %2867 = vmatprep.subr.mxu0 %v2866
    %v2868 = vand.u32 %v575, 4294901760
    %2869 = vmatpush1.msra.mxu0 %v2868
    %v2870 = vand.u32 %v887, 4294901760
    %2871 = vmatprep.subr.mxu0 %v2870
    %v2872 = vand.u32 %v783, 4294901760
    %2873 = vmatpush1.msra.mxu0 %v2872
    %v2874 = vand.u32 %v1095, 4294901760
    %2875 = vmatprep.subr.mxu0 %v2874
    %v2876 = vand.u32 %v991, 4294901760
    %2877 = vmatpush1.msra.mxu0 %v2876
    %v2878 = vand.u32 %v1303, 4294901760
    %2879 = vmatprep.subr.mxu0 %v2878
    %v2880 = vand.u32 %v1199, 4294901760
    %2881 = vmatpush1.msra.mxu0 %v2880
    %v2882 = vand.u32 %v1511, 4294901760
    %2883 = vmatprep.subr.mxu0 %v2882
    %v2884 = vand.u32 %v1407, 4294901760
    %2885 = vmatpush1.msra.mxu0 %v2884
    %v2886 = vand.u32 %v1719, 4294901760
    %2887 = vmatprep.subr.mxu0 %v2886
    %v2888 = vand.u32 %v1615, 4294901760
    %2889 = vmatpush1.msra.mxu0 %v2888
    %v2890 = vand.u32 %v1927, 4294901760
    %2891 = vmatprep.subr.mxu0 %v2890
    %v2892 = vand.u32 %v1823, 4294901760
    %2893 = vmatpush1.msra.mxu0 %v2892
    %2894 = vmatprep.subr.mxu0 0.0
    %2895 = vmatpush1.msra.mxu0 0.0
    %2896 = vmatprep.subr.mxu0 0.0
    %2897 = vmatpush1.msra.mxu0 0.0
    %2898 = vmatprep.subr.mxu0 0.0
    %2899 = vmatpush1.msra.mxu0 0.0
    %2900 = vmatprep.subr.mxu0 0.0
    %2901 = vmatpush1.msra.mxu0 0.0
    %2902 = vmatprep.subr.mxu0 0.0
    %2903 = vmatpush1.msra.mxu0 0.0
    %2904 = vmatprep.subr.mxu0 0.0
    %2905 = vmatpush1.msra.mxu0 0.0
    %2906 = vmatprep.subr.mxu0 0.0
    %2907 = vmatpush1.msra.mxu0 0.0
    %2908 = vmatprep.subr.mxu0 0.0
    %2909 = vmatpush1.msra.mxu0 0.0
    %2910 = vmatprep.subr.mxu0 0.0
    %2911 = vmatpush1.msra.mxu0 0.0
    %2912 = vmatprep.subr.mxu0 0.0
    %2913 = vmatpush1.msra.mxu0 0.0
    %2914 = vmatprep.subr.mxu0 0.0
    %2915 = vmatpush1.msra.mxu0 0.0
    %2916 = vmatprep.subr.mxu0 0.0
    %2917 = vmatpush1.msra.mxu0 0.0
    %2918 = vmatprep.subr.mxu0 0.0
    %2919 = vmatpush1.msra.mxu0 0.0
    %2920 = vmatprep.subr.mxu0 0.0
    %2921 = vmatpush1.msra.mxu0 0.0
    %2922 = vmatprep.subr.mxu0 0.0
    %2923 = vmatpush1.msra.mxu0 0.0
    %2924 = vmatprep.subr.mxu0 0.0
    %2925 = vmatpush1.msra.mxu0 0.0
    %2926 = vmatprep.subr.mxu0 0.0
    %2927 = vmatpush1.msra.mxu0 0.0
    %2928 = vmatprep.subr.mxu0 0.0
    %2929 = vmatpush1.msra.mxu0 0.0
    %2930 = vmatprep.subr.mxu0 0.0
    %2931 = vmatpush1.msra.mxu0 0.0
    %2932 = vmatprep.subr.mxu0 0.0
    %2933 = vmatpush1.msra.mxu0 0.0
    %2934 = vmatprep.subr.mxu0 0.0
    %2935 = vmatpush1.msra.mxu0 0.0
    %2936 = vmatprep.subr.mxu0 0.0
    %2937 = vmatpush1.msra.mxu0 0.0
    %2938 = vmatprep.subr.mxu0 0.0
    %2939 = vmatpush1.msra.mxu0 0.0
    %2940 = vmatprep.subr.mxu0 0.0
    %2941 = vmatpush1.msra.mxu0 0.0
    %2942 = vmatprep.mubr.f32.mxu0 0.0
    %v2943 = vand.u32 %v1986, 4294901760
    %2944 = vmatmul.mubr.f32.gmra.mrb[0].mxu0 %v2943
    %v2945 = vpop.f32.mrb[0].mxu0
    %v2946 = vadd.f32 %v2809, %v2945
    %v2947 = vpop.f32.mrb[0].mxu0
    %v2948 = vadd.f32 %v2811, %v2947
    %2949 = vmatprep.mubr.f32.mxu0 0.0
    %v2950 = vand.u32 %v1989, 4294901760
    %2951 = vmatmul.mubr.f32.gmra.mrb[0].mxu0 %v2950
    %v2952 = vpop.f32.mrb[0].mxu0
    %v2953 = vadd.f32 %v2816, %v2952
    %v2954 = vpop.f32.mrb[0].mxu0
    %v2955 = vadd.f32 %v2818, %v2954
    %2956 = vmatprep.mubr.f32.mxu0 0.0
    %v2957 = vand.u32 %v1992, 4294901760
    %2958 = vmatmul.mubr.f32.gmra.mrb[0].mxu0 %v2957
    %v2959 = vpop.f32.mrb[0].mxu0
    %v2960 = vadd.f32 %v2823, %v2959
    %v2961 = vpop.f32.mrb[0].mxu0
    %v2962 = vadd.f32 %v2825, %v2961
    %2963 = vmatprep.mubr.f32.mxu0 0.0
    %v2964 = vand.u32 %v1995, 4294901760
    %2965 = vmatmul.mubr.f32.gmra.mrb[0].mxu0 %v2964
    %v2966 = vpop.f32.mrb[0].mxu0
    %v2967 = vadd.f32 %v2830, %v2966
    %v2968 = vpop.f32.mrb[0].mxu0
    %v2969 = vadd.f32 %v2832, %v2968
    %2970 = vmatprep.mubr.f32.mxu0 0.0
    %v2971 = vand.u32 %v1998, 4294901760
    %2972 = vmatmul.mubr.f32.gmra.mrb[0].mxu0 %v2971
    %v2973 = vpop.f32.mrb[0].mxu0
    %v2974 = vadd.f32 %v2837, %v2973
    %v2975 = vpop.f32.mrb[0].mxu0
    %v2976 = vadd.f32 %v2839, %v2975
    %2977 = vmatprep.mubr.f32.mxu0 0.0
    %v2978 = vand.u32 %v2001, 4294901760
    %2979 = vmatmul.mubr.f32.gmra.mrb[0].mxu0 %v2978
    %v2980 = vpop.f32.mrb[0].mxu0
    %v2981 = vadd.f32 %v2844, %v2980
    %v2982 = vpop.f32.mrb[0].mxu0
    %v2983 = vadd.f32 %v2846, %v2982
    %2984 = vmatprep.mubr.f32.mxu0 0.0
    %v2985 = vand.u32 %v2004, 4294901760
    %2986 = vmatmul.mubr.f32.gmra.mrb[0].mxu0 %v2985
    %v2987 = vpop.f32.mrb[0].mxu0
    %v2988 = vadd.f32 %v2851, %v2987
    %v2989 = vpop.f32.mrb[0].mxu0
    %v2990 = vadd.f32 %v2853, %v2989
    %2991 = vmatprep.mubr.f32.mxu0 0.0
    %v2992 = vand.u32 %v2007, 4294901760
    %2993 = vmatmul.mubr.f32.gmra.mrb[0].mxu0 %v2992
    %v2994 = vpop.f32.mrb[0].mxu0
    %v2995 = vadd.f32 %v2858, %v2994
    %v2996 = vpop.f32.mrb[0].mxu0
    %v2997 = vadd.f32 %v2860, %v2996
    %2998 = vdwg.mxu0
    %v2999 = vand.u32 2147483647, %v2946
    %vm3000 = vcmp.le.f32.partialorder %v2999, 0.7853982
    %vm3001 = vcmp.lt.s32.totalorder %v2946, 0
    %v3002 = vand.u32 %v2946, 2139095040
    %v3003 = vshrl.u32 %v3002, 23
    %v3004 = vsub.s32 %v3003, 127
    %v3005 = vand.u32 2147483647, %v2946
    %v3006 = vand.u32 %v3005, 8388607
    %v3007 = vor.u32 %v3006, 8388608
    %v3008 = vsub.s32 0, %v3007
    %v3009 = vadd.s32 %v3004, 1
    %vm3010 = vcmp.gt.s32.totalorder %v3009, 0
    %v3011 = vsel %vm3010, %v3009, 0
    %v3012 = vshrl.u32 %v3011, 5
    %v3013 = vand.u32 %v3011, 31
    %v3014 = vsub.s32 32, %v3013
    %v3015 = vshrl.u32 683565275, %v3014
    %v3016 = vshll.u32 683565275, %v3013
    %v3017 = vshrl.u32 2475754826, %v3014
    %v3018 = vor.u32 %v3016, %v3017
    %v3019 = vshll.u32 2475754826, %v3013
    %v3020 = vshrl.u32 2131351028, %v3014
    %v3021 = vor.u32 %v3019, %v3020
    %v3022 = vshll.u32 2131351028, %v3013
    %v3023 = vshrl.u32 2102212464, %v3014
    %v3024 = vor.u32 %v3022, %v3023
    %v3025 = vshll.u32 2102212464, %v3013
    %v3026 = vshrl.u32 920167782, %v3014
    %v3027 = vor.u32 %v3025, %v3026
    %v3028 = vshll.u32 920167782, %v3013
    %v3029 = vshrl.u32 1326507024, %v3014
    %v3030 = vor.u32 %v3028, %v3029
    %vm3031 = vcmp.lt.s32.totalorder %v3012, 1
    %vm3032 = vcmp.lt.s32.totalorder %v3012, 2
    %vm3033 = vcmp.lt.s32.totalorder %v3012, 3
    %vm3034 = vcmp.lt.s32.totalorder %v3012, 4
    %v3035 = vsel %vm3031, %v3015, %v3018
    %v3036 = vsel %vm3034, %v3024, 2102212464
    %v3037 = vsel %vm3033, %v3021, %v3036
    %v3038 = vsel %vm3032, %v3035, %v3037
    %v3039 = vsel %vm3031, %v3018, %v3021
    %v3040 = vsel %vm3034, %v3027, 920167782
    %v3041 = vsel %vm3033, %v3024, %v3040
    %v3042 = vsel %vm3032, %v3039, %v3041
    %v3043 = vsel %vm3031, %v3021, %v3024
    %v3044 = vsel %vm3034, %v3030, 1326507024
    %v3045 = vsel %vm3033, %v3027, %v3044
    %v3046 = vsel %vm3032, %v3043, %v3045
    %v3047 = vshll.u32 %v3007, 8
    %v3048 = vmul.u32.u64.compose %v3047, %v3046
    %v3049 = vextract.low.u32 %v3048
    %v3050 = vextract.high.u32 %v3048
    %v3051 = vmul.u32.u64.compose %v3047, %v3042
    %v3052 = vextract.low.u32 %v3051
    %v3053 = vextract.high.u32 %v3051
    %v3054 = vmul.u32 %v3047, %v3038
    %v3055 = vadd.s32 %v3050, %v3052
    %vm3056 = vc.u32 %v3050, %v3052
    %v3057 = vadd.s32 %v3053, 1
    %v3058 = vsel %vm3056, %v3057, %v3053
    %v3059 = vadd.s32 %v3054, %v3058
    %v3060 = vadd.s32 %v3059, 536870912
    %v3061 = vshrl.u32 %v3060, 30
    %v3062 = vshll.u32 %v3061, 30
    %v3063 = vsub.s32 %v3059, %v3062
    %vm3064 = vcmp.lt.s32.totalorder %v3063, 0
    %v3065 = vsub.s32 0, %v3063
    %v3066 = vsel %vm3064, %v3065, %v3063
    %v3067 = vclz %v3066
    %v3068 = vsub.s32 %v3067, 2
    %vm3069 = vcmp.gt.s32.totalorder 0, %v3068
    %v3070 = vsel %vm3069, 0, %v3068
    %v3071 = vsub.s32 32, %v3070
    %v3072 = vshll.u32 %v3063, %v3070
    %v3073 = vshrl.u32 %v3055, %v3071
    %v3074 = vor.u32 %v3072, %v3073
    %v3075 = vsub.s32 4294967266, %v3070
    %v3076 = vadd.s32 %v3075, 127
    %v3077 = vshll.u32 %v3076, 23
    %v3078 = vor.u32 4788187, %v3077
    %v3079 = vand.u32 2147483647, %v3078
    %v3081 = vcvt.s32.f32 %v3074
    %v3082 = vmul.f32 %v3081, %v3079
    %v3083 = vxor.u32 %v3082, 2147483648
    %v3084 = vsel %vm3001, %v3083, %v3082
    %v3085 = vsub.s32 4, %v3061
    %v3086 = vsel %vm3001, %v3085, %v3061
    %v3087 = vsel %vm3000, %v2946, %v3084
    %v3088 = vsel %vm3000, 0, %v3086
    %v3089 = vcosq.f32.pop %v3087
    %v3090 = vsinq.f32.pop %v3087
    %vm3091 = vweird.f32 %v2946
    %v3092 = vadd.s32 %v3088, 3
    %v3093 = vand.u32 %v3092, 3
    %vm3094 = vcmp.lt.s32.totalorder %v3093, 2
    %vm3095 = vcmp.eq.s32.totalorder %v3093, 0
    %v3096 = vxor.u32 %v3090, 2147483648
    %v3097 = vsel %vm3095, %v3089, %v3096
    %vm3098 = vcmp.eq.s32.totalorder %v3093, 2
    %v3099 = vxor.u32 %v3089, 2147483648
    %v3100 = vsel %vm3098, %v3099, %v3090
    %v3101 = vsel %vm3094, %v3097, %v3100
    %v3102 = vsel %vm3091, nan, %v3101
    %v3103 = vand.u32 2147483647, %v2948
    %vm3104 = vcmp.le.f32.partialorder %v3103, 0.7853982
    %vm3105 = vcmp.lt.s32.totalorder %v2948, 0
    %v3106 = vand.u32 %v2948, 2139095040
    %v3107 = vshrl.u32 %v3106, 23
    %v3108 = vsub.s32 %v3107, 127
    %v3109 = vand.u32 2147483647, %v2948
    %v3110 = vand.u32 %v3109, 8388607
    %v3111 = vor.u32 %v3110, 8388608
    %v3112 = vsub.s32 0, %v3111
    %v3113 = vadd.s32 %v3108, 1
    %vm3114 = vcmp.gt.s32.totalorder %v3113, 0
    %v3115 = vsel %vm3114, %v3113, 0
    %v3116 = vshrl.u32 %v3115, 5
    %v3117 = vand.u32 %v3115, 31
    %v3118 = vsub.s32 32, %v3117
    %v3119 = vshrl.u32 683565275, %v3118
    %v3120 = vshll.u32 683565275, %v3117
    %v3121 = vshrl.u32 2475754826, %v3118
    %v3122 = vor.u32 %v3120, %v3121
    %v3123 = vshll.u32 2475754826, %v3117
    %v3124 = vshrl.u32 2131351028, %v3118
    %v3125 = vor.u32 %v3123, %v3124
    %v3126 = vshll.u32 2131351028, %v3117
    %v3127 = vshrl.u32 2102212464, %v3118
    %v3128 = vor.u32 %v3126, %v3127
    %v3129 = vshll.u32 2102212464, %v3117
    %v3130 = vshrl.u32 920167782, %v3118
    %v3131 = vor.u32 %v3129, %v3130
    %v3132 = vshll.u32 920167782, %v3117
    %v3133 = vshrl.u32 1326507024, %v3118
    %v3134 = vor.u32 %v3132, %v3133
    %vm3135 = vcmp.lt.s32.totalorder %v3116, 1
    %vm3136 = vcmp.lt.s32.totalorder %v3116, 2
    %vm3137 = vcmp.lt.s32.totalorder %v3116, 3
    %vm3138 = vcmp.lt.s32.totalorder %v3116, 4
    %v3139 = vsel %vm3135, %v3119, %v3122
    %v3140 = vsel %vm3138, %v3128, 2102212464
    %v3141 = vsel %vm3137, %v3125, %v3140
    %v3142 = vsel %vm3136, %v3139, %v3141
    %v3143 = vsel %vm3135, %v3122, %v3125
    %v3144 = vsel %vm3138, %v3131, 920167782
    %v3145 = vsel %vm3137, %v3128, %v3144
    %v3146 = vsel %vm3136, %v3143, %v3145
    %v3147 = vsel %vm3135, %v3125, %v3128
    %v3148 = vsel %vm3138, %v3134, 1326507024
    %v3149 = vsel %vm3137, %v3131, %v3148
    %v3150 = vsel %vm3136, %v3147, %v3149
    %v3151 = vshll.u32 %v3111, 8
    %v3152 = vmul.u32.u64.compose %v3151, %v3150
    %v3153 = vextract.low.u32 %v3152
    %v3154 = vextract.high.u32 %v3152
    %v3155 = vmul.u32.u64.compose %v3151, %v3146
    %v3156 = vextract.low.u32 %v3155
    %v3157 = vextract.high.u32 %v3155
    %v3158 = vmul.u32 %v3151, %v3142
    %v3159 = vadd.s32 %v3154, %v3156
    %vm3160 = vc.u32 %v3154, %v3156
    %v3161 = vadd.s32 %v3157, 1
    %v3162 = vsel %vm3160, %v3161, %v3157
    %v3163 = vadd.s32 %v3158, %v3162
    %v3164 = vadd.s32 %v3163, 536870912
    %v3165 = vshrl.u32 %v3164, 30
    %v3166 = vshll.u32 %v3165, 30
    %v3167 = vsub.s32 %v3163, %v3166
    %vm3168 = vcmp.lt.s32.totalorder %v3167, 0
    %v3169 = vsub.s32 0, %v3167
    %v3170 = vsel %vm3168, %v3169, %v3167
    %v3171 = vclz %v3170
    %v3172 = vsub.s32 %v3171, 2
    %vm3173 = vcmp.gt.s32.totalorder 0, %v3172
    %v3174 = vsel %vm3173, 0, %v3172
    %v3175 = vsub.s32 32, %v3174
    %v3176 = vshll.u32 %v3167, %v3174
    %v3177 = vshrl.u32 %v3159, %v3175
    %v3178 = vor.u32 %v3176, %v3177
    %v3179 = vsub.s32 4294967266, %v3174
    %v3180 = vadd.s32 %v3179, 127
    %v3181 = vshll.u32 %v3180, 23
    %v3182 = vor.u32 4788187, %v3181
    %v3183 = vand.u32 2147483647, %v3182
    %v3185 = vcvt.s32.f32 %v3178
    %v3186 = vmul.f32 %v3185, %v3183
    %v3187 = vxor.u32 %v3186, 2147483648
    %v3188 = vsel %vm3105, %v3187, %v3186
    %v3189 = vsub.s32 4, %v3165
    %v3190 = vsel %vm3105, %v3189, %v3165
    %v3191 = vsel %vm3104, %v2948, %v3188
    %v3192 = vsel %vm3104, 0, %v3190
    %v3193 = vcosq.f32.pop %v3191
    %v3194 = vsinq.f32.pop %v3191
    %vm3195 = vweird.f32 %v2948
    %v3196 = vadd.s32 %v3192, 3
    %v3197 = vand.u32 %v3196, 3
    %vm3198 = vcmp.lt.s32.totalorder %v3197, 2
    %vm3199 = vcmp.eq.s32.totalorder %v3197, 0
    %v3200 = vxor.u32 %v3194, 2147483648
    %v3201 = vsel %vm3199, %v3193, %v3200
    %vm3202 = vcmp.eq.s32.totalorder %v3197, 2
    %v3203 = vxor.u32 %v3193, 2147483648
    %v3204 = vsel %vm3202, %v3203, %v3194
    %v3205 = vsel %vm3198, %v3201, %v3204
    %v3206 = vsel %vm3195, nan, %v3205
    %v3207 = vand.u32 2147483647, %v2953
    %vm3208 = vcmp.le.f32.partialorder %v3207, 0.7853982
    %vm3209 = vcmp.lt.s32.totalorder %v2953, 0
    %v3210 = vand.u32 %v2953, 2139095040
    %v3211 = vshrl.u32 %v3210, 23
    %v3212 = vsub.s32 %v3211, 127
    %v3213 = vand.u32 2147483647, %v2953
    %v3214 = vand.u32 %v3213, 8388607
    %v3215 = vor.u32 %v3214, 8388608
    %v3216 = vsub.s32 0, %v3215
    %v3217 = vadd.s32 %v3212, 1
    %vm3218 = vcmp.gt.s32.totalorder %v3217, 0
    %v3219 = vsel %vm3218, %v3217, 0
    %v3220 = vshrl.u32 %v3219, 5
    %v3221 = vand.u32 %v3219, 31
    %v3222 = vsub.s32 32, %v3221
    %v3223 = vshrl.u32 683565275, %v3222
    %v3224 = vshll.u32 683565275, %v3221
    %v3225 = vshrl.u32 2475754826, %v3222
    %v3226 = vor.u32 %v3224, %v3225
    %v3227 = vshll.u32 2475754826, %v3221
    %v3228 = vshrl.u32 2131351028, %v3222
    %v3229 = vor.u32 %v3227, %v3228
    %v3230 = vshll.u32 2131351028, %v3221
    %v3231 = vshrl.u32 2102212464, %v3222
    %v3232 = vor.u32 %v3230, %v3231
    %v3233 = vshll.u32 2102212464, %v3221
    %v3234 = vshrl.u32 920167782, %v3222
    %v3235 = vor.u32 %v3233, %v3234
    %v3236 = vshll.u32 920167782, %v3221
    %v3237 = vshrl.u32 1326507024, %v3222
    %v3238 = vor.u32 %v3236, %v3237
    %vm3239 = vcmp.lt.s32.totalorder %v3220, 1
    %vm3240 = vcmp.lt.s32.totalorder %v3220, 2
    %vm3241 = vcmp.lt.s32.totalorder %v3220, 3
    %vm3242 = vcmp.lt.s32.totalorder %v3220, 4
    %v3243 = vsel %vm3239, %v3223, %v3226
    %v3244 = vsel %vm3242, %v3232, 2102212464
    %v3245 = vsel %vm3241, %v3229, %v3244
    %v3246 = vsel %vm3240, %v3243, %v3245
    %v3247 = vsel %vm3239, %v3226, %v3229
    %v3248 = vsel %vm3242, %v3235, 920167782
    %v3249 = vsel %vm3241, %v3232, %v3248
    %v3250 = vsel %vm3240, %v3247, %v3249
    %v3251 = vsel %vm3239, %v3229, %v3232
    %v3252 = vsel %vm3242, %v3238, 1326507024
    %v3253 = vsel %vm3241, %v3235, %v3252
    %v3254 = vsel %vm3240, %v3251, %v3253
    %v3255 = vshll.u32 %v3215, 8
    %v3256 = vmul.u32.u64.compose %v3255, %v3254
    %v3257 = vextract.low.u32 %v3256
    %v3258 = vextract.high.u32 %v3256
    %v3259 = vmul.u32.u64.compose %v3255, %v3250
    %v3260 = vextract.low.u32 %v3259
    %v3261 = vextract.high.u32 %v3259
    %v3262 = vmul.u32 %v3255, %v3246
    %v3263 = vadd.s32 %v3258, %v3260
    %vm3264 = vc.u32 %v3258, %v3260
    %v3265 = vadd.s32 %v3261, 1
    %v3266 = vsel %vm3264, %v3265, %v3261
    %v3267 = vadd.s32 %v3262, %v3266
    %v3268 = vadd.s32 %v3267, 536870912
    %v3269 = vshrl.u32 %v3268, 30
    %v3270 = vshll.u32 %v3269, 30
    %v3271 = vsub.s32 %v3267, %v3270
    %vm3272 = vcmp.lt.s32.totalorder %v3271, 0
    %v3273 = vsub.s32 0, %v3271
    %v3274 = vsel %vm3272, %v3273, %v3271
    %v3275 = vclz %v3274
    %v3276 = vsub.s32 %v3275, 2
    %vm3277 = vcmp.gt.s32.totalorder 0, %v3276
    %v3278 = vsel %vm3277, 0, %v3276
    %v3279 = vsub.s32 32, %v3278
    %v3280 = vshll.u32 %v3271, %v3278
    %v3281 = vshrl.u32 %v3263, %v3279
    %v3282 = vor.u32 %v3280, %v3281
    %v3283 = vsub.s32 4294967266, %v3278
    %v3284 = vadd.s32 %v3283, 127
    %v3285 = vshll.u32 %v3284, 23
    %v3286 = vor.u32 4788187, %v3285
    %v3287 = vand.u32 2147483647, %v3286
    %v3289 = vcvt.s32.f32 %v3282
    %v3290 = vmul.f32 %v3289, %v3287
    %v3291 = vxor.u32 %v3290, 2147483648
    %v3292 = vsel %vm3209, %v3291, %v3290
    %v3293 = vsub.s32 4, %v3269
    %v3294 = vsel %vm3209, %v3293, %v3269
    %v3295 = vsel %vm3208, %v2953, %v3292
    %v3296 = vsel %vm3208, 0, %v3294
    %v3297 = vcosq.f32.pop %v3295
    %v3298 = vsinq.f32.pop %v3295
    %vm3299 = vweird.f32 %v2953
    %v3300 = vadd.s32 %v3296, 3
    %v3301 = vand.u32 %v3300, 3
    %vm3302 = vcmp.lt.s32.totalorder %v3301, 2
    %vm3303 = vcmp.eq.s32.totalorder %v3301, 0
    %v3304 = vxor.u32 %v3298, 2147483648
    %v3305 = vsel %vm3303, %v3297, %v3304
    %vm3306 = vcmp.eq.s32.totalorder %v3301, 2
    %v3307 = vxor.u32 %v3297, 2147483648
    %v3308 = vsel %vm3306, %v3307, %v3298
    %v3309 = vsel %vm3302, %v3305, %v3308
    %v3310 = vsel %vm3299, nan, %v3309
    %v3311 = vand.u32 2147483647, %v2955
    %vm3312 = vcmp.le.f32.partialorder %v3311, 0.7853982
    %vm3313 = vcmp.lt.s32.totalorder %v2955, 0
    %v3314 = vand.u32 %v2955, 2139095040
    %v3315 = vshrl.u32 %v3314, 23
    %v3316 = vsub.s32 %v3315, 127
    %v3317 = vand.u32 2147483647, %v2955
    %v3318 = vand.u32 %v3317, 8388607
    %v3319 = vor.u32 %v3318, 8388608
    %v3320 = vsub.s32 0, %v3319
    %v3321 = vadd.s32 %v3316, 1
    %vm3322 = vcmp.gt.s32.totalorder %v3321, 0
    %v3323 = vsel %vm3322, %v3321, 0
    %v3324 = vshrl.u32 %v3323, 5
    %v3325 = vand.u32 %v3323, 31
    %v3326 = vsub.s32 32, %v3325
    %v3327 = vshrl.u32 683565275, %v3326
    %v3328 = vshll.u32 683565275, %v3325
    %v3329 = vshrl.u32 2475754826, %v3326
    %v3330 = vor.u32 %v3328, %v3329
    %v3331 = vshll.u32 2475754826, %v3325
    %v3332 = vshrl.u32 2131351028, %v3326
    %v3333 = vor.u32 %v3331, %v3332
    %v3334 = vshll.u32 2131351028, %v3325
    %v3335 = vshrl.u32 2102212464, %v3326
    %v3336 = vor.u32 %v3334, %v3335
    %v3337 = vshll.u32 2102212464, %v3325
    %v3338 = vshrl.u32 920167782, %v3326
    %v3339 = vor.u32 %v3337, %v3338
    %v3340 = vshll.u32 920167782, %v3325
    %v3341 = vshrl.u32 1326507024, %v3326
    %v3342 = vor.u32 %v3340, %v3341
    %vm3343 = vcmp.lt.s32.totalorder %v3324, 1
    %vm3344 = vcmp.lt.s32.totalorder %v3324, 2
    %vm3345 = vcmp.lt.s32.totalorder %v3324, 3
    %vm3346 = vcmp.lt.s32.totalorder %v3324, 4
    %v3347 = vsel %vm3343, %v3327, %v3330
    %v3348 = vsel %vm3346, %v3336, 2102212464
    %v3349 = vsel %vm3345, %v3333, %v3348
    %v3350 = vsel %vm3344, %v3347, %v3349
    %v3351 = vsel %vm3343, %v3330, %v3333
    %v3352 = vsel %vm3346, %v3339, 920167782
    %v3353 = vsel %vm3345, %v3336, %v3352
    %v3354 = vsel %vm3344, %v3351, %v3353
    %v3355 = vsel %vm3343, %v3333, %v3336
    %v3356 = vsel %vm3346, %v3342, 1326507024
    %v3357 = vsel %vm3345, %v3339, %v3356
    %v3358 = vsel %vm3344, %v3355, %v3357
    %v3359 = vshll.u32 %v3319, 8
    %v3360 = vmul.u32.u64.compose %v3359, %v3358
    %v3361 = vextract.low.u32 %v3360
    %v3362 = vextract.high.u32 %v3360
    %v3363 = vmul.u32.u64.compose %v3359, %v3354
    %v3364 = vextract.low.u32 %v3363
    %v3365 = vextract.high.u32 %v3363
    %v3366 = vmul.u32 %v3359, %v3350
    %v3367 = vadd.s32 %v3362, %v3364
    %vm3368 = vc.u32 %v3362, %v3364
    %v3369 = vadd.s32 %v3365, 1
    %v3370 = vsel %vm3368, %v3369, %v3365
    %v3371 = vadd.s32 %v3366, %v3370
    %v3372 = vadd.s32 %v3371, 536870912
    %v3373 = vshrl.u32 %v3372, 30
    %v3374 = vshll.u32 %v3373, 30
    %v3375 = vsub.s32 %v3371, %v3374
    %vm3376 = vcmp.lt.s32.totalorder %v3375, 0
    %v3377 = vsub.s32 0, %v3375
    %v3378 = vsel %vm3376, %v3377, %v3375
    %v3379 = vclz %v3378
    %v3380 = vsub.s32 %v3379, 2
    %vm3381 = vcmp.gt.s32.totalorder 0, %v3380
    %v3382 = vsel %vm3381, 0, %v3380
    %v3383 = vsub.s32 32, %v3382
    %v3384 = vshll.u32 %v3375, %v3382
    %v3385 = vshrl.u32 %v3367, %v3383
    %v3386 = vor.u32 %v3384, %v3385
    %v3387 = vsub.s32 4294967266, %v3382
    %v3388 = vadd.s32 %v3387, 127
    %v3389 = vshll.u32 %v3388, 23
    %v3390 = vor.u32 4788187, %v3389
    %v3391 = vand.u32 2147483647, %v3390
    %v3393 = vcvt.s32.f32 %v3386
    %v3394 = vmul.f32 %v3393, %v3391
    %v3395 = vxor.u32 %v3394, 2147483648
    %v3396 = vsel %vm3313, %v3395, %v3394
    %v3397 = vsub.s32 4, %v3373
    %v3398 = vsel %vm3313, %v3397, %v3373
    %v3399 = vsel %vm3312, %v2955, %v3396
    %v3400 = vsel %vm3312, 0, %v3398
    %v3401 = vcosq.f32.pop %v3399
    %v3402 = vsinq.f32.pop %v3399
    %vm3403 = vweird.f32 %v2955
    %v3404 = vadd.s32 %v3400, 3
    %v3405 = vand.u32 %v3404, 3
    %vm3406 = vcmp.lt.s32.totalorder %v3405, 2
    %vm3407 = vcmp.eq.s32.totalorder %v3405, 0
    %v3408 = vxor.u32 %v3402, 2147483648
    %v3409 = vsel %vm3407, %v3401, %v3408
    %vm3410 = vcmp.eq.s32.totalorder %v3405, 2
    %v3411 = vxor.u32 %v3401, 2147483648
    %v3412 = vsel %vm3410, %v3411, %v3402
    %v3413 = vsel %vm3406, %v3409, %v3412
    %v3414 = vsel %vm3403, nan, %v3413
    %v3415 = vand.u32 2147483647, %v2960
    %vm3416 = vcmp.le.f32.partialorder %v3415, 0.7853982
    %vm3417 = vcmp.lt.s32.totalorder %v2960, 0
    %v3418 = vand.u32 %v2960, 2139095040
    %v3419 = vshrl.u32 %v3418, 23
    %v3420 = vsub.s32 %v3419, 127
    %v3421 = vand.u32 2147483647, %v2960
    %v3422 = vand.u32 %v3421, 8388607
    %v3423 = vor.u32 %v3422, 8388608
    %v3424 = vsub.s32 0, %v3423
    %v3425 = vadd.s32 %v3420, 1
    %vm3426 = vcmp.gt.s32.totalorder %v3425, 0
    %v3427 = vsel %vm3426, %v3425, 0
    %v3428 = vshrl.u32 %v3427, 5
    %v3429 = vand.u32 %v3427, 31
    %v3430 = vsub.s32 32, %v3429
    %v3431 = vshrl.u32 683565275, %v3430
    %v3432 = vshll.u32 683565275, %v3429
    %v3433 = vshrl.u32 2475754826, %v3430
    %v3434 = vor.u32 %v3432, %v3433
    %v3435 = vshll.u32 2475754826, %v3429
    %v3436 = vshrl.u32 2131351028, %v3430
    %v3437 = vor.u32 %v3435, %v3436
    %v3438 = vshll.u32 2131351028, %v3429
    %v3439 = vshrl.u32 2102212464, %v3430
    %v3440 = vor.u32 %v3438, %v3439
    %v3441 = vshll.u32 2102212464, %v3429
    %v3442 = vshrl.u32 920167782, %v3430
    %v3443 = vor.u32 %v3441, %v3442
    %v3444 = vshll.u32 920167782, %v3429
    %v3445 = vshrl.u32 1326507024, %v3430
    %v3446 = vor.u32 %v3444, %v3445
    %vm3447 = vcmp.lt.s32.totalorder %v3428, 1
    %vm3448 = vcmp.lt.s32.totalorder %v3428, 2
    %vm3449 = vcmp.lt.s32.totalorder %v3428, 3
    %vm3450 = vcmp.lt.s32.totalorder %v3428, 4
    %v3451 = vsel %vm3447, %v3431, %v3434
    %v3452 = vsel %vm3450, %v3440, 2102212464
    %v3453 = vsel %vm3449, %v3437, %v3452
    %v3454 = vsel %vm3448, %v3451, %v3453
    %v3455 = vsel %vm3447, %v3434, %v3437
    %v3456 = vsel %vm3450, %v3443, 920167782
    %v3457 = vsel %vm3449, %v3440, %v3456
    %v3458 = vsel %vm3448, %v3455, %v3457
    %v3459 = vsel %vm3447, %v3437, %v3440
    %v3460 = vsel %vm3450, %v3446, 1326507024
    %v3461 = vsel %vm3449, %v3443, %v3460
    %v3462 = vsel %vm3448, %v3459, %v3461
    %v3463 = vshll.u32 %v3423, 8
    %v3464 = vmul.u32.u64.compose %v3463, %v3462
    %v3465 = vextract.low.u32 %v3464
    %v3466 = vextract.high.u32 %v3464
    %v3467 = vmul.u32.u64.compose %v3463, %v3458
    %v3468 = vextract.low.u32 %v3467
    %v3469 = vextract.high.u32 %v3467
    %v3470 = vmul.u32 %v3463, %v3454
    %v3471 = vadd.s32 %v3466, %v3468
    %vm3472 = vc.u32 %v3466, %v3468
    %v3473 = vadd.s32 %v3469, 1
    %v3474 = vsel %vm3472, %v3473, %v3469
    %v3475 = vadd.s32 %v3470, %v3474
    %v3476 = vadd.s32 %v3475, 536870912
    %v3477 = vshrl.u32 %v3476, 30
    %v3478 = vshll.u32 %v3477, 30
    %v3479 = vsub.s32 %v3475, %v3478
    %vm3480 = vcmp.lt.s32.totalorder %v3479, 0
    %v3481 = vsub.s32 0, %v3479
    %v3482 = vsel %vm3480, %v3481, %v3479
    %v3483 = vclz %v3482
    %v3484 = vsub.s32 %v3483, 2
    %vm3485 = vcmp.gt.s32.totalorder 0, %v3484
    %v3486 = vsel %vm3485, 0, %v3484
    %v3487 = vsub.s32 32, %v3486
    %v3488 = vshll.u32 %v3479, %v3486
    %v3489 = vshrl.u32 %v3471, %v3487
    %v3490 = vor.u32 %v3488, %v3489
    %v3491 = vsub.s32 4294967266, %v3486
    %v3492 = vadd.s32 %v3491, 127
    %v3493 = vshll.u32 %v3492, 23
    %v3494 = vor.u32 4788187, %v3493
    %v3495 = vand.u32 2147483647, %v3494
    %v3497 = vcvt.s32.f32 %v3490
    %v3498 = vmul.f32 %v3497, %v3495
    %v3499 = vxor.u32 %v3498, 2147483648
    %v3500 = vsel %vm3417, %v3499, %v3498
    %v3501 = vsub.s32 4, %v3477
    %v3502 = vsel %vm3417, %v3501, %v3477
    %v3503 = vsel %vm3416, %v2960, %v3500
    %v3504 = vsel %vm3416, 0, %v3502
    %v3505 = vcosq.f32.pop %v3503
    %v3506 = vsinq.f32.pop %v3503
    %vm3507 = vweird.f32 %v2960
    %v3508 = vadd.s32 %v3504, 3
    %v3509 = vand.u32 %v3508, 3
    %vm3510 = vcmp.lt.s32.totalorder %v3509, 2
    %vm3511 = vcmp.eq.s32.totalorder %v3509, 0
    %v3512 = vxor.u32 %v3506, 2147483648
    %v3513 = vsel %vm3511, %v3505, %v3512
    %vm3514 = vcmp.eq.s32.totalorder %v3509, 2
    %v3515 = vxor.u32 %v3505, 2147483648
    %v3516 = vsel %vm3514, %v3515, %v3506
    %v3517 = vsel %vm3510, %v3513, %v3516
    %v3518 = vsel %vm3507, nan, %v3517
    %v3519 = vand.u32 2147483647, %v2962
    %vm3520 = vcmp.le.f32.partialorder %v3519, 0.7853982
    %vm3521 = vcmp.lt.s32.totalorder %v2962, 0
    %v3522 = vand.u32 %v2962, 2139095040
    %v3523 = vshrl.u32 %v3522, 23
    %v3524 = vsub.s32 %v3523, 127
    %v3525 = vand.u32 2147483647, %v2962
    %v3526 = vand.u32 %v3525, 8388607
    %v3527 = vor.u32 %v3526, 8388608
    %v3528 = vsub.s32 0, %v3527
    %v3529 = vadd.s32 %v3524, 1
    %vm3530 = vcmp.gt.s32.totalorder %v3529, 0
    %v3531 = vsel %vm3530, %v3529, 0
    %v3532 = vshrl.u32 %v3531, 5
    %v3533 = vand.u32 %v3531, 31
    %v3534 = vsub.s32 32, %v3533
    %v3535 = vshrl.u32 683565275, %v3534
    %v3536 = vshll.u32 683565275, %v3533
    %v3537 = vshrl.u32 2475754826, %v3534
    %v3538 = vor.u32 %v3536, %v3537
    %v3539 = vshll.u32 2475754826, %v3533
    %v3540 = vshrl.u32 2131351028, %v3534
    %v3541 = vor.u32 %v3539, %v3540
    %v3542 = vshll.u32 2131351028, %v3533
    %v3543 = vshrl.u32 2102212464, %v3534
    %v3544 = vor.u32 %v3542, %v3543
    %v3545 = vshll.u32 2102212464, %v3533
    %v3546 = vshrl.u32 920167782, %v3534
    %v3547 = vor.u32 %v3545, %v3546
    %v3548 = vshll.u32 920167782, %v3533
    %v3549 = vshrl.u32 1326507024, %v3534
    %v3550 = vor.u32 %v3548, %v3549
    %vm3551 = vcmp.lt.s32.totalorder %v3532, 1
    %vm3552 = vcmp.lt.s32.totalorder %v3532, 2
    %vm3553 = vcmp.lt.s32.totalorder %v3532, 3
    %vm3554 = vcmp.lt.s32.totalorder %v3532, 4
    %v3555 = vsel %vm3551, %v3535, %v3538
    %v3556 = vsel %vm3554, %v3544, 2102212464
    %v3557 = vsel %vm3553, %v3541, %v3556
    %v3558 = vsel %vm3552, %v3555, %v3557
    %v3559 = vsel %vm3551, %v3538, %v3541
    %v3560 = vsel %vm3554, %v3547, 920167782
    %v3561 = vsel %vm3553, %v3544, %v3560
    %v3562 = vsel %vm3552, %v3559, %v3561
    %v3563 = vsel %vm3551, %v3541, %v3544
    %v3564 = vsel %vm3554, %v3550, 1326507024
    %v3565 = vsel %vm3553, %v3547, %v3564
    %v3566 = vsel %vm3552, %v3563, %v3565
    %v3567 = vshll.u32 %v3527, 8
    %v3568 = vmul.u32.u64.compose %v3567, %v3566
    %v3569 = vextract.low.u32 %v3568
    %v3570 = vextract.high.u32 %v3568
    %v3571 = vmul.u32.u64.compose %v3567, %v3562
    %v3572 = vextract.low.u32 %v3571
    %v3573 = vextract.high.u32 %v3571
    %v3574 = vmul.u32 %v3567, %v3558
    %v3575 = vadd.s32 %v3570, %v3572
    %vm3576 = vc.u32 %v3570, %v3572
    %v3577 = vadd.s32 %v3573, 1
    %v3578 = vsel %vm3576, %v3577, %v3573
    %v3579 = vadd.s32 %v3574, %v3578
    %v3580 = vadd.s32 %v3579, 536870912
    %v3581 = vshrl.u32 %v3580, 30
    %v3582 = vshll.u32 %v3581, 30
    %v3583 = vsub.s32 %v3579, %v3582
    %vm3584 = vcmp.lt.s32.totalorder %v3583, 0
    %v3585 = vsub.s32 0, %v3583
    %v3586 = vsel %vm3584, %v3585, %v3583
    %v3587 = vclz %v3586
    %v3588 = vsub.s32 %v3587, 2
    %vm3589 = vcmp.gt.s32.totalorder 0, %v3588
    %v3590 = vsel %vm3589, 0, %v3588
    %v3591 = vsub.s32 32, %v3590
    %v3592 = vshll.u32 %v3583, %v3590
    %v3593 = vshrl.u32 %v3575, %v3591
    %v3594 = vor.u32 %v3592, %v3593
    %v3595 = vsub.s32 4294967266, %v3590
    %v3596 = vadd.s32 %v3595, 127
    %v3597 = vshll.u32 %v3596, 23
    %v3598 = vor.u32 4788187, %v3597
    %v3599 = vand.u32 2147483647, %v3598
    %v3601 = vcvt.s32.f32 %v3594
    %v3602 = vmul.f32 %v3601, %v3599
    %v3603 = vxor.u32 %v3602, 2147483648
    %v3604 = vsel %vm3521, %v3603, %v3602
    %v3605 = vsub.s32 4, %v3581
    %v3606 = vsel %vm3521, %v3605, %v3581
    %v3607 = vsel %vm3520, %v2962, %v3604
    %v3608 = vsel %vm3520, 0, %v3606
    %v3609 = vcosq.f32.pop %v3607
    %v3610 = vsinq.f32.pop %v3607
    %vm3611 = vweird.f32 %v2962
    %v3612 = vadd.s32 %v3608, 3
    %v3613 = vand.u32 %v3612, 3
    %vm3614 = vcmp.lt.s32.totalorder %v3613, 2
    %vm3615 = vcmp.eq.s32.totalorder %v3613, 0
    %v3616 = vxor.u32 %v3610, 2147483648
    %v3617 = vsel %vm3615, %v3609, %v3616
    %vm3618 = vcmp.eq.s32.totalorder %v3613, 2
    %v3619 = vxor.u32 %v3609, 2147483648
    %v3620 = vsel %vm3618, %v3619, %v3610
    %v3621 = vsel %vm3614, %v3617, %v3620
    %v3622 = vsel %vm3611, nan, %v3621
    %v3623 = vand.u32 2147483647, %v2967
    %vm3624 = vcmp.le.f32.partialorder %v3623, 0.7853982
    %vm3625 = vcmp.lt.s32.totalorder %v2967, 0
    %v3626 = vand.u32 %v2967, 2139095040
    %v3627 = vshrl.u32 %v3626, 23
    %v3628 = vsub.s32 %v3627, 127
    %v3629 = vand.u32 2147483647, %v2967
    %v3630 = vand.u32 %v3629, 8388607
    %v3631 = vor.u32 %v3630, 8388608
    %v3632 = vsub.s32 0, %v3631
    %v3633 = vadd.s32 %v3628, 1
    %vm3634 = vcmp.gt.s32.totalorder %v3633, 0
    %v3635 = vsel %vm3634, %v3633, 0
    %v3636 = vshrl.u32 %v3635, 5
    %v3637 = vand.u32 %v3635, 31
    %v3638 = vsub.s32 32, %v3637
    %v3639 = vshrl.u32 683565275, %v3638
    %v3640 = vshll.u32 683565275, %v3637
    %v3641 = vshrl.u32 2475754826, %v3638
    %v3642 = vor.u32 %v3640, %v3641
    %v3643 = vshll.u32 2475754826, %v3637
    %v3644 = vshrl.u32 2131351028, %v3638
    %v3645 = vor.u32 %v3643, %v3644
    %v3646 = vshll.u32 2131351028, %v3637
    %v3647 = vshrl.u32 2102212464, %v3638
    %v3648 = vor.u32 %v3646, %v3647
    %v3649 = vshll.u32 2102212464, %v3637
    %v3650 = vshrl.u32 920167782, %v3638
    %v3651 = vor.u32 %v3649, %v3650
    %v3652 = vshll.u32 920167782, %v3637
    %v3653 = vshrl.u32 1326507024, %v3638
    %v3654 = vor.u32 %v3652, %v3653
    %vm3655 = vcmp.lt.s32.totalorder %v3636, 1
    %vm3656 = vcmp.lt.s32.totalorder %v3636, 2
    %vm3657 = vcmp.lt.s32.totalorder %v3636, 3
    %vm3658 = vcmp.lt.s32.totalorder %v3636, 4
    %v3659 = vsel %vm3655, %v3639, %v3642
    %v3660 = vsel %vm3658, %v3648, 2102212464
    %v3661 = vsel %vm3657, %v3645, %v3660
    %v3662 = vsel %vm3656, %v3659, %v3661
    %v3663 = vsel %vm3655, %v3642, %v3645
    %v3664 = vsel %vm3658, %v3651, 920167782
    %v3665 = vsel %vm3657, %v3648, %v3664
    %v3666 = vsel %vm3656, %v3663, %v3665
    %v3667 = vsel %vm3655, %v3645, %v3648
    %v3668 = vsel %vm3658, %v3654, 1326507024
    %v3669 = vsel %vm3657, %v3651, %v3668
    %v3670 = vsel %vm3656, %v3667, %v3669
    %v3671 = vshll.u32 %v3631, 8
    %v3672 = vmul.u32.u64.compose %v3671, %v3670
    %v3673 = vextract.low.u32 %v3672
    %v3674 = vextract.high.u32 %v3672
    %v3675 = vmul.u32.u64.compose %v3671, %v3666
    %v3676 = vextract.low.u32 %v3675
    %v3677 = vextract.high.u32 %v3675
    %v3678 = vmul.u32 %v3671, %v3662
    %v3679 = vadd.s32 %v3674, %v3676
    %vm3680 = vc.u32 %v3674, %v3676
    %v3681 = vadd.s32 %v3677, 1
    %v3682 = vsel %vm3680, %v3681, %v3677
    %v3683 = vadd.s32 %v3678, %v3682
    %v3684 = vadd.s32 %v3683, 536870912
    %v3685 = vshrl.u32 %v3684, 30
    %v3686 = vshll.u32 %v3685, 30
    %v3687 = vsub.s32 %v3683, %v3686
    %vm3688 = vcmp.lt.s32.totalorder %v3687, 0
    %v3689 = vsub.s32 0, %v3687
    %v3690 = vsel %vm3688, %v3689, %v3687
    %v3691 = vclz %v3690
    %v3692 = vsub.s32 %v3691, 2
    %vm3693 = vcmp.gt.s32.totalorder 0, %v3692
    %v3694 = vsel %vm3693, 0, %v3692
    %v3695 = vsub.s32 32, %v3694
    %v3696 = vshll.u32 %v3687, %v3694
    %v3697 = vshrl.u32 %v3679, %v3695
    %v3698 = vor.u32 %v3696, %v3697
    %v3699 = vsub.s32 4294967266, %v3694
    %v3700 = vadd.s32 %v3699, 127
    %v3701 = vshll.u32 %v3700, 23
    %v3702 = vor.u32 4788187, %v3701
    %v3703 = vand.u32 2147483647, %v3702
    %v3705 = vcvt.s32.f32 %v3698
    %v3706 = vmul.f32 %v3705, %v3703
    %v3707 = vxor.u32 %v3706, 2147483648
    %v3708 = vsel %vm3625, %v3707, %v3706
    %v3709 = vsub.s32 4, %v3685
    %v3710 = vsel %vm3625, %v3709, %v3685
    %v3711 = vsel %vm3624, %v2967, %v3708
    %v3712 = vsel %vm3624, 0, %v3710
    %v3713 = vcosq.f32.pop %v3711
    %v3714 = vsinq.f32.pop %v3711
    %vm3715 = vweird.f32 %v2967
    %v3716 = vadd.s32 %v3712, 3
    %v3717 = vand.u32 %v3716, 3
    %vm3718 = vcmp.lt.s32.totalorder %v3717, 2
    %vm3719 = vcmp.eq.s32.totalorder %v3717, 0
    %v3720 = vxor.u32 %v3714, 2147483648
    %v3721 = vsel %vm3719, %v3713, %v3720
    %vm3722 = vcmp.eq.s32.totalorder %v3717, 2
    %v3723 = vxor.u32 %v3713, 2147483648
    %v3724 = vsel %vm3722, %v3723, %v3714
    %v3725 = vsel %vm3718, %v3721, %v3724
    %v3726 = vsel %vm3715, nan, %v3725
    %v3727 = vand.u32 2147483647, %v2969
    %vm3728 = vcmp.le.f32.partialorder %v3727, 0.7853982
    %vm3729 = vcmp.lt.s32.totalorder %v2969, 0
    %v3730 = vand.u32 %v2969, 2139095040
    %v3731 = vshrl.u32 %v3730, 23
    %v3732 = vsub.s32 %v3731, 127
    %v3733 = vand.u32 2147483647, %v2969
    %v3734 = vand.u32 %v3733, 8388607
    %v3735 = vor.u32 %v3734, 8388608
    %v3736 = vsub.s32 0, %v3735
    %v3737 = vadd.s32 %v3732, 1
    %vm3738 = vcmp.gt.s32.totalorder %v3737, 0
    %v3739 = vsel %vm3738, %v3737, 0
    %v3740 = vshrl.u32 %v3739, 5
    %v3741 = vand.u32 %v3739, 31
    %v3742 = vsub.s32 32, %v3741
    %v3743 = vshrl.u32 683565275, %v3742
    %v3744 = vshll.u32 683565275, %v3741
    %v3745 = vshrl.u32 2475754826, %v3742
    %v3746 = vor.u32 %v3744, %v3745
    %v3747 = vshll.u32 2475754826, %v3741
    %v3748 = vshrl.u32 2131351028, %v3742
    %v3749 = vor.u32 %v3747, %v3748
    %v3750 = vshll.u32 2131351028, %v3741
    %v3751 = vshrl.u32 2102212464, %v3742
    %v3752 = vor.u32 %v3750, %v3751
    %v3753 = vshll.u32 2102212464, %v3741
    %v3754 = vshrl.u32 920167782, %v3742
    %v3755 = vor.u32 %v3753, %v3754
    %v3756 = vshll.u32 920167782, %v3741
    %v3757 = vshrl.u32 1326507024, %v3742
    %v3758 = vor.u32 %v3756, %v3757
    %vm3759 = vcmp.lt.s32.totalorder %v3740, 1
    %vm3760 = vcmp.lt.s32.totalorder %v3740, 2
    %vm3761 = vcmp.lt.s32.totalorder %v3740, 3
    %vm3762 = vcmp.lt.s32.totalorder %v3740, 4
    %v3763 = vsel %vm3759, %v3743, %v3746
    %v3764 = vsel %vm3762, %v3752, 2102212464
    %v3765 = vsel %vm3761, %v3749, %v3764
    %v3766 = vsel %vm3760, %v3763, %v3765
    %v3767 = vsel %vm3759, %v3746, %v3749
    %v3768 = vsel %vm3762, %v3755, 920167782
    %v3769 = vsel %vm3761, %v3752, %v3768
    %v3770 = vsel %vm3760, %v3767, %v3769
    %v3771 = vsel %vm3759, %v3749, %v3752
    %v3772 = vsel %vm3762, %v3758, 1326507024
    %v3773 = vsel %vm3761, %v3755, %v3772
    %v3774 = vsel %vm3760, %v3771, %v3773
    %v3775 = vshll.u32 %v3735, 8
    %v3776 = vmul.u32.u64.compose %v3775, %v3774
    %v3777 = vextract.low.u32 %v3776
    %v3778 = vextract.high.u32 %v3776
    %v3779 = vmul.u32.u64.compose %v3775, %v3770
    %v3780 = vextract.low.u32 %v3779
    %v3781 = vextract.high.u32 %v3779
    %v3782 = vmul.u32 %v3775, %v3766
    %v3783 = vadd.s32 %v3778, %v3780
    %vm3784 = vc.u32 %v3778, %v3780
    %v3785 = vadd.s32 %v3781, 1
    %v3786 = vsel %vm3784, %v3785, %v3781
    %v3787 = vadd.s32 %v3782, %v3786
    %v3788 = vadd.s32 %v3787, 536870912
    %v3789 = vshrl.u32 %v3788, 30
    %v3790 = vshll.u32 %v3789, 30
    %v3791 = vsub.s32 %v3787, %v3790
    %vm3792 = vcmp.lt.s32.totalorder %v3791, 0
    %v3793 = vsub.s32 0, %v3791
    %v3794 = vsel %vm3792, %v3793, %v3791
    %v3795 = vclz %v3794
    %v3796 = vsub.s32 %v3795, 2
    %vm3797 = vcmp.gt.s32.totalorder 0, %v3796
    %v3798 = vsel %vm3797, 0, %v3796
    %v3799 = vsub.s32 32, %v3798
    %v3800 = vshll.u32 %v3791, %v3798
    %v3801 = vshrl.u32 %v3783, %v3799
    %v3802 = vor.u32 %v3800, %v3801
    %v3803 = vsub.s32 4294967266, %v3798
    %v3804 = vadd.s32 %v3803, 127
    %v3805 = vshll.u32 %v3804, 23
    %v3806 = vor.u32 4788187, %v3805
    %v3807 = vand.u32 2147483647, %v3806
    %v3809 = vcvt.s32.f32 %v3802
    %v3810 = vmul.f32 %v3809, %v3807
    %v3811 = vxor.u32 %v3810, 2147483648
    %v3812 = vsel %vm3729, %v3811, %v3810
    %v3813 = vsub.s32 4, %v3789
    %v3814 = vsel %vm3729, %v3813, %v3789
    %v3815 = vsel %vm3728, %v2969, %v3812
    %v3816 = vsel %vm3728, 0, %v3814
    %v3817 = vcosq.f32.pop %v3815
    %v3818 = vsinq.f32.pop %v3815
    %vm3819 = vweird.f32 %v2969
    %v3820 = vadd.s32 %v3816, 3
    %v3821 = vand.u32 %v3820, 3
    %vm3822 = vcmp.lt.s32.totalorder %v3821, 2
    %vm3823 = vcmp.eq.s32.totalorder %v3821, 0
    %v3824 = vxor.u32 %v3818, 2147483648
    %v3825 = vsel %vm3823, %v3817, %v3824
    %vm3826 = vcmp.eq.s32.totalorder %v3821, 2
    %v3827 = vxor.u32 %v3817, 2147483648
    %v3828 = vsel %vm3826, %v3827, %v3818
    %v3829 = vsel %vm3822, %v3825, %v3828
    %v3830 = vsel %vm3819, nan, %v3829
    %v3831 = vand.u32 2147483647, %v2974
    %vm3832 = vcmp.le.f32.partialorder %v3831, 0.7853982
    %vm3833 = vcmp.lt.s32.totalorder %v2974, 0
    %v3834 = vand.u32 %v2974, 2139095040
    %v3835 = vshrl.u32 %v3834, 23
    %v3836 = vsub.s32 %v3835, 127
    %v3837 = vand.u32 2147483647, %v2974
    %v3838 = vand.u32 %v3837, 8388607
    %v3839 = vor.u32 %v3838, 8388608
    %v3840 = vsub.s32 0, %v3839
    %v3841 = vadd.s32 %v3836, 1
    %vm3842 = vcmp.gt.s32.totalorder %v3841, 0
    %v3843 = vsel %vm3842, %v3841, 0
    %v3844 = vshrl.u32 %v3843, 5
    %v3845 = vand.u32 %v3843, 31
    %v3846 = vsub.s32 32, %v3845
    %v3847 = vshrl.u32 683565275, %v3846
    %v3848 = vshll.u32 683565275, %v3845
    %v3849 = vshrl.u32 2475754826, %v3846
    %v3850 = vor.u32 %v3848, %v3849
    %v3851 = vshll.u32 2475754826, %v3845
    %v3852 = vshrl.u32 2131351028, %v3846
    %v3853 = vor.u32 %v3851, %v3852
    %v3854 = vshll.u32 2131351028, %v3845
    %v3855 = vshrl.u32 2102212464, %v3846
    %v3856 = vor.u32 %v3854, %v3855
    %v3857 = vshll.u32 2102212464, %v3845
    %v3858 = vshrl.u32 920167782, %v3846
    %v3859 = vor.u32 %v3857, %v3858
    %v3860 = vshll.u32 920167782, %v3845
    %v3861 = vshrl.u32 1326507024, %v3846
    %v3862 = vor.u32 %v3860, %v3861
    %vm3863 = vcmp.lt.s32.totalorder %v3844, 1
    %vm3864 = vcmp.lt.s32.totalorder %v3844, 2
    %vm3865 = vcmp.lt.s32.totalorder %v3844, 3
    %vm3866 = vcmp.lt.s32.totalorder %v3844, 4
    %v3867 = vsel %vm3863, %v3847, %v3850
    %v3868 = vsel %vm3866, %v3856, 2102212464
    %v3869 = vsel %vm3865, %v3853, %v3868
    %v3870 = vsel %vm3864, %v3867, %v3869
    %v3871 = vsel %vm3863, %v3850, %v3853
    %v3872 = vsel %vm3866, %v3859, 920167782
    %v3873 = vsel %vm3865, %v3856, %v3872
    %v3874 = vsel %vm3864, %v3871, %v3873
    %v3875 = vsel %vm3863, %v3853, %v3856
    %v3876 = vsel %vm3866, %v3862, 1326507024
    %v3877 = vsel %vm3865, %v3859, %v3876
    %v3878 = vsel %vm3864, %v3875, %v3877
    %v3879 = vshll.u32 %v3839, 8
    %v3880 = vmul.u32.u64.compose %v3879, %v3878
    %v3881 = vextract.low.u32 %v3880
    %v3882 = vextract.high.u32 %v3880
    %v3883 = vmul.u32.u64.compose %v3879, %v3874
    %v3884 = vextract.low.u32 %v3883
    %v3885 = vextract.high.u32 %v3883
    %v3886 = vmul.u32 %v3879, %v3870
    %v3887 = vadd.s32 %v3882, %v3884
    %vm3888 = vc.u32 %v3882, %v3884
    %v3889 = vadd.s32 %v3885, 1
    %v3890 = vsel %vm3888, %v3889, %v3885
    %v3891 = vadd.s32 %v3886, %v3890
    %v3892 = vadd.s32 %v3891, 536870912
    %v3893 = vshrl.u32 %v3892, 30
    %v3894 = vshll.u32 %v3893, 30
    %v3895 = vsub.s32 %v3891, %v3894
    %vm3896 = vcmp.lt.s32.totalorder %v3895, 0
    %v3897 = vsub.s32 0, %v3895
    %v3898 = vsel %vm3896, %v3897, %v3895
    %v3899 = vclz %v3898
    %v3900 = vsub.s32 %v3899, 2
    %vm3901 = vcmp.gt.s32.totalorder 0, %v3900
    %v3902 = vsel %vm3901, 0, %v3900
    %v3903 = vsub.s32 32, %v3902
    %v3904 = vshll.u32 %v3895, %v3902
    %v3905 = vshrl.u32 %v3887, %v3903
    %v3906 = vor.u32 %v3904, %v3905
    %v3907 = vsub.s32 4294967266, %v3902
    %v3908 = vadd.s32 %v3907, 127
    %v3909 = vshll.u32 %v3908, 23
    %v3910 = vor.u32 4788187, %v3909
    %v3911 = vand.u32 2147483647, %v3910
    %v3913 = vcvt.s32.f32 %v3906
    %v3914 = vmul.f32 %v3913, %v3911
    %v3915 = vxor.u32 %v3914, 2147483648
    %v3916 = vsel %vm3833, %v3915, %v3914
    %v3917 = vsub.s32 4, %v3893
    %v3918 = vsel %vm3833, %v3917, %v3893
    %v3919 = vsel %vm3832, %v2974, %v3916
    %v3920 = vsel %vm3832, 0, %v3918
    %v3921 = vcosq.f32.pop %v3919
    %v3922 = vsinq.f32.pop %v3919
    %vm3923 = vweird.f32 %v2974
    %v3924 = vadd.s32 %v3920, 3
    %v3925 = vand.u32 %v3924, 3
    %vm3926 = vcmp.lt.s32.totalorder %v3925, 2
    %vm3927 = vcmp.eq.s32.totalorder %v3925, 0
    %v3928 = vxor.u32 %v3922, 2147483648
    %v3929 = vsel %vm3927, %v3921, %v3928
    %vm3930 = vcmp.eq.s32.totalorder %v3925, 2
    %v3931 = vxor.u32 %v3921, 2147483648
    %v3932 = vsel %vm3930, %v3931, %v3922
    %v3933 = vsel %vm3926, %v3929, %v3932
    %v3934 = vsel %vm3923, nan, %v3933
    %v3935 = vand.u32 2147483647, %v2976
    %vm3936 = vcmp.le.f32.partialorder %v3935, 0.7853982
    %vm3937 = vcmp.lt.s32.totalorder %v2976, 0
    %v3938 = vand.u32 %v2976, 2139095040
    %v3939 = vshrl.u32 %v3938, 23
    %v3940 = vsub.s32 %v3939, 127
    %v3941 = vand.u32 2147483647, %v2976
    %v3942 = vand.u32 %v3941, 8388607
    %v3943 = vor.u32 %v3942, 8388608
    %v3944 = vsub.s32 0, %v3943
    %v3945 = vadd.s32 %v3940, 1
    %vm3946 = vcmp.gt.s32.totalorder %v3945, 0
    %v3947 = vsel %vm3946, %v3945, 0
    %v3948 = vshrl.u32 %v3947, 5
    %v3949 = vand.u32 %v3947, 31
    %v3950 = vsub.s32 32, %v3949
    %v3951 = vshrl.u32 683565275, %v3950
    %v3952 = vshll.u32 683565275, %v3949
    %v3953 = vshrl.u32 2475754826, %v3950
    %v3954 = vor.u32 %v3952, %v3953
    %v3955 = vshll.u32 2475754826, %v3949
    %v3956 = vshrl.u32 2131351028, %v3950
    %v3957 = vor.u32 %v3955, %v3956
    %v3958 = vshll.u32 2131351028, %v3949
    %v3959 = vshrl.u32 2102212464, %v3950
    %v3960 = vor.u32 %v3958, %v3959
    %v3961 = vshll.u32 2102212464, %v3949
    %v3962 = vshrl.u32 920167782, %v3950
    %v3963 = vor.u32 %v3961, %v3962
    %v3964 = vshll.u32 920167782, %v3949
    %v3965 = vshrl.u32 1326507024, %v3950
    %v3966 = vor.u32 %v3964, %v3965
    %vm3967 = vcmp.lt.s32.totalorder %v3948, 1
    %vm3968 = vcmp.lt.s32.totalorder %v3948, 2
    %vm3969 = vcmp.lt.s32.totalorder %v3948, 3
    %vm3970 = vcmp.lt.s32.totalorder %v3948, 4
    %v3971 = vsel %vm3967, %v3951, %v3954
    %v3972 = vsel %vm3970, %v3960, 2102212464
    %v3973 = vsel %vm3969, %v3957, %v3972
    %v3974 = vsel %vm3968, %v3971, %v3973
    %v3975 = vsel %vm3967, %v3954, %v3957
    %v3976 = vsel %vm3970, %v3963, 920167782
    %v3977 = vsel %vm3969, %v3960, %v3976
    %v3978 = vsel %vm3968, %v3975, %v3977
    %v3979 = vsel %vm3967, %v3957, %v3960
    %v3980 = vsel %vm3970, %v3966, 1326507024
    %v3981 = vsel %vm3969, %v3963, %v3980
    %v3982 = vsel %vm3968, %v3979, %v3981
    %v3983 = vshll.u32 %v3943, 8
    %v3984 = vmul.u32.u64.compose %v3983, %v3982
    %v3985 = vextract.low.u32 %v3984
    %v3986 = vextract.high.u32 %v3984
    %v3987 = vmul.u32.u64.compose %v3983, %v3978
    %v3988 = vextract.low.u32 %v3987
    %v3989 = vextract.high.u32 %v3987
    %v3990 = vmul.u32 %v3983, %v3974
    %v3991 = vadd.s32 %v3986, %v3988
    %vm3992 = vc.u32 %v3986, %v3988
    %v3993 = vadd.s32 %v3989, 1
    %v3994 = vsel %vm3992, %v3993, %v3989
    %v3995 = vadd.s32 %v3990, %v3994
    %v3996 = vadd.s32 %v3995, 536870912
    %v3997 = vshrl.u32 %v3996, 30
    %v3998 = vshll.u32 %v3997, 30
    %v3999 = vsub.s32 %v3995, %v3998
    %vm4000 = vcmp.lt.s32.totalorder %v3999, 0
    %v4001 = vsub.s32 0, %v3999
    %v4002 = vsel %vm4000, %v4001, %v3999
    %v4003 = vclz %v4002
    %v4004 = vsub.s32 %v4003, 2
    %vm4005 = vcmp.gt.s32.totalorder 0, %v4004
    %v4006 = vsel %vm4005, 0, %v4004
    %v4007 = vsub.s32 32, %v4006
    %v4008 = vshll.u32 %v3999, %v4006
    %v4009 = vshrl.u32 %v3991, %v4007
    %v4010 = vor.u32 %v4008, %v4009
    %v4011 = vsub.s32 4294967266, %v4006
    %v4012 = vadd.s32 %v4011, 127
    %v4013 = vshll.u32 %v4012, 23
    %v4014 = vor.u32 4788187, %v4013
    %v4015 = vand.u32 2147483647, %v4014
    %v4017 = vcvt.s32.f32 %v4010
    %v4018 = vmul.f32 %v4017, %v4015
    %v4019 = vxor.u32 %v4018, 2147483648
    %v4020 = vsel %vm3937, %v4019, %v4018
    %v4021 = vsub.s32 4, %v3997
    %v4022 = vsel %vm3937, %v4021, %v3997
    %v4023 = vsel %vm3936, %v2976, %v4020
    %v4024 = vsel %vm3936, 0, %v4022
    %v4025 = vcosq.f32.pop %v4023
    %v4026 = vsinq.f32.pop %v4023
    %vm4027 = vweird.f32 %v2976
    %v4028 = vadd.s32 %v4024, 3
    %v4029 = vand.u32 %v4028, 3
    %vm4030 = vcmp.lt.s32.totalorder %v4029, 2
    %vm4031 = vcmp.eq.s32.totalorder %v4029, 0
    %v4032 = vxor.u32 %v4026, 2147483648
    %v4033 = vsel %vm4031, %v4025, %v4032
    %vm4034 = vcmp.eq.s32.totalorder %v4029, 2
    %v4035 = vxor.u32 %v4025, 2147483648
    %v4036 = vsel %vm4034, %v4035, %v4026
    %v4037 = vsel %vm4030, %v4033, %v4036
    %v4038 = vsel %vm4027, nan, %v4037
    %v4039 = vand.u32 2147483647, %v2981
    %vm4040 = vcmp.le.f32.partialorder %v4039, 0.7853982
    %vm4041 = vcmp.lt.s32.totalorder %v2981, 0
    %v4042 = vand.u32 %v2981, 2139095040
    %v4043 = vshrl.u32 %v4042, 23
    %v4044 = vsub.s32 %v4043, 127
    %v4045 = vand.u32 2147483647, %v2981
    %v4046 = vand.u32 %v4045, 8388607
    %v4047 = vor.u32 %v4046, 8388608
    %v4048 = vsub.s32 0, %v4047
    %v4049 = vadd.s32 %v4044, 1
    %vm4050 = vcmp.gt.s32.totalorder %v4049, 0
    %v4051 = vsel %vm4050, %v4049, 0
    %v4052 = vshrl.u32 %v4051, 5
    %v4053 = vand.u32 %v4051, 31
    %v4054 = vsub.s32 32, %v4053
    %v4055 = vshrl.u32 683565275, %v4054
    %v4056 = vshll.u32 683565275, %v4053
    %v4057 = vshrl.u32 2475754826, %v4054
    %v4058 = vor.u32 %v4056, %v4057
    %v4059 = vshll.u32 2475754826, %v4053
    %v4060 = vshrl.u32 2131351028, %v4054
    %v4061 = vor.u32 %v4059, %v4060
    %v4062 = vshll.u32 2131351028, %v4053
    %v4063 = vshrl.u32 2102212464, %v4054
    %v4064 = vor.u32 %v4062, %v4063
    %v4065 = vshll.u32 2102212464, %v4053
    %v4066 = vshrl.u32 920167782, %v4054
    %v4067 = vor.u32 %v4065, %v4066
    %v4068 = vshll.u32 920167782, %v4053
    %v4069 = vshrl.u32 1326507024, %v4054
    %v4070 = vor.u32 %v4068, %v4069
    %vm4071 = vcmp.lt.s32.totalorder %v4052, 1
    %vm4072 = vcmp.lt.s32.totalorder %v4052, 2
    %vm4073 = vcmp.lt.s32.totalorder %v4052, 3
    %vm4074 = vcmp.lt.s32.totalorder %v4052, 4
    %v4075 = vsel %vm4071, %v4055, %v4058
    %v4076 = vsel %vm4074, %v4064, 2102212464
    %v4077 = vsel %vm4073, %v4061, %v4076
    %v4078 = vsel %vm4072, %v4075, %v4077
    %v4079 = vsel %vm4071, %v4058, %v4061
    %v4080 = vsel %vm4074, %v4067, 920167782
    %v4081 = vsel %vm4073, %v4064, %v4080
    %v4082 = vsel %vm4072, %v4079, %v4081
    %v4083 = vsel %vm4071, %v4061, %v4064
    %v4084 = vsel %vm4074, %v4070, 1326507024
    %v4085 = vsel %vm4073, %v4067, %v4084
    %v4086 = vsel %vm4072, %v4083, %v4085
    %v4087 = vshll.u32 %v4047, 8
    %v4088 = vmul.u32.u64.compose %v4087, %v4086
    %v4089 = vextract.low.u32 %v4088
    %v4090 = vextract.high.u32 %v4088
    %v4091 = vmul.u32.u64.compose %v4087, %v4082
    %v4092 = vextract.low.u32 %v4091
    %v4093 = vextract.high.u32 %v4091
    %v4094 = vmul.u32 %v4087, %v4078
    %v4095 = vadd.s32 %v4090, %v4092
    %vm4096 = vc.u32 %v4090, %v4092
    %v4097 = vadd.s32 %v4093, 1
    %v4098 = vsel %vm4096, %v4097, %v4093
    %v4099 = vadd.s32 %v4094, %v4098
    %v4100 = vadd.s32 %v4099, 536870912
    %v4101 = vshrl.u32 %v4100, 30
    %v4102 = vshll.u32 %v4101, 30
    %v4103 = vsub.s32 %v4099, %v4102
    %vm4104 = vcmp.lt.s32.totalorder %v4103, 0
    %v4105 = vsub.s32 0, %v4103
    %v4106 = vsel %vm4104, %v4105, %v4103
    %v4107 = vclz %v4106
    %v4108 = vsub.s32 %v4107, 2
    %vm4109 = vcmp.gt.s32.totalorder 0, %v4108
    %v4110 = vsel %vm4109, 0, %v4108
    %v4111 = vsub.s32 32, %v4110
    %v4112 = vshll.u32 %v4103, %v4110
    %v4113 = vshrl.u32 %v4095, %v4111
    %v4114 = vor.u32 %v4112, %v4113
    %v4115 = vsub.s32 4294967266, %v4110
    %v4116 = vadd.s32 %v4115, 127
    %v4117 = vshll.u32 %v4116, 23
    %v4118 = vor.u32 4788187, %v4117
    %v4119 = vand.u32 2147483647, %v4118
    %v4121 = vcvt.s32.f32 %v4114
    %v4122 = vmul.f32 %v4121, %v4119
    %v4123 = vxor.u32 %v4122, 2147483648
    %v4124 = vsel %vm4041, %v4123, %v4122
    %v4125 = vsub.s32 4, %v4101
    %v4126 = vsel %vm4041, %v4125, %v4101
    %v4127 = vsel %vm4040, %v2981, %v4124
    %v4128 = vsel %vm4040, 0, %v4126
    %v4129 = vcosq.f32.pop %v4127
    %v4130 = vsinq.f32.pop %v4127
    %vm4131 = vweird.f32 %v2981
    %v4132 = vadd.s32 %v4128, 3
    %v4133 = vand.u32 %v4132, 3
    %vm4134 = vcmp.lt.s32.totalorder %v4133, 2
    %vm4135 = vcmp.eq.s32.totalorder %v4133, 0
    %v4136 = vxor.u32 %v4130, 2147483648
    %v4137 = vsel %vm4135, %v4129, %v4136
    %vm4138 = vcmp.eq.s32.totalorder %v4133, 2
    %v4139 = vxor.u32 %v4129, 2147483648
    %v4140 = vsel %vm4138, %v4139, %v4130
    %v4141 = vsel %vm4134, %v4137, %v4140
    %v4142 = vsel %vm4131, nan, %v4141
    %v4143 = vand.u32 2147483647, %v2983
    %vm4144 = vcmp.le.f32.partialorder %v4143, 0.7853982
    %vm4145 = vcmp.lt.s32.totalorder %v2983, 0
    %v4146 = vand.u32 %v2983, 2139095040
    %v4147 = vshrl.u32 %v4146, 23
    %v4148 = vsub.s32 %v4147, 127
    %v4149 = vand.u32 2147483647, %v2983
    %v4150 = vand.u32 %v4149, 8388607
    %v4151 = vor.u32 %v4150, 8388608
    %v4152 = vsub.s32 0, %v4151
    %v4153 = vadd.s32 %v4148, 1
    %vm4154 = vcmp.gt.s32.totalorder %v4153, 0
    %v4155 = vsel %vm4154, %v4153, 0
    %v4156 = vshrl.u32 %v4155, 5
    %v4157 = vand.u32 %v4155, 31
    %v4158 = vsub.s32 32, %v4157
    %v4159 = vshrl.u32 683565275, %v4158
    %v4160 = vshll.u32 683565275, %v4157
    %v4161 = vshrl.u32 2475754826, %v4158
    %v4162 = vor.u32 %v4160, %v4161
    %v4163 = vshll.u32 2475754826, %v4157
    %v4164 = vshrl.u32 2131351028, %v4158
    %v4165 = vor.u32 %v4163, %v4164
    %v4166 = vshll.u32 2131351028, %v4157
    %v4167 = vshrl.u32 2102212464, %v4158
    %v4168 = vor.u32 %v4166, %v4167
    %v4169 = vshll.u32 2102212464, %v4157
    %v4170 = vshrl.u32 920167782, %v4158
    %v4171 = vor.u32 %v4169, %v4170
    %v4172 = vshll.u32 920167782, %v4157
    %v4173 = vshrl.u32 1326507024, %v4158
    %v4174 = vor.u32 %v4172, %v4173
    %vm4175 = vcmp.lt.s32.totalorder %v4156, 1
    %vm4176 = vcmp.lt.s32.totalorder %v4156, 2
    %vm4177 = vcmp.lt.s32.totalorder %v4156, 3
    %vm4178 = vcmp.lt.s32.totalorder %v4156, 4
    %v4179 = vsel %vm4175, %v4159, %v4162
    %v4180 = vsel %vm4178, %v4168, 2102212464
    %v4181 = vsel %vm4177, %v4165, %v4180
    %v4182 = vsel %vm4176, %v4179, %v4181
    %v4183 = vsel %vm4175, %v4162, %v4165
    %v4184 = vsel %vm4178, %v4171, 920167782
    %v4185 = vsel %vm4177, %v4168, %v4184
    %v4186 = vsel %vm4176, %v4183, %v4185
    %v4187 = vsel %vm4175, %v4165, %v4168
    %v4188 = vsel %vm4178, %v4174, 1326507024
    %v4189 = vsel %vm4177, %v4171, %v4188
    %v4190 = vsel %vm4176, %v4187, %v4189
    %v4191 = vshll.u32 %v4151, 8
    %v4192 = vmul.u32.u64.compose %v4191, %v4190
    %v4193 = vextract.low.u32 %v4192
    %v4194 = vextract.high.u32 %v4192
    %v4195 = vmul.u32.u64.compose %v4191, %v4186
    %v4196 = vextract.low.u32 %v4195
    %v4197 = vextract.high.u32 %v4195
    %v4198 = vmul.u32 %v4191, %v4182
    %v4199 = vadd.s32 %v4194, %v4196
    %vm4200 = vc.u32 %v4194, %v4196
    %v4201 = vadd.s32 %v4197, 1
    %v4202 = vsel %vm4200, %v4201, %v4197
    %v4203 = vadd.s32 %v4198, %v4202
    %v4204 = vadd.s32 %v4203, 536870912
    %v4205 = vshrl.u32 %v4204, 30
    %v4206 = vshll.u32 %v4205, 30
    %v4207 = vsub.s32 %v4203, %v4206
    %vm4208 = vcmp.lt.s32.totalorder %v4207, 0
    %v4209 = vsub.s32 0, %v4207
    %v4210 = vsel %vm4208, %v4209, %v4207
    %v4211 = vclz %v4210
    %v4212 = vsub.s32 %v4211, 2
    %vm4213 = vcmp.gt.s32.totalorder 0, %v4212
    %v4214 = vsel %vm4213, 0, %v4212
    %v4215 = vsub.s32 32, %v4214
    %v4216 = vshll.u32 %v4207, %v4214
    %v4217 = vshrl.u32 %v4199, %v4215
    %v4218 = vor.u32 %v4216, %v4217
    %v4219 = vsub.s32 4294967266, %v4214
    %v4220 = vadd.s32 %v4219, 127
    %v4221 = vshll.u32 %v4220, 23
    %v4222 = vor.u32 4788187, %v4221
    %v4223 = vand.u32 2147483647, %v4222
    %v4225 = vcvt.s32.f32 %v4218
    %v4226 = vmul.f32 %v4225, %v4223
    %v4227 = vxor.u32 %v4226, 2147483648
    %v4228 = vsel %vm4145, %v4227, %v4226
    %v4229 = vsub.s32 4, %v4205
    %v4230 = vsel %vm4145, %v4229, %v4205
    %v4231 = vsel %vm4144, %v2983, %v4228
    %v4232 = vsel %vm4144, 0, %v4230
    %v4233 = vcosq.f32.pop %v4231
    %v4234 = vsinq.f32.pop %v4231
    %vm4235 = vweird.f32 %v2983
    %v4236 = vadd.s32 %v4232, 3
    %v4237 = vand.u32 %v4236, 3
    %vm4238 = vcmp.lt.s32.totalorder %v4237, 2
    %vm4239 = vcmp.eq.s32.totalorder %v4237, 0
    %v4240 = vxor.u32 %v4234, 2147483648
    %v4241 = vsel %vm4239, %v4233, %v4240
    %vm4242 = vcmp.eq.s32.totalorder %v4237, 2
    %v4243 = vxor.u32 %v4233, 2147483648
    %v4244 = vsel %vm4242, %v4243, %v4234
    %v4245 = vsel %vm4238, %v4241, %v4244
    %v4246 = vsel %vm4235, nan, %v4245
    %v4247 = vand.u32 2147483647, %v2988
    %vm4248 = vcmp.le.f32.partialorder %v4247, 0.7853982
    %vm4249 = vcmp.lt.s32.totalorder %v2988, 0
    %v4250 = vand.u32 %v2988, 2139095040
    %v4251 = vshrl.u32 %v4250, 23
    %v4252 = vsub.s32 %v4251, 127
    %v4253 = vand.u32 2147483647, %v2988
    %v4254 = vand.u32 %v4253, 8388607
    %v4255 = vor.u32 %v4254, 8388608
    %v4256 = vsub.s32 0, %v4255
    %v4257 = vadd.s32 %v4252, 1
    %vm4258 = vcmp.gt.s32.totalorder %v4257, 0
    %v4259 = vsel %vm4258, %v4257, 0
    %v4260 = vshrl.u32 %v4259, 5
    %v4261 = vand.u32 %v4259, 31
    %v4262 = vsub.s32 32, %v4261
    %v4263 = vshrl.u32 683565275, %v4262
    %v4264 = vshll.u32 683565275, %v4261
    %v4265 = vshrl.u32 2475754826, %v4262
    %v4266 = vor.u32 %v4264, %v4265
    %v4267 = vshll.u32 2475754826, %v4261
    %v4268 = vshrl.u32 2131351028, %v4262
    %v4269 = vor.u32 %v4267, %v4268
    %v4270 = vshll.u32 2131351028, %v4261
    %v4271 = vshrl.u32 2102212464, %v4262
    %v4272 = vor.u32 %v4270, %v4271
    %v4273 = vshll.u32 2102212464, %v4261
    %v4274 = vshrl.u32 920167782, %v4262
    %v4275 = vor.u32 %v4273, %v4274
    %v4276 = vshll.u32 920167782, %v4261
    %v4277 = vshrl.u32 1326507024, %v4262
    %v4278 = vor.u32 %v4276, %v4277
    %vm4279 = vcmp.lt.s32.totalorder %v4260, 1
    %vm4280 = vcmp.lt.s32.totalorder %v4260, 2
    %vm4281 = vcmp.lt.s32.totalorder %v4260, 3
    %vm4282 = vcmp.lt.s32.totalorder %v4260, 4
    %v4283 = vsel %vm4279, %v4263, %v4266
    %v4284 = vsel %vm4282, %v4272, 2102212464
    %v4285 = vsel %vm4281, %v4269, %v4284
    %v4286 = vsel %vm4280, %v4283, %v4285
    %v4287 = vsel %vm4279, %v4266, %v4269
    %v4288 = vsel %vm4282, %v4275, 920167782
    %v4289 = vsel %vm4281, %v4272, %v4288
    %v4290 = vsel %vm4280, %v4287, %v4289
    %v4291 = vsel %vm4279, %v4269, %v4272
    %v4292 = vsel %vm4282, %v4278, 1326507024
    %v4293 = vsel %vm4281, %v4275, %v4292
    %v4294 = vsel %vm4280, %v4291, %v4293
    %v4295 = vshll.u32 %v4255, 8
    %v4296 = vmul.u32.u64.compose %v4295, %v4294
    %v4297 = vextract.low.u32 %v4296
    %v4298 = vextract.high.u32 %v4296
    %v4299 = vmul.u32.u64.compose %v4295, %v4290
    %v4300 = vextract.low.u32 %v4299
    %v4301 = vextract.high.u32 %v4299
    %v4302 = vmul.u32 %v4295, %v4286
    %v4303 = vadd.s32 %v4298, %v4300
    %vm4304 = vc.u32 %v4298, %v4300
    %v4305 = vadd.s32 %v4301, 1
    %v4306 = vsel %vm4304, %v4305, %v4301
    %v4307 = vadd.s32 %v4302, %v4306
    %v4308 = vadd.s32 %v4307, 536870912
    %v4309 = vshrl.u32 %v4308, 30
    %v4310 = vshll.u32 %v4309, 30
    %v4311 = vsub.s32 %v4307, %v4310
    %vm4312 = vcmp.lt.s32.totalorder %v4311, 0
    %v4313 = vsub.s32 0, %v4311
    %v4314 = vsel %vm4312, %v4313, %v4311
    %v4315 = vclz %v4314
    %v4316 = vsub.s32 %v4315, 2
    %vm4317 = vcmp.gt.s32.totalorder 0, %v4316
    %v4318 = vsel %vm4317, 0, %v4316
    %v4319 = vsub.s32 32, %v4318
    %v4320 = vshll.u32 %v4311, %v4318
    %v4321 = vshrl.u32 %v4303, %v4319
    %v4322 = vor.u32 %v4320, %v4321
    %v4323 = vsub.s32 4294967266, %v4318
    %v4324 = vadd.s32 %v4323, 127
    %v4325 = vshll.u32 %v4324, 23
    %v4326 = vor.u32 4788187, %v4325
    %v4327 = vand.u32 2147483647, %v4326
    %v4329 = vcvt.s32.f32 %v4322
    %v4330 = vmul.f32 %v4329, %v4327
    %v4331 = vxor.u32 %v4330, 2147483648
    %v4332 = vsel %vm4249, %v4331, %v4330
    %v4333 = vsub.s32 4, %v4309
    %v4334 = vsel %vm4249, %v4333, %v4309
    %v4335 = vsel %vm4248, %v2988, %v4332
    %v4336 = vsel %vm4248, 0, %v4334
    %v4337 = vcosq.f32.pop %v4335
    %v4338 = vsinq.f32.pop %v4335
    %vm4339 = vweird.f32 %v2988
    %v4340 = vadd.s32 %v4336, 3
    %v4341 = vand.u32 %v4340, 3
    %vm4342 = vcmp.lt.s32.totalorder %v4341, 2
    %vm4343 = vcmp.eq.s32.totalorder %v4341, 0
    %v4344 = vxor.u32 %v4338, 2147483648
    %v4345 = vsel %vm4343, %v4337, %v4344
    %vm4346 = vcmp.eq.s32.totalorder %v4341, 2
    %v4347 = vxor.u32 %v4337, 2147483648
    %v4348 = vsel %vm4346, %v4347, %v4338
    %v4349 = vsel %vm4342, %v4345, %v4348
    %v4350 = vsel %vm4339, nan, %v4349
    %v4351 = vand.u32 2147483647, %v2990
    %vm4352 = vcmp.le.f32.partialorder %v4351, 0.7853982
    %vm4353 = vcmp.lt.s32.totalorder %v2990, 0
    %v4354 = vand.u32 %v2990, 2139095040
    %v4355 = vshrl.u32 %v4354, 23
    %v4356 = vsub.s32 %v4355, 127
    %v4357 = vand.u32 2147483647, %v2990
    %v4358 = vand.u32 %v4357, 8388607
    %v4359 = vor.u32 %v4358, 8388608
    %v4360 = vsub.s32 0, %v4359
    %v4361 = vadd.s32 %v4356, 1
    %vm4362 = vcmp.gt.s32.totalorder %v4361, 0
    %v4363 = vsel %vm4362, %v4361, 0
    %v4364 = vshrl.u32 %v4363, 5
    %v4365 = vand.u32 %v4363, 31
    %v4366 = vsub.s32 32, %v4365
    %v4367 = vshrl.u32 683565275, %v4366
    %v4368 = vshll.u32 683565275, %v4365
    %v4369 = vshrl.u32 2475754826, %v4366
    %v4370 = vor.u32 %v4368, %v4369
    %v4371 = vshll.u32 2475754826, %v4365
    %v4372 = vshrl.u32 2131351028, %v4366
    %v4373 = vor.u32 %v4371, %v4372
    %v4374 = vshll.u32 2131351028, %v4365
    %v4375 = vshrl.u32 2102212464, %v4366
    %v4376 = vor.u32 %v4374, %v4375
    %v4377 = vshll.u32 2102212464, %v4365
    %v4378 = vshrl.u32 920167782, %v4366
    %v4379 = vor.u32 %v4377, %v4378
    %v4380 = vshll.u32 920167782, %v4365
    %v4381 = vshrl.u32 1326507024, %v4366
    %v4382 = vor.u32 %v4380, %v4381
    %vm4383 = vcmp.lt.s32.totalorder %v4364, 1
    %vm4384 = vcmp.lt.s32.totalorder %v4364, 2
    %vm4385 = vcmp.lt.s32.totalorder %v4364, 3
    %vm4386 = vcmp.lt.s32.totalorder %v4364, 4
    %v4387 = vsel %vm4383, %v4367, %v4370
    %v4388 = vsel %vm4386, %v4376, 2102212464
    %v4389 = vsel %vm4385, %v4373, %v4388
    %v4390 = vsel %vm4384, %v4387, %v4389
    %v4391 = vsel %vm4383, %v4370, %v4373
    %v4392 = vsel %vm4386, %v4379, 920167782
    %v4393 = vsel %vm4385, %v4376, %v4392
    %v4394 = vsel %vm4384, %v4391, %v4393
    %v4395 = vsel %vm4383, %v4373, %v4376
    %v4396 = vsel %vm4386, %v4382, 1326507024
    %v4397 = vsel %vm4385, %v4379, %v4396
    %v4398 = vsel %vm4384, %v4395, %v4397
    %v4399 = vshll.u32 %v4359, 8
    %v4400 = vmul.u32.u64.compose %v4399, %v4398
    %v4401 = vextract.low.u32 %v4400
    %v4402 = vextract.high.u32 %v4400
    %v4403 = vmul.u32.u64.compose %v4399, %v4394
    %v4404 = vextract.low.u32 %v4403
    %v4405 = vextract.high.u32 %v4403
    %v4406 = vmul.u32 %v4399, %v4390
    %v4407 = vadd.s32 %v4402, %v4404
    %vm4408 = vc.u32 %v4402, %v4404
    %v4409 = vadd.s32 %v4405, 1
    %v4410 = vsel %vm4408, %v4409, %v4405
    %v4411 = vadd.s32 %v4406, %v4410
    %v4412 = vadd.s32 %v4411, 536870912
    %v4413 = vshrl.u32 %v4412, 30
    %v4414 = vshll.u32 %v4413, 30
    %v4415 = vsub.s32 %v4411, %v4414
    %vm4416 = vcmp.lt.s32.totalorder %v4415, 0
    %v4417 = vsub.s32 0, %v4415
    %v4418 = vsel %vm4416, %v4417, %v4415
    %v4419 = vclz %v4418
    %v4420 = vsub.s32 %v4419, 2
    %vm4421 = vcmp.gt.s32.totalorder 0, %v4420
    %v4422 = vsel %vm4421, 0, %v4420
    %v4423 = vsub.s32 32, %v4422
    %v4424 = vshll.u32 %v4415, %v4422
    %v4425 = vshrl.u32 %v4407, %v4423
    %v4426 = vor.u32 %v4424, %v4425
    %v4427 = vsub.s32 4294967266, %v4422
    %v4428 = vadd.s32 %v4427, 127
    %v4429 = vshll.u32 %v4428, 23
    %v4430 = vor.u32 4788187, %v4429
    %v4431 = vand.u32 2147483647, %v4430
    %v4433 = vcvt.s32.f32 %v4426
    %v4434 = vmul.f32 %v4433, %v4431
    %v4435 = vxor.u32 %v4434, 2147483648
    %v4436 = vsel %vm4353, %v4435, %v4434
    %v4437 = vsub.s32 4, %v4413
    %v4438 = vsel %vm4353, %v4437, %v4413
    %v4439 = vsel %vm4352, %v2990, %v4436
    %v4440 = vsel %vm4352, 0, %v4438
    %v4441 = vcosq.f32.pop %v4439
    %v4442 = vsinq.f32.pop %v4439
    %vm4443 = vweird.f32 %v2990
    %v4444 = vadd.s32 %v4440, 3
    %v4445 = vand.u32 %v4444, 3
    %vm4446 = vcmp.lt.s32.totalorder %v4445, 2
    %vm4447 = vcmp.eq.s32.totalorder %v4445, 0
    %v4448 = vxor.u32 %v4442, 2147483648
    %v4449 = vsel %vm4447, %v4441, %v4448
    %vm4450 = vcmp.eq.s32.totalorder %v4445, 2
    %v4451 = vxor.u32 %v4441, 2147483648
    %v4452 = vsel %vm4450, %v4451, %v4442
    %v4453 = vsel %vm4446, %v4449, %v4452
    %v4454 = vsel %vm4443, nan, %v4453
    %v4455 = vand.u32 2147483647, %v2995
    %vm4456 = vcmp.le.f32.partialorder %v4455, 0.7853982
    %vm4457 = vcmp.lt.s32.totalorder %v2995, 0
    %v4458 = vand.u32 %v2995, 2139095040
    %v4459 = vshrl.u32 %v4458, 23
    %v4460 = vsub.s32 %v4459, 127
    %v4461 = vand.u32 2147483647, %v2995
    %v4462 = vand.u32 %v4461, 8388607
    %v4463 = vor.u32 %v4462, 8388608
    %v4464 = vsub.s32 0, %v4463
    %v4465 = vadd.s32 %v4460, 1
    %vm4466 = vcmp.gt.s32.totalorder %v4465, 0
    %v4467 = vsel %vm4466, %v4465, 0
    %v4468 = vshrl.u32 %v4467, 5
    %v4469 = vand.u32 %v4467, 31
    %v4470 = vsub.s32 32, %v4469
    %v4471 = vshrl.u32 683565275, %v4470
    %v4472 = vshll.u32 683565275, %v4469
    %v4473 = vshrl.u32 2475754826, %v4470
    %v4474 = vor.u32 %v4472, %v4473
    %v4475 = vshll.u32 2475754826, %v4469
    %v4476 = vshrl.u32 2131351028, %v4470
    %v4477 = vor.u32 %v4475, %v4476
    %v4478 = vshll.u32 2131351028, %v4469
    %v4479 = vshrl.u32 2102212464, %v4470
    %v4480 = vor.u32 %v4478, %v4479
    %v4481 = vshll.u32 2102212464, %v4469
    %v4482 = vshrl.u32 920167782, %v4470
    %v4483 = vor.u32 %v4481, %v4482
    %v4484 = vshll.u32 920167782, %v4469
    %v4485 = vshrl.u32 1326507024, %v4470
    %v4486 = vor.u32 %v4484, %v4485
    %vm4487 = vcmp.lt.s32.totalorder %v4468, 1
    %vm4488 = vcmp.lt.s32.totalorder %v4468, 2
    %vm4489 = vcmp.lt.s32.totalorder %v4468, 3
    %vm4490 = vcmp.lt.s32.totalorder %v4468, 4
    %v4491 = vsel %vm4487, %v4471, %v4474
    %v4492 = vsel %vm4490, %v4480, 2102212464
    %v4493 = vsel %vm4489, %v4477, %v4492
    %v4494 = vsel %vm4488, %v4491, %v4493
    %v4495 = vsel %vm4487, %v4474, %v4477
    %v4496 = vsel %vm4490, %v4483, 920167782
    %v4497 = vsel %vm4489, %v4480, %v4496
    %v4498 = vsel %vm4488, %v4495, %v4497
    %v4499 = vsel %vm4487, %v4477, %v4480
    %v4500 = vsel %vm4490, %v4486, 1326507024
    %v4501 = vsel %vm4489, %v4483, %v4500
    %v4502 = vsel %vm4488, %v4499, %v4501
    %v4503 = vshll.u32 %v4463, 8
    %v4504 = vmul.u32.u64.compose %v4503, %v4502
    %v4505 = vextract.low.u32 %v4504
    %v4506 = vextract.high.u32 %v4504
    %v4507 = vmul.u32.u64.compose %v4503, %v4498
    %v4508 = vextract.low.u32 %v4507
    %v4509 = vextract.high.u32 %v4507
    %v4510 = vmul.u32 %v4503, %v4494
    %v4511 = vadd.s32 %v4506, %v4508
    %vm4512 = vc.u32 %v4506, %v4508
    %v4513 = vadd.s32 %v4509, 1
    %v4514 = vsel %vm4512, %v4513, %v4509
    %v4515 = vadd.s32 %v4510, %v4514
    %v4516 = vadd.s32 %v4515, 536870912
    %v4517 = vshrl.u32 %v4516, 30
    %v4518 = vshll.u32 %v4517, 30
    %v4519 = vsub.s32 %v4515, %v4518
    %vm4520 = vcmp.lt.s32.totalorder %v4519, 0
    %v4521 = vsub.s32 0, %v4519
    %v4522 = vsel %vm4520, %v4521, %v4519
    %v4523 = vclz %v4522
    %v4524 = vsub.s32 %v4523, 2
    %vm4525 = vcmp.gt.s32.totalorder 0, %v4524
    %v4526 = vsel %vm4525, 0, %v4524
    %v4527 = vsub.s32 32, %v4526
    %v4528 = vshll.u32 %v4519, %v4526
    %v4529 = vshrl.u32 %v4511, %v4527
    %v4530 = vor.u32 %v4528, %v4529
    %v4531 = vsub.s32 4294967266, %v4526
    %v4532 = vadd.s32 %v4531, 127
    %v4533 = vshll.u32 %v4532, 23
    %v4534 = vor.u32 4788187, %v4533
    %v4535 = vand.u32 2147483647, %v4534
    %v4537 = vcvt.s32.f32 %v4530
    %v4538 = vmul.f32 %v4537, %v4535
    %v4539 = vxor.u32 %v4538, 2147483648
    %v4540 = vsel %vm4457, %v4539, %v4538
    %v4541 = vsub.s32 4, %v4517
    %v4542 = vsel %vm4457, %v4541, %v4517
    %v4543 = vsel %vm4456, %v2995, %v4540
    %v4544 = vsel %vm4456, 0, %v4542
    %v4545 = vcosq.f32.pop %v4543
    %v4546 = vsinq.f32.pop %v4543
    %vm4547 = vweird.f32 %v2995
    %v4548 = vadd.s32 %v4544, 3
    %v4549 = vand.u32 %v4548, 3
    %vm4550 = vcmp.lt.s32.totalorder %v4549, 2
    %vm4551 = vcmp.eq.s32.totalorder %v4549, 0
    %v4552 = vxor.u32 %v4546, 2147483648
    %v4553 = vsel %vm4551, %v4545, %v4552
    %vm4554 = vcmp.eq.s32.totalorder %v4549, 2
    %v4555 = vxor.u32 %v4545, 2147483648
    %v4556 = vsel %vm4554, %v4555, %v4546
    %v4557 = vsel %vm4550, %v4553, %v4556
    %v4558 = vsel %vm4547, nan, %v4557
    %v4559 = vand.u32 2147483647, %v2997
    %vm4560 = vcmp.le.f32.partialorder %v4559, 0.7853982
    %vm4561 = vcmp.lt.s32.totalorder %v2997, 0
    %v4562 = vand.u32 %v2997, 2139095040
    %v4563 = vshrl.u32 %v4562, 23
    %v4564 = vsub.s32 %v4563, 127
    %v4565 = vand.u32 2147483647, %v2997
    %v4566 = vand.u32 %v4565, 8388607
    %v4567 = vor.u32 %v4566, 8388608
    %v4568 = vsub.s32 0, %v4567
    %v4569 = vadd.s32 %v4564, 1
    %vm4570 = vcmp.gt.s32.totalorder %v4569, 0
    %v4571 = vsel %vm4570, %v4569, 0
    %v4572 = vshrl.u32 %v4571, 5
    %v4573 = vand.u32 %v4571, 31
    %v4574 = vsub.s32 32, %v4573
    %v4575 = vshrl.u32 683565275, %v4574
    %v4576 = vshll.u32 683565275, %v4573
    %v4577 = vshrl.u32 2475754826, %v4574
    %v4578 = vor.u32 %v4576, %v4577
    %v4579 = vshll.u32 2475754826, %v4573
    %v4580 = vshrl.u32 2131351028, %v4574
    %v4581 = vor.u32 %v4579, %v4580
    %v4582 = vshll.u32 2131351028, %v4573
    %v4583 = vshrl.u32 2102212464, %v4574
    %v4584 = vor.u32 %v4582, %v4583
    %v4585 = vshll.u32 2102212464, %v4573
    %v4586 = vshrl.u32 920167782, %v4574
    %v4587 = vor.u32 %v4585, %v4586
    %v4588 = vshll.u32 920167782, %v4573
    %v4589 = vshrl.u32 1326507024, %v4574
    %v4590 = vor.u32 %v4588, %v4589
    %vm4591 = vcmp.lt.s32.totalorder %v4572, 1
    %vm4592 = vcmp.lt.s32.totalorder %v4572, 2
    %vm4593 = vcmp.lt.s32.totalorder %v4572, 3
    %vm4594 = vcmp.lt.s32.totalorder %v4572, 4
    %v4595 = vsel %vm4591, %v4575, %v4578
    %v4596 = vsel %vm4594, %v4584, 2102212464
    %v4597 = vsel %vm4593, %v4581, %v4596
    %v4598 = vsel %vm4592, %v4595, %v4597
    %v4599 = vsel %vm4591, %v4578, %v4581
    %v4600 = vsel %vm4594, %v4587, 920167782
    %v4601 = vsel %vm4593, %v4584, %v4600
    %v4602 = vsel %vm4592, %v4599, %v4601
    %v4603 = vsel %vm4591, %v4581, %v4584
    %v4604 = vsel %vm4594, %v4590, 1326507024
    %v4605 = vsel %vm4593, %v4587, %v4604
    %v4606 = vsel %vm4592, %v4603, %v4605
    %v4607 = vshll.u32 %v4567, 8
    %v4608 = vmul.u32.u64.compose %v4607, %v4606
    %v4609 = vextract.low.u32 %v4608
    %v4610 = vextract.high.u32 %v4608
    %v4611 = vmul.u32.u64.compose %v4607, %v4602
    %v4612 = vextract.low.u32 %v4611
    %v4613 = vextract.high.u32 %v4611
    %v4614 = vmul.u32 %v4607, %v4598
    %v4615 = vadd.s32 %v4610, %v4612
    %vm4616 = vc.u32 %v4610, %v4612
    %v4617 = vadd.s32 %v4613, 1
    %v4618 = vsel %vm4616, %v4617, %v4613
    %v4619 = vadd.s32 %v4614, %v4618
    %v4620 = vadd.s32 %v4619, 536870912
    %v4621 = vshrl.u32 %v4620, 30
    %v4622 = vshll.u32 %v4621, 30
    %v4623 = vsub.s32 %v4619, %v4622
    %vm4624 = vcmp.lt.s32.totalorder %v4623, 0
    %v4625 = vsub.s32 0, %v4623
    %v4626 = vsel %vm4624, %v4625, %v4623
    %v4627 = vclz %v4626
    %v4628 = vsub.s32 %v4627, 2
    %vm4629 = vcmp.gt.s32.totalorder 0, %v4628
    %v4630 = vsel %vm4629, 0, %v4628
    %v4631 = vsub.s32 32, %v4630
    %v4632 = vshll.u32 %v4623, %v4630
    %v4633 = vshrl.u32 %v4615, %v4631
    %v4634 = vor.u32 %v4632, %v4633
    %v4635 = vsub.s32 4294967266, %v4630
    %v4636 = vadd.s32 %v4635, 127
    %v4637 = vshll.u32 %v4636, 23
    %v4638 = vor.u32 4788187, %v4637
    %v4639 = vand.u32 2147483647, %v4638
    %v4641 = vcvt.s32.f32 %v4634
    %v4642 = vmul.f32 %v4641, %v4639
    %v4643 = vxor.u32 %v4642, 2147483648
    %v4644 = vsel %vm4561, %v4643, %v4642
    %v4645 = vsub.s32 4, %v4621
    %v4646 = vsel %vm4561, %v4645, %v4621
    %v4647 = vsel %vm4560, %v2997, %v4644
    %v4648 = vsel %vm4560, 0, %v4646
    %v4649 = vcosq.f32.pop %v4647
    %v4650 = vsinq.f32.pop %v4647
    %vm4651 = vweird.f32 %v2997
    %v4652 = vadd.s32 %v4648, 3
    %v4653 = vand.u32 %v4652, 3
    %vm4654 = vcmp.lt.s32.totalorder %v4653, 2
    %vm4655 = vcmp.eq.s32.totalorder %v4653, 0
    %v4656 = vxor.u32 %v4650, 2147483648
    %v4657 = vsel %vm4655, %v4649, %v4656
    %vm4658 = vcmp.eq.s32.totalorder %v4653, 2
    %v4659 = vxor.u32 %v4649, 2147483648
    %v4660 = vsel %vm4658, %v4659, %v4650
    %v4661 = vsel %vm4654, %v4657, %v4660
    %v4662 = vsel %vm4651, nan, %v4661
    %v4663 = vld [vmem:[%s5] sm:$0xff]
    %v4664 = vld [vmem:[%s5 + $0x8] sm:$0xff]
    %v4665 = vld [vmem:[%s5 + $0x10] sm:$0xff]
    %v4666 = vld [vmem:[%s5 + $0x18] sm:$0xff]
    %v4667 = vld [vmem:[%s5 + $0x20] sm:$0xff]
    %v4668 = vld [vmem:[%s5 + $0x28] sm:$0xff]
    %v4669 = vld [vmem:[%s5 + $0x30] sm:$0xff]
    %v4670 = vld [vmem:[%s5 + $0x38] sm:$0xff]
    %4672 = vset.pattern.permute.xlu0 0
    %4673 = vperm.xlu0 %4672, %v4663
    %v4674 = vpop.permute.xlu0 %4673
    %4677 = vset.pattern.permute.xlu0 0
    %4678 = vperm.xlu0 %4677, %v4664
    %v4679 = vpop.permute.xlu0 %4678
    %4682 = vset.pattern.permute.xlu0 0
    %4683 = vperm.xlu0 %4682, %v4665
    %v4684 = vpop.permute.xlu0 %4683
    %4687 = vset.pattern.permute.xlu0 0
    %4688 = vperm.xlu0 %4687, %v4666
    %v4689 = vpop.permute.xlu0 %4688
    %4692 = vset.pattern.permute.xlu0 0
    %4693 = vperm.xlu0 %4692, %v4667
    %v4694 = vpop.permute.xlu0 %4693
    %4697 = vset.pattern.permute.xlu0 0
    %4698 = vperm.xlu0 %4697, %v4668
    %v4699 = vpop.permute.xlu0 %4698
    %4702 = vset.pattern.permute.xlu0 0
    %4703 = vperm.xlu0 %4702, %v4669
    %v4704 = vpop.permute.xlu0 %4703
    %4707 = vset.pattern.permute.xlu0 0
    %4708 = vperm.xlu0 %4707, %v4670
    %v4709 = vpop.permute.xlu0 %4708
    %v4711 = vmul.f32 %v4674, %v3102
    %v4712 = vmul.f32 %v4674, %v3206
    %v4713 = vmul.f32 %v4679, %v3310
    %v4714 = vmul.f32 %v4679, %v3414
    %v4715 = vmul.f32 %v4684, %v3518
    %v4716 = vmul.f32 %v4684, %v3622
    %v4717 = vmul.f32 %v4689, %v3726
    %v4718 = vmul.f32 %v4689, %v3830
    %v4719 = vmul.f32 %v4694, %v3934
    %v4720 = vmul.f32 %v4694, %v4038
    %v4721 = vmul.f32 %v4699, %v4142
    %v4722 = vmul.f32 %v4699, %v4246
    %v4723 = vmul.f32 %v4704, %v4350
    %v4724 = vmul.f32 %v4704, %v4454
    %v4725 = vmul.f32 %v4709, %v4558
    %v4726 = vmul.f32 %v4709, %v4662
    %v4727 = vadd.f32 %v4711, %v4713
    %v4728 = vadd.f32 %v4727, %v4715
    %v4729 = vadd.f32 %v4728, %v4717
    %v4730 = vrot.slane %v4729, 4
    %v4731 = vadd.f32 %v4729, %v4730
    %v4732 = vrot.slane %v4731, 2
    %v4733 = vadd.f32 %v4731, %v4732
    %v4734 = vrot.slane %v4733, 1
    %v4735 = vadd.f32 %v4733, %v4734
    %v4736 = vadd.f32 %v4712, %v4714
    %v4737 = vadd.f32 %v4736, %v4716
    %v4738 = vadd.f32 %v4737, %v4718
    %v4739 = vrot.slane %v4738, 4
    %v4740 = vadd.f32 %v4738, %v4739
    %v4741 = vrot.slane %v4740, 2
    %v4742 = vadd.f32 %v4740, %v4741
    %v4743 = vrot.slane %v4742, 1
    %v4744 = vadd.f32 %v4742, %v4743
    %v4745 = vadd.f32 %v4719, %v4721
    %v4746 = vadd.f32 %v4745, %v4723
    %v4747 = vadd.f32 %v4746, %v4725
    %v4748 = vrot.slane %v4747, 4
    %v4749 = vadd.f32 %v4747, %v4748
    %v4750 = vrot.slane %v4749, 2
    %v4751 = vadd.f32 %v4749, %v4750
    %v4752 = vrot.slane %v4751, 1
    %v4753 = vadd.f32 %v4751, %v4752
    %v4754 = vadd.f32 %v4720, %v4722
    %v4755 = vadd.f32 %v4754, %v4724
    %v4756 = vadd.f32 %v4755, %v4726
    %v4757 = vrot.slane %v4756, 4
    %v4758 = vadd.f32 %v4756, %v4757
    %v4759 = vrot.slane %v4758, 2
    %v4760 = vadd.f32 %v4758, %v4759
    %v4761 = vrot.slane %v4760, 1
    %v4762 = vadd.f32 %v4760, %v4761
    %v4763 = vld [vmem:[%s6] sm:$0x3]
    %4765 = vset.pattern.permute.xlu0 0
    %4766 = vperm.xlu0 %4765, %v4763
    %v4767 = vpop.permute.xlu0 %4766
    %v4768 = vrot.slane %v4767, 1
    %v4771 = vadd.f32 %v4735, %v4767
    %v4772 = vadd.f32 %v4744, %v4767
    %v4773 = vadd.f32 %v4753, %v4768
    %v4774 = vadd.f32 %v4762, %v4768
    %v4779 = vcombine.low %v4771, %v4772
    %v4781 = vunpack.c.l.s4 1983009808
    %v4782 = vunpack.c.0.s8 %v4781
    %v4783 = vlaneseq
    %v4784 = vshrl.u32 %v4783, 7
    %v4785 = vsub.s32 %v4782, %v4784
    %v4786 = vrot.slane %v4779, %v4785
    %v4787 = vcombine.low %v4773, %v4774
    %v4789 = vunpack.c.l.s4 1983009808
    %v4790 = vunpack.c.0.s8 %v4789
    %v4791 = vlaneseq
    %v4792 = vshrl.u32 %v4791, 7
    %v4793 = vsub.s32 %v4790, %v4792
    %v4794 = vrot.slane %v4787, %v4793
    %vm4795 = vcmask 1044484
    %v4796 = vsel %vm4795, %v4786, %v4786
    %vm4797 = vcmask 1046534
    %v4798 = vsel %vm4797, %v4786, %v4796
    %v4799 = vrot.slane %v4794, 7
    %vm4800 = vcmask 1041409
    %v4801 = vsel %vm4800, %v4799, %v4798
    %vm4802 = vcmask 1043459
    %v4803 = vsel %vm4802, %v4799, %v4801
    %vm4804 = vcmask 1045509
    %v4805 = vsel %vm4804, %v4799, %v4803
    %vm4806 = vcmask 1047559
    %v4807 = vsel %vm4806, %v4799, %v4805
    %4809 = vst [vmem:[#allocation2] sm:$0xf] %v4807
    // Predicated region
    $region30: #{tpu_custom_call.1} parent=1 // pred_check
      _
    $region31: #{tpu_custom_call.1} parent=1 // pred_check_branch
      %4811 = sbr.rel (0) target = $region33
    $region32: #{tpu_custom_call.1} parent=1 // pred_region
      %s4813 = ssub.s32 64, 64
      %4814 = vsyncadd [#allocation3], %s4813
      %s4816 = sshll.u32 [#allocation2], 4
      %s4817 = int_to_ptr.vmem [resolvable:$true] %s4816
      %4819 = dma.vmem_to_hbm [thread:$0]  %s4817, 64, %s7, [#allocation3]
    $region33: #{tpu_custom_call.1} parent=1 // pred_fallthru
      _
    // Predicated region
    $region34: #{tpu_custom_call.1} parent=1 // pred_check
      _
    $region35: #{tpu_custom_call.1} parent=1 // pred_check_branch
      %4821 = sbr.rel (0) target = $region37
    $region36: #{tpu_custom_call.1} parent=1 // pred_region
      %4822 = dma.done [#allocation3], 64
    $region37: #{tpu_custom_call.1} parent=1 // pred_fallthru
      _
    %4823 = vsyncpa [#allocation3], 1

</llo_original>
